<compile_context>
chip_gen: v5e
topology: v5e:2x2
jax: 0.10.0
libtpu: 0.0.40
codegen_flags: <defaults>
</compile_context>

<pallas_src>
import math
import functools

import jax
import jax.numpy as jnp
from jax import lax
from jax.experimental import pallas as pl
from jax.experimental.pallas import tpu as pltpu

D_MODEL = 32
NHEAD = 4
FFN = 64
VOCAB = 64
SEQ_MAX = 16
NUM_LAYERS = 6
LN_EPS = 1e-5
NEG_INF = -1e30

# lane-aligned column offsets inside the per-layer big-weight slab (bf16)
OFF_QKV = 0            # (D, 3D)
OFF_WO = 128           # (D, D)
OFF_W1 = 256           # (D, FFN)
WA_LANES = 384
# row indices inside the per-layer bias/LayerNorm slab (f32, (L+1, 8, 128))
R_BQKV, R_BO, R_LN1G, R_LN1B, R_B1, R_B2, R_LN2G, R_LN2B = range(8)


def _layernorm(x, g, b):
    mu = jnp.mean(x, axis=-1, keepdims=True)
    var = jnp.mean((x - mu) ** 2, axis=-1, keepdims=True)
    return (x - mu) * lax.rsqrt(var + LN_EPS) * g + b


def gpt_kernel(ids_ref, mask_ref, emb_ref, wa_ref, wb_ref, bias_ref, o_ref,
               *, nhead, num_layers):
    """Entire GPT forward (embedding -> 6 layers -> vocab proj) in one call."""
    BS = ids_ref.shape[0]          # B*S (batch folded into the sublane axis)
    VS, D = emb_ref.shape          # vocab + seq_max rows, d_model
    F = wb_ref.shape[1]            # feedforward width
    V = o_ref.shape[-1]            # vocab size
    H = nhead
    dh = D // H

    # ---- fused token + positional embedding via a one-hot matmul ----
    lane = lax.broadcasted_iota(jnp.int32, (BS, VS), 1)
    ids = ids_ref[...]                                    # (BS, 2) int32
    tok_oh = (lane == ids[:, 0:1]).astype(jnp.float32)
    pos_oh = (lane == ids[:, 1:2]).astype(jnp.float32)
    x = jnp.dot(tok_oh + pos_oh, emb_ref[...],
                preferred_element_type=jnp.float32)       # (BS, D)

    # ---- constants built once (not per layer) ----
    # head_mask[r, c] = 1 iff row-block r//BS (head) == lane-block c//dh (head)
    rows = lax.broadcasted_iota(jnp.int32, (H * BS, D), 0)
    cols = lax.broadcasted_iota(jnp.int32, (H * BS, D), 1)
    head_mask = None
    for h in range(H):
        blk = ((rows >= h * BS) & (rows < (h + 1) * BS) &
               (cols >= h * dh) & (cols < (h + 1) * dh)).astype(jnp.float32)
        head_mask = blk if head_mask is None else head_mask + blk
    # additive causal + key-padding + cross-batch mask, tiled per head block
    attn_mask = jnp.concatenate([mask_ref[...]] * H, axis=0)          # (H*BS, BS)

    for l in range(num_layers):                      # static; weights stay in VMEM
        xb = x.astype(jnp.bfloat16)

        # ---- fused QKV projection (1/sqrt(dh) folded into the Q columns) ----
        qkv = jnp.dot(xb, wa_ref[l, :, OFF_QKV:OFF_QKV + 3 * D],
                      preferred_element_type=jnp.float32)
        qkv = qkv + bias_ref[l, R_BQKV:R_BQKV + 1, 0:3 * D]
        q = qkv[:, 0:D]
        k = qkv[:, D:2 * D]
        v = qkv[:, 2 * D:3 * D]

        # ---- all heads at once: 2 plain 2-D matmuls (row-stacked heads) ----
        q_exp = jnp.concatenate([q] * H, axis=0) * head_mask          # (H*BS, D)
        scores = jnp.dot(q_exp, k.T,
                         preferred_element_type=jnp.float32) + attn_mask
        m = jnp.max(scores, axis=-1, keepdims=True)
        p = jnp.exp(scores - m)
        p = p * pl.reciprocal(jnp.sum(p, axis=-1, keepdims=True), approx=True)
        ov = jnp.dot(p, v, preferred_element_type=jnp.float32) * head_mask
        attn = ov[0:BS, :]
        for h in range(1, H):
            attn = attn + ov[h * BS:(h + 1) * BS, :]                  # (BS, D)
        attn = jnp.dot(attn.astype(jnp.bfloat16),
                       wa_ref[l, :, OFF_WO:OFF_WO + D],
                       preferred_element_type=jnp.float32)
        attn = attn + bias_ref[l, R_BO:R_BO + 1, 0:D]

        # ---- post-norm residual blocks (norm_first=False, dropout=identity) ----
        h1 = _layernorm(x + attn,
                        bias_ref[l, R_LN1G:R_LN1G + 1, 0:D],
                        bias_ref[l, R_LN1B:R_LN1B + 1, 0:D])
        ff = jnp.dot(h1.astype(jnp.bfloat16), wa_ref[l, :, OFF_W1:OFF_W1 + F],
                     preferred_element_type=jnp.float32)
        ff = jnp.maximum(ff + bias_ref[l, R_B1:R_B1 + 1, 0:F], 0.0)    # relu
        ff = jnp.dot(ff.astype(jnp.bfloat16), wb_ref[l],
                     preferred_element_type=jnp.float32)
        ff = ff + bias_ref[l, R_B2:R_B2 + 1, 0:D]
        x = _layernorm(h1 + ff,
                       bias_ref[l, R_LN2G:R_LN2G + 1, 0:D],
                       bias_ref[l, R_LN2B:R_LN2B + 1, 0:D])

    # ---- vocab projection (stored as the extra "layer" of the slabs) ----
    logits = jnp.dot(x.astype(jnp.bfloat16), wa_ref[num_layers, :, 0:V],
                     preferred_element_type=jnp.float32)
    o_ref[...] = logits + bias_ref[num_layers, 0:1, 0:V]


def run_gpt(ids2, mask, packed):
    BS = ids2.shape[0]
    inputs = [ids2, mask, packed["emb_pos"], packed["wa"], packed["wb"],
              packed["bias"]]

    def full_spec(a):
        n = a.ndim
        return pl.BlockSpec(a.shape, lambda i, n=n: (0,) * n)

    return pl.pallas_call(
        functools.partial(gpt_kernel, nhead=NHEAD, num_layers=NUM_LAYERS),
        out_shape=jax.ShapeDtypeStruct((BS, VOCAB), jnp.float32),
        grid=(1,),
        in_specs=[full_spec(a) for a in inputs],
        out_specs=pl.BlockSpec((BS, VOCAB), lambda i: (0, 0)),
        compiler_params=pltpu.CompilerParams(
            dimension_semantics=("arbitrary",)),
    )(*inputs)


def init_params(key):
    def normal(k, shape, scale=0.05):
        return (scale * jax.random.normal(k, shape)).astype(jnp.float32)

    keys = iter(jax.random.split(key, 2 + NUM_LAYERS * 8))
    L, D, F, V = NUM_LAYERS, D_MODEL, FFN, VOCAB

    tok_emb = normal(next(keys), (V, D), scale=0.5)
    # sinusoidal positional encoding
    pos = jnp.arange(SEQ_MAX, dtype=jnp.float32)[:, None]
    div = jnp.exp(-jnp.arange(0, D, 2, dtype=jnp.float32)
                  * (math.log(10000.0) / D))
    pe = jnp.zeros((SEQ_MAX, D), jnp.float32)
    pe = pe.at[:, 0::2].set(jnp.sin(pos * div))
    pe = pe.at[:, 1::2].set(jnp.cos(pos * div))
    emb_pos = jnp.concatenate([tok_emb, pe], axis=0)            # (V + Smax, D)

    inv_sqrt_dh = 1.0 / math.sqrt(D // NHEAD)
    wa = jnp.zeros((L + 1, D, WA_LANES), jnp.float32)
    bias = jnp.zeros((L + 1, 8, 128), jnp.float32)
    wb_l = []
    for l in range(L):
        wq = normal(next(keys), (D, D)) * inv_sqrt_dh   # softmax scale folded in
        wk = normal(next(keys), (D, D))
        wv = normal(next(keys), (D, D))
        wo = normal(next(keys), (D, D))
        w1 = normal(next(keys), (D, F))
        b1 = normal(next(keys), (F,))
        w2 = normal(next(keys), (F, D))
        b2 = normal(next(keys), (D,))
        wa = wa.at[l, :, OFF_QKV:OFF_QKV + 3 * D].set(
            jnp.concatenate([wq, wk, wv], axis=1))
        wa = wa.at[l, :, OFF_WO:OFF_WO + D].set(wo)
        wa = wa.at[l, :, OFF_W1:OFF_W1 + F].set(w1)
        wb_l.append(w2)
        # qkv / out-proj biases start at zero; LayerNorm gamma=1, beta=0
        bias = bias.at[l, R_LN1G, 0:D].set(1.0)
        bias = bias.at[l, R_LN2G, 0:D].set(1.0)
        bias = bias.at[l, R_B1, 0:F].set(b1)
        bias = bias.at[l, R_B2, 0:D].set(b2)

    prob_w = normal(next(keys), (D, V))
    wa = wa.at[L, :, 0:V].set(prob_w)          # prob_b stays zero in bias[L, 0]

    return {
        "emb_pos": emb_pos,                      # f32 (V+Smax, D)
        "wa": wa.astype(jnp.bfloat16),           # bf16 (L+1, D, 384)
        "wb": jnp.stack(wb_l).astype(jnp.bfloat16),   # bf16 (L, F, D)
        "bias": bias,                            # f32 (L+1, 8, 128)
    }


@jax.jit
def gpt_forward(token_ids, padding_mask, packed):
    B, S = token_ids.shape
    # token and (offset) position indices into the fused [tok_emb; pos_enc] table
    pos = jnp.broadcast_to(jnp.arange(S, dtype=jnp.int32), (B, S)) + VOCAB
    ids2 = jnp.stack([token_ids.reshape(B * S), pos.reshape(B * S)],
                     axis=-1).astype(jnp.int32)                       # (B*S, 2)
    # additive causal + key-padding + cross-batch mask over the flattened rows
    s = jnp.arange(S)
    causal = s[None, :] > s[:, None]                                  # (S, S)
    cross = jnp.arange(B)[:, None] != jnp.arange(B)[None, :]          # (B, B)
    bad = (cross[:, None, :, None] | causal[None, :, None, :]
           | padding_mask[None, None, :, :])                          # (B,S,B,S)
    mask = jnp.where(bad, NEG_INF, 0.0).astype(jnp.float32).reshape(B * S, B * S)
    logits = run_gpt(ids2, mask, packed)
    return logits.reshape(B, S, VOCAB)


if __name__ == "__main__":
    key = jax.random.PRNGKey(0)
    k_tok, k_param = jax.random.split(key)

    B, S = 2, 8
    token_ids = jax.random.randint(k_tok, (B, S), 0, VOCAB, dtype=jnp.int32)
    # key-padding mask: True = padded position (last two tokens of batch row 1)
    padding_mask = jnp.zeros((B, S), dtype=bool).at[1, S - 2:].set(True)

    packed = init_params(k_param)

    logits = gpt_forward(token_ids, padding_mask, packed)
    jax.block_until_ready(logits)
    assert logits.shape == (B, S, VOCAB)
    assert bool(jnp.all(jnp.isfinite(logits)))
    print("KERNEL_OK")
</pallas_src>

<mosaic_0001>
module attributes {stable_mosaic.version = 11 : i64} {
  func.func @gpt_kernel(%arg0: i32, %arg1: memref<16x2xi32, #tpu.memory_space<vmem>>, %arg2: memref<16x16xf32, #tpu.memory_space<vmem>>, %arg3: memref<80x32xf32, #tpu.memory_space<vmem>>, %arg4: memref<7x32x384xbf16, #tpu.memory_space<vmem>>, %arg5: memref<6x64x32xbf16, #tpu.memory_space<vmem>>, %arg6: memref<7x8x128xf32, #tpu.memory_space<vmem>>, %arg7: memref<16x64xf32, #tpu.memory_space<vmem>>) attributes {dimension_semantics = [#tpu.dimension_semantics<arbitrary>], iteration_bounds = array<i64: 1>, scalar_prefetch = 0 : i64, scratch_operands = 0 : i64, tpu.core_type = #tpu.core_type<tc>, window_params = [{pipeline_mode = #tpu.pipeline_mode<synchronous>, transform_indices = @transform_0, window_bounds = array<i64: 16, 2>}, {pipeline_mode = #tpu.pipeline_mode<synchronous>, transform_indices = @transform_1, window_bounds = array<i64: 16, 16>}, {pipeline_mode = #tpu.pipeline_mode<synchronous>, transform_indices = @transform_2, window_bounds = array<i64: 80, 32>}, {pipeline_mode = #tpu.pipeline_mode<synchronous>, transform_indices = @transform_3, window_bounds = array<i64: 7, 32, 384>}, {pipeline_mode = #tpu.pipeline_mode<synchronous>, transform_indices = @transform_4, window_bounds = array<i64: 6, 64, 32>}, {pipeline_mode = #tpu.pipeline_mode<synchronous>, transform_indices = @transform_5, window_bounds = array<i64: 7, 8, 128>}, {pipeline_mode = #tpu.pipeline_mode<synchronous>, transform_indices = @transform_6, window_bounds = array<i64: 16, 64>}]} {
    %0 = tpu.iota {dimensions = array<i32: 1>} : vector<16x80xi32>
    %c0 = arith.constant 0 : index
    %c0_0 = arith.constant 0 : index
    %1 = vector.load %arg1[%c0, %c0_0] : memref<16x2xi32, #tpu.memory_space<vmem>>, vector<16x2xi32>
    %2 = vector.extract_strided_slice %1 {offsets = [0, 0], sizes = [16, 1], strides = [1, 1]} : vector<16x2xi32> to vector<16x1xi32>
    %3 = vector.broadcast %2 : vector<16x1xi32> to vector<16x80xi32>
    %4 = arith.cmpi eq, %0, %3 : vector<16x80xi32>
    %5 = arith.extui %4 : vector<16x80xi1> to vector<16x80xi32>
    %6 = arith.sitofp %5 : vector<16x80xi32> to vector<16x80xf32>
    %7 = vector.extract_strided_slice %1 {offsets = [0, 1], sizes = [16, 1], strides = [1, 1]} : vector<16x2xi32> to vector<16x1xi32>
    %8 = vector.broadcast %7 : vector<16x1xi32> to vector<16x80xi32>
    %9 = arith.cmpi eq, %0, %8 : vector<16x80xi32>
    %10 = arith.extui %9 : vector<16x80xi1> to vector<16x80xi32>
    %11 = arith.sitofp %10 : vector<16x80xi32> to vector<16x80xf32>
    %12 = arith.addf %6, %11 : vector<16x80xf32>
    %c0_1 = arith.constant 0 : index
    %c0_2 = arith.constant 0 : index
    %13 = vector.load %arg3[%c0_1, %c0_2] : memref<80x32xf32, #tpu.memory_space<vmem>>, vector<80x32xf32>
    %cst = arith.constant dense<0.000000e+00> : vector<16x32xf32>
    %14 = tpu.matmul %12, %13, %cst {dimension_numbers = #tpu.dot_dimension_numbers<[1], [0], [0], [1], [0, 0, 1, 1], [], []>} : vector<16x80xf32>, vector<80x32xf32>, vector<16x32xf32> -> vector<16x32xf32>
    %15 = tpu.iota {dimensions = array<i32: 0>} : vector<64x32xi32>
    %16 = tpu.iota {dimensions = array<i32: 1>} : vector<64x32xi32>
    %c0_i32 = arith.constant 0 : i32
    %17 = vector.broadcast %c0_i32 : i32 to vector<64x32xi32>
    %18 = arith.cmpi sge, %15, %17 : vector<64x32xi32>
    %c16_i32 = arith.constant 16 : i32
    %19 = vector.broadcast %c16_i32 : i32 to vector<64x32xi32>
    %20 = arith.cmpi slt, %15, %19 : vector<64x32xi32>
    %21 = arith.andi %18, %20 : vector<64x32xi1>
    %c0_i32_3 = arith.constant 0 : i32
    %22 = vector.broadcast %c0_i32_3 : i32 to vector<64x32xi32>
    %23 = arith.cmpi sge, %16, %22 : vector<64x32xi32>
    %24 = arith.andi %21, %23 : vector<64x32xi1>
    %c8_i32 = arith.constant 8 : i32
    %25 = vector.broadcast %c8_i32 : i32 to vector<64x32xi32>
    %26 = arith.cmpi slt, %16, %25 : vector<64x32xi32>
    %27 = arith.andi %24, %26 : vector<64x32xi1>
    %28 = arith.extui %27 : vector<64x32xi1> to vector<64x32xi32>
    %29 = arith.sitofp %28 : vector<64x32xi32> to vector<64x32xf32>
    %c16_i32_4 = arith.constant 16 : i32
    %30 = vector.broadcast %c16_i32_4 : i32 to vector<64x32xi32>
    %31 = arith.cmpi sge, %15, %30 : vector<64x32xi32>
    %c32_i32 = arith.constant 32 : i32
    %32 = vector.broadcast %c32_i32 : i32 to vector<64x32xi32>
    %33 = arith.cmpi slt, %15, %32 : vector<64x32xi32>
    %34 = arith.andi %31, %33 : vector<64x32xi1>
    %c8_i32_5 = arith.constant 8 : i32
    %35 = vector.broadcast %c8_i32_5 : i32 to vector<64x32xi32>
    %36 = arith.cmpi sge, %16, %35 : vector<64x32xi32>
    %37 = arith.andi %34, %36 : vector<64x32xi1>
    %c16_i32_6 = arith.constant 16 : i32
    %38 = vector.broadcast %c16_i32_6 : i32 to vector<64x32xi32>
    %39 = arith.cmpi slt, %16, %38 : vector<64x32xi32>
    %40 = arith.andi %37, %39 : vector<64x32xi1>
    %41 = arith.extui %40 : vector<64x32xi1> to vector<64x32xi32>
    %42 = arith.sitofp %41 : vector<64x32xi32> to vector<64x32xf32>
    %43 = arith.addf %29, %42 : vector<64x32xf32>
    %c32_i32_7 = arith.constant 32 : i32
    %44 = vector.broadcast %c32_i32_7 : i32 to vector<64x32xi32>
    %45 = arith.cmpi sge, %15, %44 : vector<64x32xi32>
    %c48_i32 = arith.constant 48 : i32
    %46 = vector.broadcast %c48_i32 : i32 to vector<64x32xi32>
    %47 = arith.cmpi slt, %15, %46 : vector<64x32xi32>
    %48 = arith.andi %45, %47 : vector<64x32xi1>
    %c16_i32_8 = arith.constant 16 : i32
    %49 = vector.broadcast %c16_i32_8 : i32 to vector<64x32xi32>
    %50 = arith.cmpi sge, %16, %49 : vector<64x32xi32>
    %51 = arith.andi %48, %50 : vector<64x32xi1>
    %c24_i32 = arith.constant 24 : i32
    %52 = vector.broadcast %c24_i32 : i32 to vector<64x32xi32>
    %53 = arith.cmpi slt, %16, %52 : vector<64x32xi32>
    %54 = arith.andi %51, %53 : vector<64x32xi1>
    %55 = arith.extui %54 : vector<64x32xi1> to vector<64x32xi32>
    %56 = arith.sitofp %55 : vector<64x32xi32> to vector<64x32xf32>
    %57 = arith.addf %43, %56 : vector<64x32xf32>
    %c48_i32_9 = arith.constant 48 : i32
    %58 = vector.broadcast %c48_i32_9 : i32 to vector<64x32xi32>
    %59 = arith.cmpi sge, %15, %58 : vector<64x32xi32>
    %c64_i32 = arith.constant 64 : i32
    %60 = vector.broadcast %c64_i32 : i32 to vector<64x32xi32>
    %61 = arith.cmpi slt, %15, %60 : vector<64x32xi32>
    %62 = arith.andi %59, %61 : vector<64x32xi1>
    %c24_i32_10 = arith.constant 24 : i32
    %63 = vector.broadcast %c24_i32_10 : i32 to vector<64x32xi32>
    %64 = arith.cmpi sge, %16, %63 : vector<64x32xi32>
    %65 = arith.andi %62, %64 : vector<64x32xi1>
    %c32_i32_11 = arith.constant 32 : i32
    %66 = vector.broadcast %c32_i32_11 : i32 to vector<64x32xi32>
    %67 = arith.cmpi slt, %16, %66 : vector<64x32xi32>
    %68 = arith.andi %65, %67 : vector<64x32xi1>
    %69 = arith.extui %68 : vector<64x32xi1> to vector<64x32xi32>
    %70 = arith.sitofp %69 : vector<64x32xi32> to vector<64x32xf32>
    %71 = arith.addf %57, %70 : vector<64x32xf32>
    %c0_12 = arith.constant 0 : index
    %c0_13 = arith.constant 0 : index
    %72 = vector.load %arg2[%c0_12, %c0_13] : memref<16x16xf32, #tpu.memory_space<vmem>>, vector<16x16xf32>
    %73 = tpu.concatenate %72, %72, %72, %72 in 0 : vector<16x16xf32>, vector<16x16xf32>, vector<16x16xf32>, vector<16x16xf32> -> vector<64x16xf32>
    %74 = arith.truncf %14 : vector<16x32xf32> to vector<16x32xbf16>
    %c0_14 = arith.constant 0 : index
    %c0_15 = arith.constant 0 : index
    %c0_16 = arith.constant 0 : index
    %75 = vector.load %arg4[%c0_14, %c0_15, %c0_16] : memref<7x32x384xbf16, #tpu.memory_space<vmem>>, vector<1x32x96xbf16>
    %76 = vector.shape_cast %75 : vector<1x32x96xbf16> to vector<32x96xbf16>
    %cst_17 = arith.constant dense<0.000000e+00> : vector<16x96xf32>
    %77 = tpu.matmul %74, %76, %cst_17 {dimension_numbers = #tpu.dot_dimension_numbers<[1], [0], [0], [1], [0, 0, 1, 1], [], []>} : vector<16x32xbf16>, vector<32x96xbf16>, vector<16x96xf32> -> vector<16x96xf32>
    %c0_18 = arith.constant 0 : index
    %c0_19 = arith.constant 0 : index
    %c0_20 = arith.constant 0 : index
    %78 = vector.load %arg6[%c0_18, %c0_19, %c0_20] : memref<7x8x128xf32, #tpu.memory_space<vmem>>, vector<1x1x96xf32>
    %79 = vector.shape_cast %78 : vector<1x1x96xf32> to vector<1x96xf32>
    %80 = vector.broadcast %79 : vector<1x96xf32> to vector<16x96xf32>
    %81 = arith.addf %77, %80 : vector<16x96xf32>
    %82 = vector.extract_strided_slice %81 {offsets = [0, 0], sizes = [16, 32], strides = [1, 1]} : vector<16x96xf32> to vector<16x32xf32>
    %83 = vector.extract_strided_slice %81 {offsets = [0, 32], sizes = [16, 32], strides = [1, 1]} : vector<16x96xf32> to vector<16x32xf32>
    %84 = vector.extract_strided_slice %81 {offsets = [0, 64], sizes = [16, 32], strides = [1, 1]} : vector<16x96xf32> to vector<16x32xf32>
    %85 = tpu.concatenate %82, %82, %82, %82 in 0 : vector<16x32xf32>, vector<16x32xf32>, vector<16x32xf32>, vector<16x32xf32> -> vector<64x32xf32>
    %86 = arith.mulf %85, %71 : vector<64x32xf32>
    %87 = tpu.transpose %83, [1, 0] : vector<16x32xf32> -> vector<32x16xf32>
    %cst_21 = arith.constant dense<0.000000e+00> : vector<64x16xf32>
    %88 = tpu.matmul %86, %87, %cst_21 {dimension_numbers = #tpu.dot_dimension_numbers<[1], [0], [0], [1], [0, 0, 1, 1], [], []>} : vector<64x32xf32>, vector<32x16xf32>, vector<64x16xf32> -> vector<64x16xf32>
    %89 = arith.addf %88, %73 : vector<64x16xf32>
    %cst_22 = arith.constant dense<0xFF800000> : vector<64xf32>
    %90 = vector.multi_reduction <maximumf>, %89, %cst_22 [1] : vector<64x16xf32> to vector<64xf32>
    %91 = vector.shape_cast %90 : vector<64xf32> to vector<64x1xf32>
    %92 = vector.broadcast %91 : vector<64x1xf32> to vector<64x16xf32>
    %93 = arith.subf %89, %92 : vector<64x16xf32>
    %94 = math.exp %93 : vector<64x16xf32>
    %cst_23 = arith.constant dense<0.000000e+00> : vector<64xf32>
    %95 = vector.multi_reduction <add>, %94, %cst_23 [1] : vector<64x16xf32> to vector<64xf32>
    %96 = vector.shape_cast %95 : vector<64xf32> to vector<64x1xf32>
    %97 = tpu.reciprocal %96 {approx = true} : vector<64x1xf32> -> vector<64x1xf32>
    %98 = vector.broadcast %97 : vector<64x1xf32> to vector<64x16xf32>
    %99 = arith.mulf %94, %98 : vector<64x16xf32>
    %cst_24 = arith.constant dense<0.000000e+00> : vector<64x32xf32>
    %100 = tpu.matmul %99, %84, %cst_24 {dimension_numbers = #tpu.dot_dimension_numbers<[1], [0], [0], [1], [0, 0, 1, 1], [], []>} : vector<64x16xf32>, vector<16x32xf32>, vector<64x32xf32> -> vector<64x32xf32>
    %101 = arith.mulf %100, %71 : vector<64x32xf32>
    %102 = vector.extract_strided_slice %101 {offsets = [0, 0], sizes = [16, 32], strides = [1, 1]} : vector<64x32xf32> to vector<16x32xf32>
    %103 = vector.extract_strided_slice %101 {offsets = [16, 0], sizes = [16, 32], strides = [1, 1]} : vector<64x32xf32> to vector<16x32xf32>
    %104 = arith.addf %102, %103 : vector<16x32xf32>
    %105 = vector.extract_strided_slice %101 {offsets = [32, 0], sizes = [16, 32], strides = [1, 1]} : vector<64x32xf32> to vector<16x32xf32>
    %106 = arith.addf %104, %105 : vector<16x32xf32>
    %107 = vector.extract_strided_slice %101 {offsets = [48, 0], sizes = [16, 32], strides = [1, 1]} : vector<64x32xf32> to vector<16x32xf32>
    %108 = arith.addf %106, %107 : vector<16x32xf32>
    %109 = arith.truncf %108 : vector<16x32xf32> to vector<16x32xbf16>
    %c0_25 = arith.constant 0 : index
    %c0_26 = arith.constant 0 : index
    %c128 = arith.constant 128 : index
    %110 = vector.load %arg4[%c0_25, %c0_26, %c128] : memref<7x32x384xbf16, #tpu.memory_space<vmem>>, vector<1x32x32xbf16>
    %111 = vector.shape_cast %110 : vector<1x32x32xbf16> to vector<32x32xbf16>
    %cst_27 = arith.constant dense<0.000000e+00> : vector<16x32xf32>
    %112 = tpu.matmul %109, %111, %cst_27 {dimension_numbers = #tpu.dot_dimension_numbers<[1], [0], [0], [1], [0, 0, 1, 1], [], []>} : vector<16x32xbf16>, vector<32x32xbf16>, vector<16x32xf32> -> vector<16x32xf32>
    %c0_28 = arith.constant 0 : index
    %c1 = arith.constant 1 : index
    %c0_29 = arith.constant 0 : index
    %113 = vector.load %arg6[%c0_28, %c1, %c0_29] : memref<7x8x128xf32, #tpu.memory_space<vmem>>, vector<1x1x32xf32>
    %114 = vector.shape_cast %113 : vector<1x1x32xf32> to vector<1x32xf32>
    %115 = vector.broadcast %114 : vector<1x32xf32> to vector<16x32xf32>
    %116 = arith.addf %112, %115 : vector<16x32xf32>
    %117 = arith.addf %14, %116 : vector<16x32xf32>
    %c0_30 = arith.constant 0 : index
    %c2 = arith.constant 2 : index
    %c0_31 = arith.constant 0 : index
    %118 = vector.load %arg6[%c0_30, %c2, %c0_31] : memref<7x8x128xf32, #tpu.memory_space<vmem>>, vector<1x1x32xf32>
    %119 = vector.shape_cast %118 : vector<1x1x32xf32> to vector<1x32xf32>
    %c0_32 = arith.constant 0 : index
    %c3 = arith.constant 3 : index
    %c0_33 = arith.constant 0 : index
    %120 = vector.load %arg6[%c0_32, %c3, %c0_33] : memref<7x8x128xf32, #tpu.memory_space<vmem>>, vector<1x1x32xf32>
    %121 = vector.shape_cast %120 : vector<1x1x32xf32> to vector<1x32xf32>
    %cst_34 = arith.constant dense<0.000000e+00> : vector<16xf32>
    %122 = vector.multi_reduction <add>, %117, %cst_34 [1] : vector<16x32xf32> to vector<16xf32>
    %123 = vector.shape_cast %122 : vector<16xf32> to vector<16x1xf32>
    %cst_35 = arith.constant 3.200000e+01 : f32
    %124 = vector.broadcast %cst_35 : f32 to vector<16x1xf32>
    %125 = arith.divf %123, %124 : vector<16x1xf32>
    %126 = vector.broadcast %125 : vector<16x1xf32> to vector<16x32xf32>
    %127 = arith.subf %117, %126 : vector<16x32xf32>
    %128 = arith.mulf %127, %127 : vector<16x32xf32>
    %cst_36 = arith.constant dense<0.000000e+00> : vector<16xf32>
    %129 = vector.multi_reduction <add>, %128, %cst_36 [1] : vector<16x32xf32> to vector<16xf32>
    %130 = vector.shape_cast %129 : vector<16xf32> to vector<16x1xf32>
    %cst_37 = arith.constant 3.200000e+01 : f32
    %131 = vector.broadcast %cst_37 : f32 to vector<16x1xf32>
    %132 = arith.divf %130, %131 : vector<16x1xf32>
    %133 = vector.broadcast %125 : vector<16x1xf32> to vector<16x32xf32>
    %134 = arith.subf %117, %133 : vector<16x32xf32>
    %cst_38 = arith.constant 9.99999974E-6 : f32
    %135 = vector.broadcast %cst_38 : f32 to vector<16x1xf32>
    %136 = arith.addf %132, %135 : vector<16x1xf32>
    %137 = math.rsqrt %136 : vector<16x1xf32>
    %138 = vector.broadcast %137 : vector<16x1xf32> to vector<16x32xf32>
    %139 = arith.mulf %134, %138 : vector<16x32xf32>
    %140 = vector.broadcast %119 : vector<1x32xf32> to vector<16x32xf32>
    %141 = arith.mulf %139, %140 : vector<16x32xf32>
    %142 = vector.broadcast %121 : vector<1x32xf32> to vector<16x32xf32>
    %143 = arith.addf %141, %142 : vector<16x32xf32>
    %144 = arith.truncf %143 : vector<16x32xf32> to vector<16x32xbf16>
    %c0_39 = arith.constant 0 : index
    %c0_40 = arith.constant 0 : index
    %c256 = arith.constant 256 : index
    %145 = vector.load %arg4[%c0_39, %c0_40, %c256] : memref<7x32x384xbf16, #tpu.memory_space<vmem>>, vector<1x32x64xbf16>
    %146 = vector.shape_cast %145 : vector<1x32x64xbf16> to vector<32x64xbf16>
    %cst_41 = arith.constant dense<0.000000e+00> : vector<16x64xf32>
    %147 = tpu.matmul %144, %146, %cst_41 {dimension_numbers = #tpu.dot_dimension_numbers<[1], [0], [0], [1], [0, 0, 1, 1], [], []>} : vector<16x32xbf16>, vector<32x64xbf16>, vector<16x64xf32> -> vector<16x64xf32>
    %c0_42 = arith.constant 0 : index
    %c4 = arith.constant 4 : index
    %c0_43 = arith.constant 0 : index
    %148 = vector.load %arg6[%c0_42, %c4, %c0_43] : memref<7x8x128xf32, #tpu.memory_space<vmem>>, vector<1x1x64xf32>
    %149 = vector.shape_cast %148 : vector<1x1x64xf32> to vector<1x64xf32>
    %150 = vector.broadcast %149 : vector<1x64xf32> to vector<16x64xf32>
    %151 = arith.addf %147, %150 : vector<16x64xf32>
    %cst_44 = arith.constant 0.000000e+00 : f32
    %152 = vector.broadcast %cst_44 : f32 to vector<16x64xf32>
    %153 = arith.maximumf %151, %152 : vector<16x64xf32>
    %154 = arith.truncf %153 : vector<16x64xf32> to vector<16x64xbf16>
    %c0_45 = arith.constant 0 : index
    %c0_46 = arith.constant 0 : index
    %c0_47 = arith.constant 0 : index
    %155 = vector.load %arg5[%c0_45, %c0_46, %c0_47] : memref<6x64x32xbf16, #tpu.memory_space<vmem>>, vector<1x64x32xbf16>
    %156 = vector.shape_cast %155 : vector<1x64x32xbf16> to vector<64x32xbf16>
    %cst_48 = arith.constant dense<0.000000e+00> : vector<16x32xf32>
    %157 = tpu.matmul %154, %156, %cst_48 {dimension_numbers = #tpu.dot_dimension_numbers<[1], [0], [0], [1], [0, 0, 1, 1], [], []>} : vector<16x64xbf16>, vector<64x32xbf16>, vector<16x32xf32> -> vector<16x32xf32>
    %c0_49 = arith.constant 0 : index
    %c5 = arith.constant 5 : index
    %c0_50 = arith.constant 0 : index
    %158 = vector.load %arg6[%c0_49, %c5, %c0_50] : memref<7x8x128xf32, #tpu.memory_space<vmem>>, vector<1x1x32xf32>
    %159 = vector.shape_cast %158 : vector<1x1x32xf32> to vector<1x32xf32>
    %160 = vector.broadcast %159 : vector<1x32xf32> to vector<16x32xf32>
    %161 = arith.addf %157, %160 : vector<16x32xf32>
    %162 = arith.addf %143, %161 : vector<16x32xf32>
    %c0_51 = arith.constant 0 : index
    %c6 = arith.constant 6 : index
    %c0_52 = arith.constant 0 : index
    %163 = vector.load %arg6[%c0_51, %c6, %c0_52] : memref<7x8x128xf32, #tpu.memory_space<vmem>>, vector<1x1x32xf32>
    %164 = vector.shape_cast %163 : vector<1x1x32xf32> to vector<1x32xf32>
    %c0_53 = arith.constant 0 : index
    %c7 = arith.constant 7 : index
    %c0_54 = arith.constant 0 : index
    %165 = vector.load %arg6[%c0_53, %c7, %c0_54] : memref<7x8x128xf32, #tpu.memory_space<vmem>>, vector<1x1x32xf32>
    %166 = vector.shape_cast %165 : vector<1x1x32xf32> to vector<1x32xf32>
    %cst_55 = arith.constant dense<0.000000e+00> : vector<16xf32>
    %167 = vector.multi_reduction <add>, %162, %cst_55 [1] : vector<16x32xf32> to vector<16xf32>
    %168 = vector.shape_cast %167 : vector<16xf32> to vector<16x1xf32>
    %cst_56 = arith.constant 3.200000e+01 : f32
    %169 = vector.broadcast %cst_56 : f32 to vector<16x1xf32>
    %170 = arith.divf %168, %169 : vector<16x1xf32>
    %171 = vector.broadcast %170 : vector<16x1xf32> to vector<16x32xf32>
    %172 = arith.subf %162, %171 : vector<16x32xf32>
    %173 = arith.mulf %172, %172 : vector<16x32xf32>
    %cst_57 = arith.constant dense<0.000000e+00> : vector<16xf32>
    %174 = vector.multi_reduction <add>, %173, %cst_57 [1] : vector<16x32xf32> to vector<16xf32>
    %175 = vector.shape_cast %174 : vector<16xf32> to vector<16x1xf32>
    %cst_58 = arith.constant 3.200000e+01 : f32
    %176 = vector.broadcast %cst_58 : f32 to vector<16x1xf32>
    %177 = arith.divf %175, %176 : vector<16x1xf32>
    %178 = vector.broadcast %170 : vector<16x1xf32> to vector<16x32xf32>
    %179 = arith.subf %162, %178 : vector<16x32xf32>
    %cst_59 = arith.constant 9.99999974E-6 : f32
    %180 = vector.broadcast %cst_59 : f32 to vector<16x1xf32>
    %181 = arith.addf %177, %180 : vector<16x1xf32>
    %182 = math.rsqrt %181 : vector<16x1xf32>
    %183 = vector.broadcast %182 : vector<16x1xf32> to vector<16x32xf32>
    %184 = arith.mulf %179, %183 : vector<16x32xf32>
    %185 = vector.broadcast %164 : vector<1x32xf32> to vector<16x32xf32>
    %186 = arith.mulf %184, %185 : vector<16x32xf32>
    %187 = vector.broadcast %166 : vector<1x32xf32> to vector<16x32xf32>
    %188 = arith.addf %186, %187 : vector<16x32xf32>
    %189 = arith.truncf %188 : vector<16x32xf32> to vector<16x32xbf16>
    %c1_60 = arith.constant 1 : index
    %c0_61 = arith.constant 0 : index
    %c0_62 = arith.constant 0 : index
    %190 = vector.load %arg4[%c1_60, %c0_61, %c0_62] : memref<7x32x384xbf16, #tpu.memory_space<vmem>>, vector<1x32x96xbf16>
    %191 = vector.shape_cast %190 : vector<1x32x96xbf16> to vector<32x96xbf16>
    %cst_63 = arith.constant dense<0.000000e+00> : vector<16x96xf32>
    %192 = tpu.matmul %189, %191, %cst_63 {dimension_numbers = #tpu.dot_dimension_numbers<[1], [0], [0], [1], [0, 0, 1, 1], [], []>} : vector<16x32xbf16>, vector<32x96xbf16>, vector<16x96xf32> -> vector<16x96xf32>
    %c1_64 = arith.constant 1 : index
    %c0_65 = arith.constant 0 : index
    %c0_66 = arith.constant 0 : index
    %193 = vector.load %arg6[%c1_64, %c0_65, %c0_66] : memref<7x8x128xf32, #tpu.memory_space<vmem>>, vector<1x1x96xf32>
    %194 = vector.shape_cast %193 : vector<1x1x96xf32> to vector<1x96xf32>
    %195 = vector.broadcast %194 : vector<1x96xf32> to vector<16x96xf32>
    %196 = arith.addf %192, %195 : vector<16x96xf32>
    %197 = vector.extract_strided_slice %196 {offsets = [0, 0], sizes = [16, 32], strides = [1, 1]} : vector<16x96xf32> to vector<16x32xf32>
    %198 = vector.extract_strided_slice %196 {offsets = [0, 32], sizes = [16, 32], strides = [1, 1]} : vector<16x96xf32> to vector<16x32xf32>
    %199 = vector.extract_strided_slice %196 {offsets = [0, 64], sizes = [16, 32], strides = [1, 1]} : vector<16x96xf32> to vector<16x32xf32>
    %200 = tpu.concatenate %197, %197, %197, %197 in 0 : vector<16x32xf32>, vector<16x32xf32>, vector<16x32xf32>, vector<16x32xf32> -> vector<64x32xf32>
    %201 = arith.mulf %200, %71 : vector<64x32xf32>
    %202 = tpu.transpose %198, [1, 0] : vector<16x32xf32> -> vector<32x16xf32>
    %cst_67 = arith.constant dense<0.000000e+00> : vector<64x16xf32>
    %203 = tpu.matmul %201, %202, %cst_67 {dimension_numbers = #tpu.dot_dimension_numbers<[1], [0], [0], [1], [0, 0, 1, 1], [], []>} : vector<64x32xf32>, vector<32x16xf32>, vector<64x16xf32> -> vector<64x16xf32>
    %204 = arith.addf %203, %73 : vector<64x16xf32>
    %cst_68 = arith.constant dense<0xFF800000> : vector<64xf32>
    %205 = vector.multi_reduction <maximumf>, %204, %cst_68 [1] : vector<64x16xf32> to vector<64xf32>
    %206 = vector.shape_cast %205 : vector<64xf32> to vector<64x1xf32>
    %207 = vector.broadcast %206 : vector<64x1xf32> to vector<64x16xf32>
    %208 = arith.subf %204, %207 : vector<64x16xf32>
    %209 = math.exp %208 : vector<64x16xf32>
    %cst_69 = arith.constant dense<0.000000e+00> : vector<64xf32>
    %210 = vector.multi_reduction <add>, %209, %cst_69 [1] : vector<64x16xf32> to vector<64xf32>
    %211 = vector.shape_cast %210 : vector<64xf32> to vector<64x1xf32>
    %212 = tpu.reciprocal %211 {approx = true} : vector<64x1xf32> -> vector<64x1xf32>
    %213 = vector.broadcast %212 : vector<64x1xf32> to vector<64x16xf32>
    %214 = arith.mulf %209, %213 : vector<64x16xf32>
    %cst_70 = arith.constant dense<0.000000e+00> : vector<64x32xf32>
    %215 = tpu.matmul %214, %199, %cst_70 {dimension_numbers = #tpu.dot_dimension_numbers<[1], [0], [0], [1], [0, 0, 1, 1], [], []>} : vector<64x16xf32>, vector<16x32xf32>, vector<64x32xf32> -> vector<64x32xf32>
    %216 = arith.mulf %215, %71 : vector<64x32xf32>
    %217 = vector.extract_strided_slice %216 {offsets = [0, 0], sizes = [16, 32], strides = [1, 1]} : vector<64x32xf32> to vector<16x32xf32>
    %218 = vector.extract_strided_slice %216 {offsets = [16, 0], sizes = [16, 32], strides = [1, 1]} : vector<64x32xf32> to vector<16x32xf32>
    %219 = arith.addf %217, %218 : vector<16x32xf32>
    %220 = vector.extract_strided_slice %216 {offsets = [32, 0], sizes = [16, 32], strides = [1, 1]} : vector<64x32xf32> to vector<16x32xf32>
    %221 = arith.addf %219, %220 : vector<16x32xf32>
    %222 = vector.extract_strided_slice %216 {offsets = [48, 0], sizes = [16, 32], strides = [1, 1]} : vector<64x32xf32> to vector<16x32xf32>
    %223 = arith.addf %221, %222 : vector<16x32xf32>
    %224 = arith.truncf %223 : vector<16x32xf32> to vector<16x32xbf16>
    %c1_71 = arith.constant 1 : index
    %c0_72 = arith.constant 0 : index
    %c128_73 = arith.constant 128 : index
    %225 = vector.load %arg4[%c1_71, %c0_72, %c128_73] : memref<7x32x384xbf16, #tpu.memory_space<vmem>>, vector<1x32x32xbf16>
    %226 = vector.shape_cast %225 : vector<1x32x32xbf16> to vector<32x32xbf16>
    %cst_74 = arith.constant dense<0.000000e+00> : vector<16x32xf32>
    %227 = tpu.matmul %224, %226, %cst_74 {dimension_numbers = #tpu.dot_dimension_numbers<[1], [0], [0], [1], [0, 0, 1, 1], [], []>} : vector<16x32xbf16>, vector<32x32xbf16>, vector<16x32xf32> -> vector<16x32xf32>
    %c1_75 = arith.constant 1 : index
    %c1_76 = arith.constant 1 : index
    %c0_77 = arith.constant 0 : index
    %228 = vector.load %arg6[%c1_75, %c1_76, %c0_77] : memref<7x8x128xf32, #tpu.memory_space<vmem>>, vector<1x1x32xf32>
    %229 = vector.shape_cast %228 : vector<1x1x32xf32> to vector<1x32xf32>
    %230 = vector.broadcast %229 : vector<1x32xf32> to vector<16x32xf32>
    %231 = arith.addf %227, %230 : vector<16x32xf32>
    %232 = arith.addf %188, %231 : vector<16x32xf32>
    %c1_78 = arith.constant 1 : index
    %c2_79 = arith.constant 2 : index
    %c0_80 = arith.constant 0 : index
    %233 = vector.load %arg6[%c1_78, %c2_79, %c0_80] : memref<7x8x128xf32, #tpu.memory_space<vmem>>, vector<1x1x32xf32>
    %234 = vector.shape_cast %233 : vector<1x1x32xf32> to vector<1x32xf32>
    %c1_81 = arith.constant 1 : index
    %c3_82 = arith.constant 3 : index
    %c0_83 = arith.constant 0 : index
    %235 = vector.load %arg6[%c1_81, %c3_82, %c0_83] : memref<7x8x128xf32, #tpu.memory_space<vmem>>, vector<1x1x32xf32>
    %236 = vector.shape_cast %235 : vector<1x1x32xf32> to vector<1x32xf32>
    %cst_84 = arith.constant dense<0.000000e+00> : vector<16xf32>
    %237 = vector.multi_reduction <add>, %232, %cst_84 [1] : vector<16x32xf32> to vector<16xf32>
    %238 = vector.shape_cast %237 : vector<16xf32> to vector<16x1xf32>
    %cst_85 = arith.constant 3.200000e+01 : f32
    %239 = vector.broadcast %cst_85 : f32 to vector<16x1xf32>
    %240 = arith.divf %238, %239 : vector<16x1xf32>
    %241 = vector.broadcast %240 : vector<16x1xf32> to vector<16x32xf32>
    %242 = arith.subf %232, %241 : vector<16x32xf32>
    %243 = arith.mulf %242, %242 : vector<16x32xf32>
    %cst_86 = arith.constant dense<0.000000e+00> : vector<16xf32>
    %244 = vector.multi_reduction <add>, %243, %cst_86 [1] : vector<16x32xf32> to vector<16xf32>
    %245 = vector.shape_cast %244 : vector<16xf32> to vector<16x1xf32>
    %cst_87 = arith.constant 3.200000e+01 : f32
    %246 = vector.broadcast %cst_87 : f32 to vector<16x1xf32>
    %247 = arith.divf %245, %246 : vector<16x1xf32>
    %248 = vector.broadcast %240 : vector<16x1xf32> to vector<16x32xf32>
    %249 = arith.subf %232, %248 : vector<16x32xf32>
    %cst_88 = arith.constant 9.99999974E-6 : f32
    %250 = vector.broadcast %cst_88 : f32 to vector<16x1xf32>
    %251 = arith.addf %247, %250 : vector<16x1xf32>
    %252 = math.rsqrt %251 : vector<16x1xf32>
    %253 = vector.broadcast %252 : vector<16x1xf32> to vector<16x32xf32>
    %254 = arith.mulf %249, %253 : vector<16x32xf32>
    %255 = vector.broadcast %234 : vector<1x32xf32> to vector<16x32xf32>
    %256 = arith.mulf %254, %255 : vector<16x32xf32>
    %257 = vector.broadcast %236 : vector<1x32xf32> to vector<16x32xf32>
    %258 = arith.addf %256, %257 : vector<16x32xf32>
    %259 = arith.truncf %258 : vector<16x32xf32> to vector<16x32xbf16>
    %c1_89 = arith.constant 1 : index
    %c0_90 = arith.constant 0 : index
    %c256_91 = arith.constant 256 : index
    %260 = vector.load %arg4[%c1_89, %c0_90, %c256_91] : memref<7x32x384xbf16, #tpu.memory_space<vmem>>, vector<1x32x64xbf16>
    %261 = vector.shape_cast %260 : vector<1x32x64xbf16> to vector<32x64xbf16>
    %cst_92 = arith.constant dense<0.000000e+00> : vector<16x64xf32>
    %262 = tpu.matmul %259, %261, %cst_92 {dimension_numbers = #tpu.dot_dimension_numbers<[1], [0], [0], [1], [0, 0, 1, 1], [], []>} : vector<16x32xbf16>, vector<32x64xbf16>, vector<16x64xf32> -> vector<16x64xf32>
    %c1_93 = arith.constant 1 : index
    %c4_94 = arith.constant 4 : index
    %c0_95 = arith.constant 0 : index
    %263 = vector.load %arg6[%c1_93, %c4_94, %c0_95] : memref<7x8x128xf32, #tpu.memory_space<vmem>>, vector<1x1x64xf32>
    %264 = vector.shape_cast %263 : vector<1x1x64xf32> to vector<1x64xf32>
    %265 = vector.broadcast %264 : vector<1x64xf32> to vector<16x64xf32>
    %266 = arith.addf %262, %265 : vector<16x64xf32>
    %cst_96 = arith.constant 0.000000e+00 : f32
    %267 = vector.broadcast %cst_96 : f32 to vector<16x64xf32>
    %268 = arith.maximumf %266, %267 : vector<16x64xf32>
    %269 = arith.truncf %268 : vector<16x64xf32> to vector<16x64xbf16>
    %c1_97 = arith.constant 1 : index
    %c0_98 = arith.constant 0 : index
    %c0_99 = arith.constant 0 : index
    %270 = vector.load %arg5[%c1_97, %c0_98, %c0_99] : memref<6x64x32xbf16, #tpu.memory_space<vmem>>, vector<1x64x32xbf16>
    %271 = vector.shape_cast %270 : vector<1x64x32xbf16> to vector<64x32xbf16>
    %cst_100 = arith.constant dense<0.000000e+00> : vector<16x32xf32>
    %272 = tpu.matmul %269, %271, %cst_100 {dimension_numbers = #tpu.dot_dimension_numbers<[1], [0], [0], [1], [0, 0, 1, 1], [], []>} : vector<16x64xbf16>, vector<64x32xbf16>, vector<16x32xf32> -> vector<16x32xf32>
    %c1_101 = arith.constant 1 : index
    %c5_102 = arith.constant 5 : index
    %c0_103 = arith.constant 0 : index
    %273 = vector.load %arg6[%c1_101, %c5_102, %c0_103] : memref<7x8x128xf32, #tpu.memory_space<vmem>>, vector<1x1x32xf32>
    %274 = vector.shape_cast %273 : vector<1x1x32xf32> to vector<1x32xf32>
    %275 = vector.broadcast %274 : vector<1x32xf32> to vector<16x32xf32>
    %276 = arith.addf %272, %275 : vector<16x32xf32>
    %277 = arith.addf %258, %276 : vector<16x32xf32>
    %c1_104 = arith.constant 1 : index
    %c6_105 = arith.constant 6 : index
    %c0_106 = arith.constant 0 : index
    %278 = vector.load %arg6[%c1_104, %c6_105, %c0_106] : memref<7x8x128xf32, #tpu.memory_space<vmem>>, vector<1x1x32xf32>
    %279 = vector.shape_cast %278 : vector<1x1x32xf32> to vector<1x32xf32>
    %c1_107 = arith.constant 1 : index
    %c7_108 = arith.constant 7 : index
    %c0_109 = arith.constant 0 : index
    %280 = vector.load %arg6[%c1_107, %c7_108, %c0_109] : memref<7x8x128xf32, #tpu.memory_space<vmem>>, vector<1x1x32xf32>
    %281 = vector.shape_cast %280 : vector<1x1x32xf32> to vector<1x32xf32>
    %cst_110 = arith.constant dense<0.000000e+00> : vector<16xf32>
    %282 = vector.multi_reduction <add>, %277, %cst_110 [1] : vector<16x32xf32> to vector<16xf32>
    %283 = vector.shape_cast %282 : vector<16xf32> to vector<16x1xf32>
    %cst_111 = arith.constant 3.200000e+01 : f32
    %284 = vector.broadcast %cst_111 : f32 to vector<16x1xf32>
    %285 = arith.divf %283, %284 : vector<16x1xf32>
    %286 = vector.broadcast %285 : vector<16x1xf32> to vector<16x32xf32>
    %287 = arith.subf %277, %286 : vector<16x32xf32>
    %288 = arith.mulf %287, %287 : vector<16x32xf32>
    %cst_112 = arith.constant dense<0.000000e+00> : vector<16xf32>
    %289 = vector.multi_reduction <add>, %288, %cst_112 [1] : vector<16x32xf32> to vector<16xf32>
    %290 = vector.shape_cast %289 : vector<16xf32> to vector<16x1xf32>
    %cst_113 = arith.constant 3.200000e+01 : f32
    %291 = vector.broadcast %cst_113 : f32 to vector<16x1xf32>
    %292 = arith.divf %290, %291 : vector<16x1xf32>
    %293 = vector.broadcast %285 : vector<16x1xf32> to vector<16x32xf32>
    %294 = arith.subf %277, %293 : vector<16x32xf32>
    %cst_114 = arith.constant 9.99999974E-6 : f32
    %295 = vector.broadcast %cst_114 : f32 to vector<16x1xf32>
    %296 = arith.addf %292, %295 : vector<16x1xf32>
    %297 = math.rsqrt %296 : vector<16x1xf32>
    %298 = vector.broadcast %297 : vector<16x1xf32> to vector<16x32xf32>
    %299 = arith.mulf %294, %298 : vector<16x32xf32>
    %300 = vector.broadcast %279 : vector<1x32xf32> to vector<16x32xf32>
    %301 = arith.mulf %299, %300 : vector<16x32xf32>
    %302 = vector.broadcast %281 : vector<1x32xf32> to vector<16x32xf32>
    %303 = arith.addf %301, %302 : vector<16x32xf32>
    %304 = arith.truncf %303 : vector<16x32xf32> to vector<16x32xbf16>
    %c2_115 = arith.constant 2 : index
    %c0_116 = arith.constant 0 : index
    %c0_117 = arith.constant 0 : index
    %305 = vector.load %arg4[%c2_115, %c0_116, %c0_117] : memref<7x32x384xbf16, #tpu.memory_space<vmem>>, vector<1x32x96xbf16>
    %306 = vector.shape_cast %305 : vector<1x32x96xbf16> to vector<32x96xbf16>
    %cst_118 = arith.constant dense<0.000000e+00> : vector<16x96xf32>
    %307 = tpu.matmul %304, %306, %cst_118 {dimension_numbers = #tpu.dot_dimension_numbers<[1], [0], [0], [1], [0, 0, 1, 1], [], []>} : vector<16x32xbf16>, vector<32x96xbf16>, vector<16x96xf32> -> vector<16x96xf32>
    %c2_119 = arith.constant 2 : index
    %c0_120 = arith.constant 0 : index
    %c0_121 = arith.constant 0 : index
    %308 = vector.load %arg6[%c2_119, %c0_120, %c0_121] : memref<7x8x128xf32, #tpu.memory_space<vmem>>, vector<1x1x96xf32>
    %309 = vector.shape_cast %308 : vector<1x1x96xf32> to vector<1x96xf32>
    %310 = vector.broadcast %309 : vector<1x96xf32> to vector<16x96xf32>
    %311 = arith.addf %307, %310 : vector<16x96xf32>
    %312 = vector.extract_strided_slice %311 {offsets = [0, 0], sizes = [16, 32], strides = [1, 1]} : vector<16x96xf32> to vector<16x32xf32>
    %313 = vector.extract_strided_slice %311 {offsets = [0, 32], sizes = [16, 32], strides = [1, 1]} : vector<16x96xf32> to vector<16x32xf32>
    %314 = vector.extract_strided_slice %311 {offsets = [0, 64], sizes = [16, 32], strides = [1, 1]} : vector<16x96xf32> to vector<16x32xf32>
    %315 = tpu.concatenate %312, %312, %312, %312 in 0 : vector<16x32xf32>, vector<16x32xf32>, vector<16x32xf32>, vector<16x32xf32> -> vector<64x32xf32>
    %316 = arith.mulf %315, %71 : vector<64x32xf32>
    %317 = tpu.transpose %313, [1, 0] : vector<16x32xf32> -> vector<32x16xf32>
    %cst_122 = arith.constant dense<0.000000e+00> : vector<64x16xf32>
    %318 = tpu.matmul %316, %317, %cst_122 {dimension_numbers = #tpu.dot_dimension_numbers<[1], [0], [0], [1], [0, 0, 1, 1], [], []>} : vector<64x32xf32>, vector<32x16xf32>, vector<64x16xf32> -> vector<64x16xf32>
    %319 = arith.addf %318, %73 : vector<64x16xf32>
    %cst_123 = arith.constant dense<0xFF800000> : vector<64xf32>
    %320 = vector.multi_reduction <maximumf>, %319, %cst_123 [1] : vector<64x16xf32> to vector<64xf32>
    %321 = vector.shape_cast %320 : vector<64xf32> to vector<64x1xf32>
    %322 = vector.broadcast %321 : vector<64x1xf32> to vector<64x16xf32>
    %323 = arith.subf %319, %322 : vector<64x16xf32>
    %324 = math.exp %323 : vector<64x16xf32>
    %cst_124 = arith.constant dense<0.000000e+00> : vector<64xf32>
    %325 = vector.multi_reduction <add>, %324, %cst_124 [1] : vector<64x16xf32> to vector<64xf32>
    %326 = vector.shape_cast %325 : vector<64xf32> to vector<64x1xf32>
    %327 = tpu.reciprocal %326 {approx = true} : vector<64x1xf32> -> vector<64x1xf32>
    %328 = vector.broadcast %327 : vector<64x1xf32> to vector<64x16xf32>
    %329 = arith.mulf %324, %328 : vector<64x16xf32>
    %cst_125 = arith.constant dense<0.000000e+00> : vector<64x32xf32>
    %330 = tpu.matmul %329, %314, %cst_125 {dimension_numbers = #tpu.dot_dimension_numbers<[1], [0], [0], [1], [0, 0, 1, 1], [], []>} : vector<64x16xf32>, vector<16x32xf32>, vector<64x32xf32> -> vector<64x32xf32>
    %331 = arith.mulf %330, %71 : vector<64x32xf32>
    %332 = vector.extract_strided_slice %331 {offsets = [0, 0], sizes = [16, 32], strides = [1, 1]} : vector<64x32xf32> to vector<16x32xf32>
    %333 = vector.extract_strided_slice %331 {offsets = [16, 0], sizes = [16, 32], strides = [1, 1]} : vector<64x32xf32> to vector<16x32xf32>
    %334 = arith.addf %332, %333 : vector<16x32xf32>
    %335 = vector.extract_strided_slice %331 {offsets = [32, 0], sizes = [16, 32], strides = [1, 1]} : vector<64x32xf32> to vector<16x32xf32>
    %336 = arith.addf %334, %335 : vector<16x32xf32>
    %337 = vector.extract_strided_slice %331 {offsets = [48, 0], sizes = [16, 32], strides = [1, 1]} : vector<64x32xf32> to vector<16x32xf32>
    %338 = arith.addf %336, %337 : vector<16x32xf32>
    %339 = arith.truncf %338 : vector<16x32xf32> to vector<16x32xbf16>
    %c2_126 = arith.constant 2 : index
    %c0_127 = arith.constant 0 : index
    %c128_128 = arith.constant 128 : index
    %340 = vector.load %arg4[%c2_126, %c0_127, %c128_128] : memref<7x32x384xbf16, #tpu.memory_space<vmem>>, vector<1x32x32xbf16>
    %341 = vector.shape_cast %340 : vector<1x32x32xbf16> to vector<32x32xbf16>
    %cst_129 = arith.constant dense<0.000000e+00> : vector<16x32xf32>
    %342 = tpu.matmul %339, %341, %cst_129 {dimension_numbers = #tpu.dot_dimension_numbers<[1], [0], [0], [1], [0, 0, 1, 1], [], []>} : vector<16x32xbf16>, vector<32x32xbf16>, vector<16x32xf32> -> vector<16x32xf32>
    %c2_130 = arith.constant 2 : index
    %c1_131 = arith.constant 1 : index
    %c0_132 = arith.constant 0 : index
    %343 = vector.load %arg6[%c2_130, %c1_131, %c0_132] : memref<7x8x128xf32, #tpu.memory_space<vmem>>, vector<1x1x32xf32>
    %344 = vector.shape_cast %343 : vector<1x1x32xf32> to vector<1x32xf32>
    %345 = vector.broadcast %344 : vector<1x32xf32> to vector<16x32xf32>
    %346 = arith.addf %342, %345 : vector<16x32xf32>
    %347 = arith.addf %303, %346 : vector<16x32xf32>
    %c2_133 = arith.constant 2 : index
    %c2_134 = arith.constant 2 : index
    %c0_135 = arith.constant 0 : index
    %348 = vector.load %arg6[%c2_133, %c2_134, %c0_135] : memref<7x8x128xf32, #tpu.memory_space<vmem>>, vector<1x1x32xf32>
    %349 = vector.shape_cast %348 : vector<1x1x32xf32> to vector<1x32xf32>
    %c2_136 = arith.constant 2 : index
    %c3_137 = arith.constant 3 : index
    %c0_138 = arith.constant 0 : index
    %350 = vector.load %arg6[%c2_136, %c3_137, %c0_138] : memref<7x8x128xf32, #tpu.memory_space<vmem>>, vector<1x1x32xf32>
    %351 = vector.shape_cast %350 : vector<1x1x32xf32> to vector<1x32xf32>
    %cst_139 = arith.constant dense<0.000000e+00> : vector<16xf32>
    %352 = vector.multi_reduction <add>, %347, %cst_139 [1] : vector<16x32xf32> to vector<16xf32>
    %353 = vector.shape_cast %352 : vector<16xf32> to vector<16x1xf32>
    %cst_140 = arith.constant 3.200000e+01 : f32
    %354 = vector.broadcast %cst_140 : f32 to vector<16x1xf32>
    %355 = arith.divf %353, %354 : vector<16x1xf32>
    %356 = vector.broadcast %355 : vector<16x1xf32> to vector<16x32xf32>
    %357 = arith.subf %347, %356 : vector<16x32xf32>
    %358 = arith.mulf %357, %357 : vector<16x32xf32>
    %cst_141 = arith.constant dense<0.000000e+00> : vector<16xf32>
    %359 = vector.multi_reduction <add>, %358, %cst_141 [1] : vector<16x32xf32> to vector<16xf32>
    %360 = vector.shape_cast %359 : vector<16xf32> to vector<16x1xf32>
    %cst_142 = arith.constant 3.200000e+01 : f32
    %361 = vector.broadcast %cst_142 : f32 to vector<16x1xf32>
    %362 = arith.divf %360, %361 : vector<16x1xf32>
    %363 = vector.broadcast %355 : vector<16x1xf32> to vector<16x32xf32>
    %364 = arith.subf %347, %363 : vector<16x32xf32>
    %cst_143 = arith.constant 9.99999974E-6 : f32
    %365 = vector.broadcast %cst_143 : f32 to vector<16x1xf32>
    %366 = arith.addf %362, %365 : vector<16x1xf32>
    %367 = math.rsqrt %366 : vector<16x1xf32>
    %368 = vector.broadcast %367 : vector<16x1xf32> to vector<16x32xf32>
    %369 = arith.mulf %364, %368 : vector<16x32xf32>
    %370 = vector.broadcast %349 : vector<1x32xf32> to vector<16x32xf32>
    %371 = arith.mulf %369, %370 : vector<16x32xf32>
    %372 = vector.broadcast %351 : vector<1x32xf32> to vector<16x32xf32>
    %373 = arith.addf %371, %372 : vector<16x32xf32>
    %374 = arith.truncf %373 : vector<16x32xf32> to vector<16x32xbf16>
    %c2_144 = arith.constant 2 : index
    %c0_145 = arith.constant 0 : index
    %c256_146 = arith.constant 256 : index
    %375 = vector.load %arg4[%c2_144, %c0_145, %c256_146] : memref<7x32x384xbf16, #tpu.memory_space<vmem>>, vector<1x32x64xbf16>
    %376 = vector.shape_cast %375 : vector<1x32x64xbf16> to vector<32x64xbf16>
    %cst_147 = arith.constant dense<0.000000e+00> : vector<16x64xf32>
    %377 = tpu.matmul %374, %376, %cst_147 {dimension_numbers = #tpu.dot_dimension_numbers<[1], [0], [0], [1], [0, 0, 1, 1], [], []>} : vector<16x32xbf16>, vector<32x64xbf16>, vector<16x64xf32> -> vector<16x64xf32>
    %c2_148 = arith.constant 2 : index
    %c4_149 = arith.constant 4 : index
    %c0_150 = arith.constant 0 : index
    %378 = vector.load %arg6[%c2_148, %c4_149, %c0_150] : memref<7x8x128xf32, #tpu.memory_space<vmem>>, vector<1x1x64xf32>
    %379 = vector.shape_cast %378 : vector<1x1x64xf32> to vector<1x64xf32>
    %380 = vector.broadcast %379 : vector<1x64xf32> to vector<16x64xf32>
    %381 = arith.addf %377, %380 : vector<16x64xf32>
    %cst_151 = arith.constant 0.000000e+00 : f32
    %382 = vector.broadcast %cst_151 : f32 to vector<16x64xf32>
    %383 = arith.maximumf %381, %382 : vector<16x64xf32>
    %384 = arith.truncf %383 : vector<16x64xf32> to vector<16x64xbf16>
    %c2_152 = arith.constant 2 : index
    %c0_153 = arith.constant 0 : index
    %c0_154 = arith.constant 0 : index
    %385 = vector.load %arg5[%c2_152, %c0_153, %c0_154] : memref<6x64x32xbf16, #tpu.memory_space<vmem>>, vector<1x64x32xbf16>
    %386 = vector.shape_cast %385 : vector<1x64x32xbf16> to vector<64x32xbf16>
    %cst_155 = arith.constant dense<0.000000e+00> : vector<16x32xf32>
    %387 = tpu.matmul %384, %386, %cst_155 {dimension_numbers = #tpu.dot_dimension_numbers<[1], [0], [0], [1], [0, 0, 1, 1], [], []>} : vector<16x64xbf16>, vector<64x32xbf16>, vector<16x32xf32> -> vector<16x32xf32>
    %c2_156 = arith.constant 2 : index
    %c5_157 = arith.constant 5 : index
    %c0_158 = arith.constant 0 : index
    %388 = vector.load %arg6[%c2_156, %c5_157, %c0_158] : memref<7x8x128xf32, #tpu.memory_space<vmem>>, vector<1x1x32xf32>
    %389 = vector.shape_cast %388 : vector<1x1x32xf32> to vector<1x32xf32>
    %390 = vector.broadcast %389 : vector<1x32xf32> to vector<16x32xf32>
    %391 = arith.addf %387, %390 : vector<16x32xf32>
    %392 = arith.addf %373, %391 : vector<16x32xf32>
    %c2_159 = arith.constant 2 : index
    %c6_160 = arith.constant 6 : index
    %c0_161 = arith.constant 0 : index
    %393 = vector.load %arg6[%c2_159, %c6_160, %c0_161] : memref<7x8x128xf32, #tpu.memory_space<vmem>>, vector<1x1x32xf32>
    %394 = vector.shape_cast %393 : vector<1x1x32xf32> to vector<1x32xf32>
    %c2_162 = arith.constant 2 : index
    %c7_163 = arith.constant 7 : index
    %c0_164 = arith.constant 0 : index
    %395 = vector.load %arg6[%c2_162, %c7_163, %c0_164] : memref<7x8x128xf32, #tpu.memory_space<vmem>>, vector<1x1x32xf32>
    %396 = vector.shape_cast %395 : vector<1x1x32xf32> to vector<1x32xf32>
    %cst_165 = arith.constant dense<0.000000e+00> : vector<16xf32>
    %397 = vector.multi_reduction <add>, %392, %cst_165 [1] : vector<16x32xf32> to vector<16xf32>
    %398 = vector.shape_cast %397 : vector<16xf32> to vector<16x1xf32>
    %cst_166 = arith.constant 3.200000e+01 : f32
    %399 = vector.broadcast %cst_166 : f32 to vector<16x1xf32>
    %400 = arith.divf %398, %399 : vector<16x1xf32>
    %401 = vector.broadcast %400 : vector<16x1xf32> to vector<16x32xf32>
    %402 = arith.subf %392, %401 : vector<16x32xf32>
    %403 = arith.mulf %402, %402 : vector<16x32xf32>
    %cst_167 = arith.constant dense<0.000000e+00> : vector<16xf32>
    %404 = vector.multi_reduction <add>, %403, %cst_167 [1] : vector<16x32xf32> to vector<16xf32>
    %405 = vector.shape_cast %404 : vector<16xf32> to vector<16x1xf32>
    %cst_168 = arith.constant 3.200000e+01 : f32
    %406 = vector.broadcast %cst_168 : f32 to vector<16x1xf32>
    %407 = arith.divf %405, %406 : vector<16x1xf32>
    %408 = vector.broadcast %400 : vector<16x1xf32> to vector<16x32xf32>
    %409 = arith.subf %392, %408 : vector<16x32xf32>
    %cst_169 = arith.constant 9.99999974E-6 : f32
    %410 = vector.broadcast %cst_169 : f32 to vector<16x1xf32>
    %411 = arith.addf %407, %410 : vector<16x1xf32>
    %412 = math.rsqrt %411 : vector<16x1xf32>
    %413 = vector.broadcast %412 : vector<16x1xf32> to vector<16x32xf32>
    %414 = arith.mulf %409, %413 : vector<16x32xf32>
    %415 = vector.broadcast %394 : vector<1x32xf32> to vector<16x32xf32>
    %416 = arith.mulf %414, %415 : vector<16x32xf32>
    %417 = vector.broadcast %396 : vector<1x32xf32> to vector<16x32xf32>
    %418 = arith.addf %416, %417 : vector<16x32xf32>
    %419 = arith.truncf %418 : vector<16x32xf32> to vector<16x32xbf16>
    %c3_170 = arith.constant 3 : index
    %c0_171 = arith.constant 0 : index
    %c0_172 = arith.constant 0 : index
    %420 = vector.load %arg4[%c3_170, %c0_171, %c0_172] : memref<7x32x384xbf16, #tpu.memory_space<vmem>>, vector<1x32x96xbf16>
    %421 = vector.shape_cast %420 : vector<1x32x96xbf16> to vector<32x96xbf16>
    %cst_173 = arith.constant dense<0.000000e+00> : vector<16x96xf32>
    %422 = tpu.matmul %419, %421, %cst_173 {dimension_numbers = #tpu.dot_dimension_numbers<[1], [0], [0], [1], [0, 0, 1, 1], [], []>} : vector<16x32xbf16>, vector<32x96xbf16>, vector<16x96xf32> -> vector<16x96xf32>
    %c3_174 = arith.constant 3 : index
    %c0_175 = arith.constant 0 : index
    %c0_176 = arith.constant 0 : index
    %423 = vector.load %arg6[%c3_174, %c0_175, %c0_176] : memref<7x8x128xf32, #tpu.memory_space<vmem>>, vector<1x1x96xf32>
    %424 = vector.shape_cast %423 : vector<1x1x96xf32> to vector<1x96xf32>
    %425 = vector.broadcast %424 : vector<1x96xf32> to vector<16x96xf32>
    %426 = arith.addf %422, %425 : vector<16x96xf32>
    %427 = vector.extract_strided_slice %426 {offsets = [0, 0], sizes = [16, 32], strides = [1, 1]} : vector<16x96xf32> to vector<16x32xf32>
    %428 = vector.extract_strided_slice %426 {offsets = [0, 32], sizes = [16, 32], strides = [1, 1]} : vector<16x96xf32> to vector<16x32xf32>
    %429 = vector.extract_strided_slice %426 {offsets = [0, 64], sizes = [16, 32], strides = [1, 1]} : vector<16x96xf32> to vector<16x32xf32>
    %430 = tpu.concatenate %427, %427, %427, %427 in 0 : vector<16x32xf32>, vector<16x32xf32>, vector<16x32xf32>, vector<16x32xf32> -> vector<64x32xf32>
    %431 = arith.mulf %430, %71 : vector<64x32xf32>
    %432 = tpu.transpose %428, [1, 0] : vector<16x32xf32> -> vector<32x16xf32>
    %cst_177 = arith.constant dense<0.000000e+00> : vector<64x16xf32>
    %433 = tpu.matmul %431, %432, %cst_177 {dimension_numbers = #tpu.dot_dimension_numbers<[1], [0], [0], [1], [0, 0, 1, 1], [], []>} : vector<64x32xf32>, vector<32x16xf32>, vector<64x16xf32> -> vector<64x16xf32>
    %434 = arith.addf %433, %73 : vector<64x16xf32>
    %cst_178 = arith.constant dense<0xFF800000> : vector<64xf32>
    %435 = vector.multi_reduction <maximumf>, %434, %cst_178 [1] : vector<64x16xf32> to vector<64xf32>
    %436 = vector.shape_cast %435 : vector<64xf32> to vector<64x1xf32>
    %437 = vector.broadcast %436 : vector<64x1xf32> to vector<64x16xf32>
    %438 = arith.subf %434, %437 : vector<64x16xf32>
    %439 = math.exp %438 : vector<64x16xf32>
    %cst_179 = arith.constant dense<0.000000e+00> : vector<64xf32>
    %440 = vector.multi_reduction <add>, %439, %cst_179 [1] : vector<64x16xf32> to vector<64xf32>
    %441 = vector.shape_cast %440 : vector<64xf32> to vector<64x1xf32>
    %442 = tpu.reciprocal %441 {approx = true} : vector<64x1xf32> -> vector<64x1xf32>
    %443 = vector.broadcast %442 : vector<64x1xf32> to vector<64x16xf32>
    %444 = arith.mulf %439, %443 : vector<64x16xf32>
    %cst_180 = arith.constant dense<0.000000e+00> : vector<64x32xf32>
    %445 = tpu.matmul %444, %429, %cst_180 {dimension_numbers = #tpu.dot_dimension_numbers<[1], [0], [0], [1], [0, 0, 1, 1], [], []>} : vector<64x16xf32>, vector<16x32xf32>, vector<64x32xf32> -> vector<64x32xf32>
    %446 = arith.mulf %445, %71 : vector<64x32xf32>
    %447 = vector.extract_strided_slice %446 {offsets = [0, 0], sizes = [16, 32], strides = [1, 1]} : vector<64x32xf32> to vector<16x32xf32>
    %448 = vector.extract_strided_slice %446 {offsets = [16, 0], sizes = [16, 32], strides = [1, 1]} : vector<64x32xf32> to vector<16x32xf32>
    %449 = arith.addf %447, %448 : vector<16x32xf32>
    %450 = vector.extract_strided_slice %446 {offsets = [32, 0], sizes = [16, 32], strides = [1, 1]} : vector<64x32xf32> to vector<16x32xf32>
    %451 = arith.addf %449, %450 : vector<16x32xf32>
    %452 = vector.extract_strided_slice %446 {offsets = [48, 0], sizes = [16, 32], strides = [1, 1]} : vector<64x32xf32> to vector<16x32xf32>
    %453 = arith.addf %451, %452 : vector<16x32xf32>
    %454 = arith.truncf %453 : vector<16x32xf32> to vector<16x32xbf16>
    %c3_181 = arith.constant 3 : index
    %c0_182 = arith.constant 0 : index
    %c128_183 = arith.constant 128 : index
    %455 = vector.load %arg4[%c3_181, %c0_182, %c128_183] : memref<7x32x384xbf16, #tpu.memory_space<vmem>>, vector<1x32x32xbf16>
    %456 = vector.shape_cast %455 : vector<1x32x32xbf16> to vector<32x32xbf16>
    %cst_184 = arith.constant dense<0.000000e+00> : vector<16x32xf32>
    %457 = tpu.matmul %454, %456, %cst_184 {dimension_numbers = #tpu.dot_dimension_numbers<[1], [0], [0], [1], [0, 0, 1, 1], [], []>} : vector<16x32xbf16>, vector<32x32xbf16>, vector<16x32xf32> -> vector<16x32xf32>
    %c3_185 = arith.constant 3 : index
    %c1_186 = arith.constant 1 : index
    %c0_187 = arith.constant 0 : index
    %458 = vector.load %arg6[%c3_185, %c1_186, %c0_187] : memref<7x8x128xf32, #tpu.memory_space<vmem>>, vector<1x1x32xf32>
    %459 = vector.shape_cast %458 : vector<1x1x32xf32> to vector<1x32xf32>
    %460 = vector.broadcast %459 : vector<1x32xf32> to vector<16x32xf32>
    %461 = arith.addf %457, %460 : vector<16x32xf32>
    %462 = arith.addf %418, %461 : vector<16x32xf32>
    %c3_188 = arith.constant 3 : index
    %c2_189 = arith.constant 2 : index
    %c0_190 = arith.constant 0 : index
    %463 = vector.load %arg6[%c3_188, %c2_189, %c0_190] : memref<7x8x128xf32, #tpu.memory_space<vmem>>, vector<1x1x32xf32>
    %464 = vector.shape_cast %463 : vector<1x1x32xf32> to vector<1x32xf32>
    %c3_191 = arith.constant 3 : index
    %c3_192 = arith.constant 3 : index
    %c0_193 = arith.constant 0 : index
    %465 = vector.load %arg6[%c3_191, %c3_192, %c0_193] : memref<7x8x128xf32, #tpu.memory_space<vmem>>, vector<1x1x32xf32>
    %466 = vector.shape_cast %465 : vector<1x1x32xf32> to vector<1x32xf32>
    %cst_194 = arith.constant dense<0.000000e+00> : vector<16xf32>
    %467 = vector.multi_reduction <add>, %462, %cst_194 [1] : vector<16x32xf32> to vector<16xf32>
    %468 = vector.shape_cast %467 : vector<16xf32> to vector<16x1xf32>
    %cst_195 = arith.constant 3.200000e+01 : f32
    %469 = vector.broadcast %cst_195 : f32 to vector<16x1xf32>
    %470 = arith.divf %468, %469 : vector<16x1xf32>
    %471 = vector.broadcast %470 : vector<16x1xf32> to vector<16x32xf32>
    %472 = arith.subf %462, %471 : vector<16x32xf32>
    %473 = arith.mulf %472, %472 : vector<16x32xf32>
    %cst_196 = arith.constant dense<0.000000e+00> : vector<16xf32>
    %474 = vector.multi_reduction <add>, %473, %cst_196 [1] : vector<16x32xf32> to vector<16xf32>
    %475 = vector.shape_cast %474 : vector<16xf32> to vector<16x1xf32>
    %cst_197 = arith.constant 3.200000e+01 : f32
    %476 = vector.broadcast %cst_197 : f32 to vector<16x1xf32>
    %477 = arith.divf %475, %476 : vector<16x1xf32>
    %478 = vector.broadcast %470 : vector<16x1xf32> to vector<16x32xf32>
    %479 = arith.subf %462, %478 : vector<16x32xf32>
    %cst_198 = arith.constant 9.99999974E-6 : f32
    %480 = vector.broadcast %cst_198 : f32 to vector<16x1xf32>
    %481 = arith.addf %477, %480 : vector<16x1xf32>
    %482 = math.rsqrt %481 : vector<16x1xf32>
    %483 = vector.broadcast %482 : vector<16x1xf32> to vector<16x32xf32>
    %484 = arith.mulf %479, %483 : vector<16x32xf32>
    %485 = vector.broadcast %464 : vector<1x32xf32> to vector<16x32xf32>
    %486 = arith.mulf %484, %485 : vector<16x32xf32>
    %487 = vector.broadcast %466 : vector<1x32xf32> to vector<16x32xf32>
    %488 = arith.addf %486, %487 : vector<16x32xf32>
    %489 = arith.truncf %488 : vector<16x32xf32> to vector<16x32xbf16>
    %c3_199 = arith.constant 3 : index
    %c0_200 = arith.constant 0 : index
    %c256_201 = arith.constant 256 : index
    %490 = vector.load %arg4[%c3_199, %c0_200, %c256_201] : memref<7x32x384xbf16, #tpu.memory_space<vmem>>, vector<1x32x64xbf16>
    %491 = vector.shape_cast %490 : vector<1x32x64xbf16> to vector<32x64xbf16>
    %cst_202 = arith.constant dense<0.000000e+00> : vector<16x64xf32>
    %492 = tpu.matmul %489, %491, %cst_202 {dimension_numbers = #tpu.dot_dimension_numbers<[1], [0], [0], [1], [0, 0, 1, 1], [], []>} : vector<16x32xbf16>, vector<32x64xbf16>, vector<16x64xf32> -> vector<16x64xf32>
    %c3_203 = arith.constant 3 : index
    %c4_204 = arith.constant 4 : index
    %c0_205 = arith.constant 0 : index
    %493 = vector.load %arg6[%c3_203, %c4_204, %c0_205] : memref<7x8x128xf32, #tpu.memory_space<vmem>>, vector<1x1x64xf32>
    %494 = vector.shape_cast %493 : vector<1x1x64xf32> to vector<1x64xf32>
    %495 = vector.broadcast %494 : vector<1x64xf32> to vector<16x64xf32>
    %496 = arith.addf %492, %495 : vector<16x64xf32>
    %cst_206 = arith.constant 0.000000e+00 : f32
    %497 = vector.broadcast %cst_206 : f32 to vector<16x64xf32>
    %498 = arith.maximumf %496, %497 : vector<16x64xf32>
    %499 = arith.truncf %498 : vector<16x64xf32> to vector<16x64xbf16>
    %c3_207 = arith.constant 3 : index
    %c0_208 = arith.constant 0 : index
    %c0_209 = arith.constant 0 : index
    %500 = vector.load %arg5[%c3_207, %c0_208, %c0_209] : memref<6x64x32xbf16, #tpu.memory_space<vmem>>, vector<1x64x32xbf16>
    %501 = vector.shape_cast %500 : vector<1x64x32xbf16> to vector<64x32xbf16>
    %cst_210 = arith.constant dense<0.000000e+00> : vector<16x32xf32>
    %502 = tpu.matmul %499, %501, %cst_210 {dimension_numbers = #tpu.dot_dimension_numbers<[1], [0], [0], [1], [0, 0, 1, 1], [], []>} : vector<16x64xbf16>, vector<64x32xbf16>, vector<16x32xf32> -> vector<16x32xf32>
    %c3_211 = arith.constant 3 : index
    %c5_212 = arith.constant 5 : index
    %c0_213 = arith.constant 0 : index
    %503 = vector.load %arg6[%c3_211, %c5_212, %c0_213] : memref<7x8x128xf32, #tpu.memory_space<vmem>>, vector<1x1x32xf32>
    %504 = vector.shape_cast %503 : vector<1x1x32xf32> to vector<1x32xf32>
    %505 = vector.broadcast %504 : vector<1x32xf32> to vector<16x32xf32>
    %506 = arith.addf %502, %505 : vector<16x32xf32>
    %507 = arith.addf %488, %506 : vector<16x32xf32>
    %c3_214 = arith.constant 3 : index
    %c6_215 = arith.constant 6 : index
    %c0_216 = arith.constant 0 : index
    %508 = vector.load %arg6[%c3_214, %c6_215, %c0_216] : memref<7x8x128xf32, #tpu.memory_space<vmem>>, vector<1x1x32xf32>
    %509 = vector.shape_cast %508 : vector<1x1x32xf32> to vector<1x32xf32>
    %c3_217 = arith.constant 3 : index
    %c7_218 = arith.constant 7 : index
    %c0_219 = arith.constant 0 : index
    %510 = vector.load %arg6[%c3_217, %c7_218, %c0_219] : memref<7x8x128xf32, #tpu.memory_space<vmem>>, vector<1x1x32xf32>
    %511 = vector.shape_cast %510 : vector<1x1x32xf32> to vector<1x32xf32>
    %cst_220 = arith.constant dense<0.000000e+00> : vector<16xf32>
    %512 = vector.multi_reduction <add>, %507, %cst_220 [1] : vector<16x32xf32> to vector<16xf32>
    %513 = vector.shape_cast %512 : vector<16xf32> to vector<16x1xf32>
    %cst_221 = arith.constant 3.200000e+01 : f32
    %514 = vector.broadcast %cst_221 : f32 to vector<16x1xf32>
    %515 = arith.divf %513, %514 : vector<16x1xf32>
    %516 = vector.broadcast %515 : vector<16x1xf32> to vector<16x32xf32>
    %517 = arith.subf %507, %516 : vector<16x32xf32>
    %518 = arith.mulf %517, %517 : vector<16x32xf32>
    %cst_222 = arith.constant dense<0.000000e+00> : vector<16xf32>
    %519 = vector.multi_reduction <add>, %518, %cst_222 [1] : vector<16x32xf32> to vector<16xf32>
    %520 = vector.shape_cast %519 : vector<16xf32> to vector<16x1xf32>
    %cst_223 = arith.constant 3.200000e+01 : f32
    %521 = vector.broadcast %cst_223 : f32 to vector<16x1xf32>
    %522 = arith.divf %520, %521 : vector<16x1xf32>
    %523 = vector.broadcast %515 : vector<16x1xf32> to vector<16x32xf32>
    %524 = arith.subf %507, %523 : vector<16x32xf32>
    %cst_224 = arith.constant 9.99999974E-6 : f32
    %525 = vector.broadcast %cst_224 : f32 to vector<16x1xf32>
    %526 = arith.addf %522, %525 : vector<16x1xf32>
    %527 = math.rsqrt %526 : vector<16x1xf32>
    %528 = vector.broadcast %527 : vector<16x1xf32> to vector<16x32xf32>
    %529 = arith.mulf %524, %528 : vector<16x32xf32>
    %530 = vector.broadcast %509 : vector<1x32xf32> to vector<16x32xf32>
    %531 = arith.mulf %529, %530 : vector<16x32xf32>
    %532 = vector.broadcast %511 : vector<1x32xf32> to vector<16x32xf32>
    %533 = arith.addf %531, %532 : vector<16x32xf32>
    %534 = arith.truncf %533 : vector<16x32xf32> to vector<16x32xbf16>
    %c4_225 = arith.constant 4 : index
    %c0_226 = arith.constant 0 : index
    %c0_227 = arith.constant 0 : index
    %535 = vector.load %arg4[%c4_225, %c0_226, %c0_227] : memref<7x32x384xbf16, #tpu.memory_space<vmem>>, vector<1x32x96xbf16>
    %536 = vector.shape_cast %535 : vector<1x32x96xbf16> to vector<32x96xbf16>
    %cst_228 = arith.constant dense<0.000000e+00> : vector<16x96xf32>
    %537 = tpu.matmul %534, %536, %cst_228 {dimension_numbers = #tpu.dot_dimension_numbers<[1], [0], [0], [1], [0, 0, 1, 1], [], []>} : vector<16x32xbf16>, vector<32x96xbf16>, vector<16x96xf32> -> vector<16x96xf32>
    %c4_229 = arith.constant 4 : index
    %c0_230 = arith.constant 0 : index
    %c0_231 = arith.constant 0 : index
    %538 = vector.load %arg6[%c4_229, %c0_230, %c0_231] : memref<7x8x128xf32, #tpu.memory_space<vmem>>, vector<1x1x96xf32>
    %539 = vector.shape_cast %538 : vector<1x1x96xf32> to vector<1x96xf32>
    %540 = vector.broadcast %539 : vector<1x96xf32> to vector<16x96xf32>
    %541 = arith.addf %537, %540 : vector<16x96xf32>
    %542 = vector.extract_strided_slice %541 {offsets = [0, 0], sizes = [16, 32], strides = [1, 1]} : vector<16x96xf32> to vector<16x32xf32>
    %543 = vector.extract_strided_slice %541 {offsets = [0, 32], sizes = [16, 32], strides = [1, 1]} : vector<16x96xf32> to vector<16x32xf32>
    %544 = vector.extract_strided_slice %541 {offsets = [0, 64], sizes = [16, 32], strides = [1, 1]} : vector<16x96xf32> to vector<16x32xf32>
    %545 = tpu.concatenate %542, %542, %542, %542 in 0 : vector<16x32xf32>, vector<16x32xf32>, vector<16x32xf32>, vector<16x32xf32> -> vector<64x32xf32>
    %546 = arith.mulf %545, %71 : vector<64x32xf32>
    %547 = tpu.transpose %543, [1, 0] : vector<16x32xf32> -> vector<32x16xf32>
    %cst_232 = arith.constant dense<0.000000e+00> : vector<64x16xf32>
    %548 = tpu.matmul %546, %547, %cst_232 {dimension_numbers = #tpu.dot_dimension_numbers<[1], [0], [0], [1], [0, 0, 1, 1], [], []>} : vector<64x32xf32>, vector<32x16xf32>, vector<64x16xf32> -> vector<64x16xf32>
    %549 = arith.addf %548, %73 : vector<64x16xf32>
    %cst_233 = arith.constant dense<0xFF800000> : vector<64xf32>
    %550 = vector.multi_reduction <maximumf>, %549, %cst_233 [1] : vector<64x16xf32> to vector<64xf32>
    %551 = vector.shape_cast %550 : vector<64xf32> to vector<64x1xf32>
    %552 = vector.broadcast %551 : vector<64x1xf32> to vector<64x16xf32>
    %553 = arith.subf %549, %552 : vector<64x16xf32>
    %554 = math.exp %553 : vector<64x16xf32>
    %cst_234 = arith.constant dense<0.000000e+00> : vector<64xf32>
    %555 = vector.multi_reduction <add>, %554, %cst_234 [1] : vector<64x16xf32> to vector<64xf32>
    %556 = vector.shape_cast %555 : vector<64xf32> to vector<64x1xf32>
    %557 = tpu.reciprocal %556 {approx = true} : vector<64x1xf32> -> vector<64x1xf32>
    %558 = vector.broadcast %557 : vector<64x1xf32> to vector<64x16xf32>
    %559 = arith.mulf %554, %558 : vector<64x16xf32>
    %cst_235 = arith.constant dense<0.000000e+00> : vector<64x32xf32>
    %560 = tpu.matmul %559, %544, %cst_235 {dimension_numbers = #tpu.dot_dimension_numbers<[1], [0], [0], [1], [0, 0, 1, 1], [], []>} : vector<64x16xf32>, vector<16x32xf32>, vector<64x32xf32> -> vector<64x32xf32>
    %561 = arith.mulf %560, %71 : vector<64x32xf32>
    %562 = vector.extract_strided_slice %561 {offsets = [0, 0], sizes = [16, 32], strides = [1, 1]} : vector<64x32xf32> to vector<16x32xf32>
    %563 = vector.extract_strided_slice %561 {offsets = [16, 0], sizes = [16, 32], strides = [1, 1]} : vector<64x32xf32> to vector<16x32xf32>
    %564 = arith.addf %562, %563 : vector<16x32xf32>
    %565 = vector.extract_strided_slice %561 {offsets = [32, 0], sizes = [16, 32], strides = [1, 1]} : vector<64x32xf32> to vector<16x32xf32>
    %566 = arith.addf %564, %565 : vector<16x32xf32>
    %567 = vector.extract_strided_slice %561 {offsets = [48, 0], sizes = [16, 32], strides = [1, 1]} : vector<64x32xf32> to vector<16x32xf32>
    %568 = arith.addf %566, %567 : vector<16x32xf32>
    %569 = arith.truncf %568 : vector<16x32xf32> to vector<16x32xbf16>
    %c4_236 = arith.constant 4 : index
    %c0_237 = arith.constant 0 : index
    %c128_238 = arith.constant 128 : index
    %570 = vector.load %arg4[%c4_236, %c0_237, %c128_238] : memref<7x32x384xbf16, #tpu.memory_space<vmem>>, vector<1x32x32xbf16>
    %571 = vector.shape_cast %570 : vector<1x32x32xbf16> to vector<32x32xbf16>
    %cst_239 = arith.constant dense<0.000000e+00> : vector<16x32xf32>
    %572 = tpu.matmul %569, %571, %cst_239 {dimension_numbers = #tpu.dot_dimension_numbers<[1], [0], [0], [1], [0, 0, 1, 1], [], []>} : vector<16x32xbf16>, vector<32x32xbf16>, vector<16x32xf32> -> vector<16x32xf32>
    %c4_240 = arith.constant 4 : index
    %c1_241 = arith.constant 1 : index
    %c0_242 = arith.constant 0 : index
    %573 = vector.load %arg6[%c4_240, %c1_241, %c0_242] : memref<7x8x128xf32, #tpu.memory_space<vmem>>, vector<1x1x32xf32>
    %574 = vector.shape_cast %573 : vector<1x1x32xf32> to vector<1x32xf32>
    %575 = vector.broadcast %574 : vector<1x32xf32> to vector<16x32xf32>
    %576 = arith.addf %572, %575 : vector<16x32xf32>
    %577 = arith.addf %533, %576 : vector<16x32xf32>
    %c4_243 = arith.constant 4 : index
    %c2_244 = arith.constant 2 : index
    %c0_245 = arith.constant 0 : index
    %578 = vector.load %arg6[%c4_243, %c2_244, %c0_245] : memref<7x8x128xf32, #tpu.memory_space<vmem>>, vector<1x1x32xf32>
    %579 = vector.shape_cast %578 : vector<1x1x32xf32> to vector<1x32xf32>
    %c4_246 = arith.constant 4 : index
    %c3_247 = arith.constant 3 : index
    %c0_248 = arith.constant 0 : index
    %580 = vector.load %arg6[%c4_246, %c3_247, %c0_248] : memref<7x8x128xf32, #tpu.memory_space<vmem>>, vector<1x1x32xf32>
    %581 = vector.shape_cast %580 : vector<1x1x32xf32> to vector<1x32xf32>
    %cst_249 = arith.constant dense<0.000000e+00> : vector<16xf32>
    %582 = vector.multi_reduction <add>, %577, %cst_249 [1] : vector<16x32xf32> to vector<16xf32>
    %583 = vector.shape_cast %582 : vector<16xf32> to vector<16x1xf32>
    %cst_250 = arith.constant 3.200000e+01 : f32
    %584 = vector.broadcast %cst_250 : f32 to vector<16x1xf32>
    %585 = arith.divf %583, %584 : vector<16x1xf32>
    %586 = vector.broadcast %585 : vector<16x1xf32> to vector<16x32xf32>
    %587 = arith.subf %577, %586 : vector<16x32xf32>
    %588 = arith.mulf %587, %587 : vector<16x32xf32>
    %cst_251 = arith.constant dense<0.000000e+00> : vector<16xf32>
    %589 = vector.multi_reduction <add>, %588, %cst_251 [1] : vector<16x32xf32> to vector<16xf32>
    %590 = vector.shape_cast %589 : vector<16xf32> to vector<16x1xf32>
    %cst_252 = arith.constant 3.200000e+01 : f32
    %591 = vector.broadcast %cst_252 : f32 to vector<16x1xf32>
    %592 = arith.divf %590, %591 : vector<16x1xf32>
    %593 = vector.broadcast %585 : vector<16x1xf32> to vector<16x32xf32>
    %594 = arith.subf %577, %593 : vector<16x32xf32>
    %cst_253 = arith.constant 9.99999974E-6 : f32
    %595 = vector.broadcast %cst_253 : f32 to vector<16x1xf32>
    %596 = arith.addf %592, %595 : vector<16x1xf32>
    %597 = math.rsqrt %596 : vector<16x1xf32>
    %598 = vector.broadcast %597 : vector<16x1xf32> to vector<16x32xf32>
    %599 = arith.mulf %594, %598 : vector<16x32xf32>
    %600 = vector.broadcast %579 : vector<1x32xf32> to vector<16x32xf32>
    %601 = arith.mulf %599, %600 : vector<16x32xf32>
    %602 = vector.broadcast %581 : vector<1x32xf32> to vector<16x32xf32>
    %603 = arith.addf %601, %602 : vector<16x32xf32>
    %604 = arith.truncf %603 : vector<16x32xf32> to vector<16x32xbf16>
    %c4_254 = arith.constant 4 : index
    %c0_255 = arith.constant 0 : index
    %c256_256 = arith.constant 256 : index
    %605 = vector.load %arg4[%c4_254, %c0_255, %c256_256] : memref<7x32x384xbf16, #tpu.memory_space<vmem>>, vector<1x32x64xbf16>
    %606 = vector.shape_cast %605 : vector<1x32x64xbf16> to vector<32x64xbf16>
    %cst_257 = arith.constant dense<0.000000e+00> : vector<16x64xf32>
    %607 = tpu.matmul %604, %606, %cst_257 {dimension_numbers = #tpu.dot_dimension_numbers<[1], [0], [0], [1], [0, 0, 1, 1], [], []>} : vector<16x32xbf16>, vector<32x64xbf16>, vector<16x64xf32> -> vector<16x64xf32>
    %c4_258 = arith.constant 4 : index
    %c4_259 = arith.constant 4 : index
    %c0_260 = arith.constant 0 : index
    %608 = vector.load %arg6[%c4_258, %c4_259, %c0_260] : memref<7x8x128xf32, #tpu.memory_space<vmem>>, vector<1x1x64xf32>
    %609 = vector.shape_cast %608 : vector<1x1x64xf32> to vector<1x64xf32>
    %610 = vector.broadcast %609 : vector<1x64xf32> to vector<16x64xf32>
    %611 = arith.addf %607, %610 : vector<16x64xf32>
    %cst_261 = arith.constant 0.000000e+00 : f32
    %612 = vector.broadcast %cst_261 : f32 to vector<16x64xf32>
    %613 = arith.maximumf %611, %612 : vector<16x64xf32>
    %614 = arith.truncf %613 : vector<16x64xf32> to vector<16x64xbf16>
    %c4_262 = arith.constant 4 : index
    %c0_263 = arith.constant 0 : index
    %c0_264 = arith.constant 0 : index
    %615 = vector.load %arg5[%c4_262, %c0_263, %c0_264] : memref<6x64x32xbf16, #tpu.memory_space<vmem>>, vector<1x64x32xbf16>
    %616 = vector.shape_cast %615 : vector<1x64x32xbf16> to vector<64x32xbf16>
    %cst_265 = arith.constant dense<0.000000e+00> : vector<16x32xf32>
    %617 = tpu.matmul %614, %616, %cst_265 {dimension_numbers = #tpu.dot_dimension_numbers<[1], [0], [0], [1], [0, 0, 1, 1], [], []>} : vector<16x64xbf16>, vector<64x32xbf16>, vector<16x32xf32> -> vector<16x32xf32>
    %c4_266 = arith.constant 4 : index
    %c5_267 = arith.constant 5 : index
    %c0_268 = arith.constant 0 : index
    %618 = vector.load %arg6[%c4_266, %c5_267, %c0_268] : memref<7x8x128xf32, #tpu.memory_space<vmem>>, vector<1x1x32xf32>
    %619 = vector.shape_cast %618 : vector<1x1x32xf32> to vector<1x32xf32>
    %620 = vector.broadcast %619 : vector<1x32xf32> to vector<16x32xf32>
    %621 = arith.addf %617, %620 : vector<16x32xf32>
    %622 = arith.addf %603, %621 : vector<16x32xf32>
    %c4_269 = arith.constant 4 : index
    %c6_270 = arith.constant 6 : index
    %c0_271 = arith.constant 0 : index
    %623 = vector.load %arg6[%c4_269, %c6_270, %c0_271] : memref<7x8x128xf32, #tpu.memory_space<vmem>>, vector<1x1x32xf32>
    %624 = vector.shape_cast %623 : vector<1x1x32xf32> to vector<1x32xf32>
    %c4_272 = arith.constant 4 : index
    %c7_273 = arith.constant 7 : index
    %c0_274 = arith.constant 0 : index
    %625 = vector.load %arg6[%c4_272, %c7_273, %c0_274] : memref<7x8x128xf32, #tpu.memory_space<vmem>>, vector<1x1x32xf32>
    %626 = vector.shape_cast %625 : vector<1x1x32xf32> to vector<1x32xf32>
    %cst_275 = arith.constant dense<0.000000e+00> : vector<16xf32>
    %627 = vector.multi_reduction <add>, %622, %cst_275 [1] : vector<16x32xf32> to vector<16xf32>
    %628 = vector.shape_cast %627 : vector<16xf32> to vector<16x1xf32>
    %cst_276 = arith.constant 3.200000e+01 : f32
    %629 = vector.broadcast %cst_276 : f32 to vector<16x1xf32>
    %630 = arith.divf %628, %629 : vector<16x1xf32>
    %631 = vector.broadcast %630 : vector<16x1xf32> to vector<16x32xf32>
    %632 = arith.subf %622, %631 : vector<16x32xf32>
    %633 = arith.mulf %632, %632 : vector<16x32xf32>
    %cst_277 = arith.constant dense<0.000000e+00> : vector<16xf32>
    %634 = vector.multi_reduction <add>, %633, %cst_277 [1] : vector<16x32xf32> to vector<16xf32>
    %635 = vector.shape_cast %634 : vector<16xf32> to vector<16x1xf32>
    %cst_278 = arith.constant 3.200000e+01 : f32
    %636 = vector.broadcast %cst_278 : f32 to vector<16x1xf32>
    %637 = arith.divf %635, %636 : vector<16x1xf32>
    %638 = vector.broadcast %630 : vector<16x1xf32> to vector<16x32xf32>
    %639 = arith.subf %622, %638 : vector<16x32xf32>
    %cst_279 = arith.constant 9.99999974E-6 : f32
    %640 = vector.broadcast %cst_279 : f32 to vector<16x1xf32>
    %641 = arith.addf %637, %640 : vector<16x1xf32>
    %642 = math.rsqrt %641 : vector<16x1xf32>
    %643 = vector.broadcast %642 : vector<16x1xf32> to vector<16x32xf32>
    %644 = arith.mulf %639, %643 : vector<16x32xf32>
    %645 = vector.broadcast %624 : vector<1x32xf32> to vector<16x32xf32>
    %646 = arith.mulf %644, %645 : vector<16x32xf32>
    %647 = vector.broadcast %626 : vector<1x32xf32> to vector<16x32xf32>
    %648 = arith.addf %646, %647 : vector<16x32xf32>
    %649 = arith.truncf %648 : vector<16x32xf32> to vector<16x32xbf16>
    %c5_280 = arith.constant 5 : index
    %c0_281 = arith.constant 0 : index
    %c0_282 = arith.constant 0 : index
    %650 = vector.load %arg4[%c5_280, %c0_281, %c0_282] : memref<7x32x384xbf16, #tpu.memory_space<vmem>>, vector<1x32x96xbf16>
    %651 = vector.shape_cast %650 : vector<1x32x96xbf16> to vector<32x96xbf16>
    %cst_283 = arith.constant dense<0.000000e+00> : vector<16x96xf32>
    %652 = tpu.matmul %649, %651, %cst_283 {dimension_numbers = #tpu.dot_dimension_numbers<[1], [0], [0], [1], [0, 0, 1, 1], [], []>} : vector<16x32xbf16>, vector<32x96xbf16>, vector<16x96xf32> -> vector<16x96xf32>
    %c5_284 = arith.constant 5 : index
    %c0_285 = arith.constant 0 : index
    %c0_286 = arith.constant 0 : index
    %653 = vector.load %arg6[%c5_284, %c0_285, %c0_286] : memref<7x8x128xf32, #tpu.memory_space<vmem>>, vector<1x1x96xf32>
    %654 = vector.shape_cast %653 : vector<1x1x96xf32> to vector<1x96xf32>
    %655 = vector.broadcast %654 : vector<1x96xf32> to vector<16x96xf32>
    %656 = arith.addf %652, %655 : vector<16x96xf32>
    %657 = vector.extract_strided_slice %656 {offsets = [0, 0], sizes = [16, 32], strides = [1, 1]} : vector<16x96xf32> to vector<16x32xf32>
    %658 = vector.extract_strided_slice %656 {offsets = [0, 32], sizes = [16, 32], strides = [1, 1]} : vector<16x96xf32> to vector<16x32xf32>
    %659 = vector.extract_strided_slice %656 {offsets = [0, 64], sizes = [16, 32], strides = [1, 1]} : vector<16x96xf32> to vector<16x32xf32>
    %660 = tpu.concatenate %657, %657, %657, %657 in 0 : vector<16x32xf32>, vector<16x32xf32>, vector<16x32xf32>, vector<16x32xf32> -> vector<64x32xf32>
    %661 = arith.mulf %660, %71 : vector<64x32xf32>
    %662 = tpu.transpose %658, [1, 0] : vector<16x32xf32> -> vector<32x16xf32>
    %cst_287 = arith.constant dense<0.000000e+00> : vector<64x16xf32>
    %663 = tpu.matmul %661, %662, %cst_287 {dimension_numbers = #tpu.dot_dimension_numbers<[1], [0], [0], [1], [0, 0, 1, 1], [], []>} : vector<64x32xf32>, vector<32x16xf32>, vector<64x16xf32> -> vector<64x16xf32>
    %664 = arith.addf %663, %73 : vector<64x16xf32>
    %cst_288 = arith.constant dense<0xFF800000> : vector<64xf32>
    %665 = vector.multi_reduction <maximumf>, %664, %cst_288 [1] : vector<64x16xf32> to vector<64xf32>
    %666 = vector.shape_cast %665 : vector<64xf32> to vector<64x1xf32>
    %667 = vector.broadcast %666 : vector<64x1xf32> to vector<64x16xf32>
    %668 = arith.subf %664, %667 : vector<64x16xf32>
    %669 = math.exp %668 : vector<64x16xf32>
    %cst_289 = arith.constant dense<0.000000e+00> : vector<64xf32>
    %670 = vector.multi_reduction <add>, %669, %cst_289 [1] : vector<64x16xf32> to vector<64xf32>
    %671 = vector.shape_cast %670 : vector<64xf32> to vector<64x1xf32>
    %672 = tpu.reciprocal %671 {approx = true} : vector<64x1xf32> -> vector<64x1xf32>
    %673 = vector.broadcast %672 : vector<64x1xf32> to vector<64x16xf32>
    %674 = arith.mulf %669, %673 : vector<64x16xf32>
    %cst_290 = arith.constant dense<0.000000e+00> : vector<64x32xf32>
    %675 = tpu.matmul %674, %659, %cst_290 {dimension_numbers = #tpu.dot_dimension_numbers<[1], [0], [0], [1], [0, 0, 1, 1], [], []>} : vector<64x16xf32>, vector<16x32xf32>, vector<64x32xf32> -> vector<64x32xf32>
    %676 = arith.mulf %675, %71 : vector<64x32xf32>
    %677 = vector.extract_strided_slice %676 {offsets = [0, 0], sizes = [16, 32], strides = [1, 1]} : vector<64x32xf32> to vector<16x32xf32>
    %678 = vector.extract_strided_slice %676 {offsets = [16, 0], sizes = [16, 32], strides = [1, 1]} : vector<64x32xf32> to vector<16x32xf32>
    %679 = arith.addf %677, %678 : vector<16x32xf32>
    %680 = vector.extract_strided_slice %676 {offsets = [32, 0], sizes = [16, 32], strides = [1, 1]} : vector<64x32xf32> to vector<16x32xf32>
    %681 = arith.addf %679, %680 : vector<16x32xf32>
    %682 = vector.extract_strided_slice %676 {offsets = [48, 0], sizes = [16, 32], strides = [1, 1]} : vector<64x32xf32> to vector<16x32xf32>
    %683 = arith.addf %681, %682 : vector<16x32xf32>
    %684 = arith.truncf %683 : vector<16x32xf32> to vector<16x32xbf16>
    %c5_291 = arith.constant 5 : index
    %c0_292 = arith.constant 0 : index
    %c128_293 = arith.constant 128 : index
    %685 = vector.load %arg4[%c5_291, %c0_292, %c128_293] : memref<7x32x384xbf16, #tpu.memory_space<vmem>>, vector<1x32x32xbf16>
    %686 = vector.shape_cast %685 : vector<1x32x32xbf16> to vector<32x32xbf16>
    %cst_294 = arith.constant dense<0.000000e+00> : vector<16x32xf32>
    %687 = tpu.matmul %684, %686, %cst_294 {dimension_numbers = #tpu.dot_dimension_numbers<[1], [0], [0], [1], [0, 0, 1, 1], [], []>} : vector<16x32xbf16>, vector<32x32xbf16>, vector<16x32xf32> -> vector<16x32xf32>
    %c5_295 = arith.constant 5 : index
    %c1_296 = arith.constant 1 : index
    %c0_297 = arith.constant 0 : index
    %688 = vector.load %arg6[%c5_295, %c1_296, %c0_297] : memref<7x8x128xf32, #tpu.memory_space<vmem>>, vector<1x1x32xf32>
    %689 = vector.shape_cast %688 : vector<1x1x32xf32> to vector<1x32xf32>
    %690 = vector.broadcast %689 : vector<1x32xf32> to vector<16x32xf32>
    %691 = arith.addf %687, %690 : vector<16x32xf32>
    %692 = arith.addf %648, %691 : vector<16x32xf32>
    %c5_298 = arith.constant 5 : index
    %c2_299 = arith.constant 2 : index
    %c0_300 = arith.constant 0 : index
    %693 = vector.load %arg6[%c5_298, %c2_299, %c0_300] : memref<7x8x128xf32, #tpu.memory_space<vmem>>, vector<1x1x32xf32>
    %694 = vector.shape_cast %693 : vector<1x1x32xf32> to vector<1x32xf32>
    %c5_301 = arith.constant 5 : index
    %c3_302 = arith.constant 3 : index
    %c0_303 = arith.constant 0 : index
    %695 = vector.load %arg6[%c5_301, %c3_302, %c0_303] : memref<7x8x128xf32, #tpu.memory_space<vmem>>, vector<1x1x32xf32>
    %696 = vector.shape_cast %695 : vector<1x1x32xf32> to vector<1x32xf32>
    %cst_304 = arith.constant dense<0.000000e+00> : vector<16xf32>
    %697 = vector.multi_reduction <add>, %692, %cst_304 [1] : vector<16x32xf32> to vector<16xf32>
    %698 = vector.shape_cast %697 : vector<16xf32> to vector<16x1xf32>
    %cst_305 = arith.constant 3.200000e+01 : f32
    %699 = vector.broadcast %cst_305 : f32 to vector<16x1xf32>
    %700 = arith.divf %698, %699 : vector<16x1xf32>
    %701 = vector.broadcast %700 : vector<16x1xf32> to vector<16x32xf32>
    %702 = arith.subf %692, %701 : vector<16x32xf32>
    %703 = arith.mulf %702, %702 : vector<16x32xf32>
    %cst_306 = arith.constant dense<0.000000e+00> : vector<16xf32>
    %704 = vector.multi_reduction <add>, %703, %cst_306 [1] : vector<16x32xf32> to vector<16xf32>
    %705 = vector.shape_cast %704 : vector<16xf32> to vector<16x1xf32>
    %cst_307 = arith.constant 3.200000e+01 : f32
    %706 = vector.broadcast %cst_307 : f32 to vector<16x1xf32>
    %707 = arith.divf %705, %706 : vector<16x1xf32>
    %708 = vector.broadcast %700 : vector<16x1xf32> to vector<16x32xf32>
    %709 = arith.subf %692, %708 : vector<16x32xf32>
    %cst_308 = arith.constant 9.99999974E-6 : f32
    %710 = vector.broadcast %cst_308 : f32 to vector<16x1xf32>
    %711 = arith.addf %707, %710 : vector<16x1xf32>
    %712 = math.rsqrt %711 : vector<16x1xf32>
    %713 = vector.broadcast %712 : vector<16x1xf32> to vector<16x32xf32>
    %714 = arith.mulf %709, %713 : vector<16x32xf32>
    %715 = vector.broadcast %694 : vector<1x32xf32> to vector<16x32xf32>
    %716 = arith.mulf %714, %715 : vector<16x32xf32>
    %717 = vector.broadcast %696 : vector<1x32xf32> to vector<16x32xf32>
    %718 = arith.addf %716, %717 : vector<16x32xf32>
    %719 = arith.truncf %718 : vector<16x32xf32> to vector<16x32xbf16>
    %c5_309 = arith.constant 5 : index
    %c0_310 = arith.constant 0 : index
    %c256_311 = arith.constant 256 : index
    %720 = vector.load %arg4[%c5_309, %c0_310, %c256_311] : memref<7x32x384xbf16, #tpu.memory_space<vmem>>, vector<1x32x64xbf16>
    %721 = vector.shape_cast %720 : vector<1x32x64xbf16> to vector<32x64xbf16>
    %cst_312 = arith.constant dense<0.000000e+00> : vector<16x64xf32>
    %722 = tpu.matmul %719, %721, %cst_312 {dimension_numbers = #tpu.dot_dimension_numbers<[1], [0], [0], [1], [0, 0, 1, 1], [], []>} : vector<16x32xbf16>, vector<32x64xbf16>, vector<16x64xf32> -> vector<16x64xf32>
    %c5_313 = arith.constant 5 : index
    %c4_314 = arith.constant 4 : index
    %c0_315 = arith.constant 0 : index
    %723 = vector.load %arg6[%c5_313, %c4_314, %c0_315] : memref<7x8x128xf32, #tpu.memory_space<vmem>>, vector<1x1x64xf32>
    %724 = vector.shape_cast %723 : vector<1x1x64xf32> to vector<1x64xf32>
    %725 = vector.broadcast %724 : vector<1x64xf32> to vector<16x64xf32>
    %726 = arith.addf %722, %725 : vector<16x64xf32>
    %cst_316 = arith.constant 0.000000e+00 : f32
    %727 = vector.broadcast %cst_316 : f32 to vector<16x64xf32>
    %728 = arith.maximumf %726, %727 : vector<16x64xf32>
    %729 = arith.truncf %728 : vector<16x64xf32> to vector<16x64xbf16>
    %c5_317 = arith.constant 5 : index
    %c0_318 = arith.constant 0 : index
    %c0_319 = arith.constant 0 : index
    %730 = vector.load %arg5[%c5_317, %c0_318, %c0_319] : memref<6x64x32xbf16, #tpu.memory_space<vmem>>, vector<1x64x32xbf16>
    %731 = vector.shape_cast %730 : vector<1x64x32xbf16> to vector<64x32xbf16>
    %cst_320 = arith.constant dense<0.000000e+00> : vector<16x32xf32>
    %732 = tpu.matmul %729, %731, %cst_320 {dimension_numbers = #tpu.dot_dimension_numbers<[1], [0], [0], [1], [0, 0, 1, 1], [], []>} : vector<16x64xbf16>, vector<64x32xbf16>, vector<16x32xf32> -> vector<16x32xf32>
    %c5_321 = arith.constant 5 : index
    %c5_322 = arith.constant 5 : index
    %c0_323 = arith.constant 0 : index
    %733 = vector.load %arg6[%c5_321, %c5_322, %c0_323] : memref<7x8x128xf32, #tpu.memory_space<vmem>>, vector<1x1x32xf32>
    %734 = vector.shape_cast %733 : vector<1x1x32xf32> to vector<1x32xf32>
    %735 = vector.broadcast %734 : vector<1x32xf32> to vector<16x32xf32>
    %736 = arith.addf %732, %735 : vector<16x32xf32>
    %737 = arith.addf %718, %736 : vector<16x32xf32>
    %c5_324 = arith.constant 5 : index
    %c6_325 = arith.constant 6 : index
    %c0_326 = arith.constant 0 : index
    %738 = vector.load %arg6[%c5_324, %c6_325, %c0_326] : memref<7x8x128xf32, #tpu.memory_space<vmem>>, vector<1x1x32xf32>
    %739 = vector.shape_cast %738 : vector<1x1x32xf32> to vector<1x32xf32>
    %c5_327 = arith.constant 5 : index
    %c7_328 = arith.constant 7 : index
    %c0_329 = arith.constant 0 : index
    %740 = vector.load %arg6[%c5_327, %c7_328, %c0_329] : memref<7x8x128xf32, #tpu.memory_space<vmem>>, vector<1x1x32xf32>
    %741 = vector.shape_cast %740 : vector<1x1x32xf32> to vector<1x32xf32>
    %cst_330 = arith.constant dense<0.000000e+00> : vector<16xf32>
    %742 = vector.multi_reduction <add>, %737, %cst_330 [1] : vector<16x32xf32> to vector<16xf32>
    %743 = vector.shape_cast %742 : vector<16xf32> to vector<16x1xf32>
    %cst_331 = arith.constant 3.200000e+01 : f32
    %744 = vector.broadcast %cst_331 : f32 to vector<16x1xf32>
    %745 = arith.divf %743, %744 : vector<16x1xf32>
    %746 = vector.broadcast %745 : vector<16x1xf32> to vector<16x32xf32>
    %747 = arith.subf %737, %746 : vector<16x32xf32>
    %748 = arith.mulf %747, %747 : vector<16x32xf32>
    %cst_332 = arith.constant dense<0.000000e+00> : vector<16xf32>
    %749 = vector.multi_reduction <add>, %748, %cst_332 [1] : vector<16x32xf32> to vector<16xf32>
    %750 = vector.shape_cast %749 : vector<16xf32> to vector<16x1xf32>
    %cst_333 = arith.constant 3.200000e+01 : f32
    %751 = vector.broadcast %cst_333 : f32 to vector<16x1xf32>
    %752 = arith.divf %750, %751 : vector<16x1xf32>
    %753 = vector.broadcast %745 : vector<16x1xf32> to vector<16x32xf32>
    %754 = arith.subf %737, %753 : vector<16x32xf32>
    %cst_334 = arith.constant 9.99999974E-6 : f32
    %755 = vector.broadcast %cst_334 : f32 to vector<16x1xf32>
    %756 = arith.addf %752, %755 : vector<16x1xf32>
    %757 = math.rsqrt %756 : vector<16x1xf32>
    %758 = vector.broadcast %757 : vector<16x1xf32> to vector<16x32xf32>
    %759 = arith.mulf %754, %758 : vector<16x32xf32>
    %760 = vector.broadcast %739 : vector<1x32xf32> to vector<16x32xf32>
    %761 = arith.mulf %759, %760 : vector<16x32xf32>
    %762 = vector.broadcast %741 : vector<1x32xf32> to vector<16x32xf32>
    %763 = arith.addf %761, %762 : vector<16x32xf32>
    %764 = arith.truncf %763 : vector<16x32xf32> to vector<16x32xbf16>
    %c6_335 = arith.constant 6 : index
    %c0_336 = arith.constant 0 : index
    %c0_337 = arith.constant 0 : index
    %765 = vector.load %arg4[%c6_335, %c0_336, %c0_337] : memref<7x32x384xbf16, #tpu.memory_space<vmem>>, vector<1x32x64xbf16>
    %766 = vector.shape_cast %765 : vector<1x32x64xbf16> to vector<32x64xbf16>
    %cst_338 = arith.constant dense<0.000000e+00> : vector<16x64xf32>
    %767 = tpu.matmul %764, %766, %cst_338 {dimension_numbers = #tpu.dot_dimension_numbers<[1], [0], [0], [1], [0, 0, 1, 1], [], []>} : vector<16x32xbf16>, vector<32x64xbf16>, vector<16x64xf32> -> vector<16x64xf32>
    %c6_339 = arith.constant 6 : index
    %c0_340 = arith.constant 0 : index
    %c0_341 = arith.constant 0 : index
    %768 = vector.load %arg6[%c6_339, %c0_340, %c0_341] : memref<7x8x128xf32, #tpu.memory_space<vmem>>, vector<1x1x64xf32>
    %769 = vector.shape_cast %768 : vector<1x1x64xf32> to vector<1x64xf32>
    %770 = vector.broadcast %769 : vector<1x64xf32> to vector<16x64xf32>
    %771 = arith.addf %767, %770 : vector<16x64xf32>
    %c0_342 = arith.constant 0 : index
    %c0_343 = arith.constant 0 : index
    %772 = vector.load %arg7[%c0_342, %c0_343] : memref<16x64xf32, #tpu.memory_space<vmem>>, vector<16x64xf32>
    tpu.vector_store %arg7[%c0_342, %c0_343], %771 {strides = array<i32>} : memref<16x64xf32, #tpu.memory_space<vmem>>, vector<16x64xf32>,
    return
  }
  func.func @transform_0(%arg0: i32) -> (i32, i32) {
    %c0_i32 = arith.constant 0 : i32
    %c0_i32_0 = arith.constant 0 : i32
    %c0_i32_1 = arith.constant 0 : i32
    return %c0_i32, %c0_i32_0 : i32, i32
  }
  func.func @transform_1(%arg0: i32) -> (i32, i32) {
    %c0_i32 = arith.constant 0 : i32
    %c0_i32_0 = arith.constant 0 : i32
    %c0_i32_1 = arith.constant 0 : i32
    return %c0_i32, %c0_i32_0 : i32, i32
  }
  func.func @transform_2(%arg0: i32) -> (i32, i32) {
    %c0_i32 = arith.constant 0 : i32
    %c0_i32_0 = arith.constant 0 : i32
    %c0_i32_1 = arith.constant 0 : i32
    return %c0_i32, %c0_i32_0 : i32, i32
  }
  func.func @transform_3(%arg0: i32) -> (i32, i32, i32) {
    %c0_i32 = arith.constant 0 : i32
    %c0_i32_0 = arith.constant 0 : i32
    %c0_i32_1 = arith.constant 0 : i32
    %c0_i32_2 = arith.constant 0 : i32
    return %c0_i32, %c0_i32_0, %c0_i32_1 : i32, i32, i32
  }
  func.func @transform_4(%arg0: i32) -> (i32, i32, i32) {
    %c0_i32 = arith.constant 0 : i32
    %c0_i32_0 = arith.constant 0 : i32
    %c0_i32_1 = arith.constant 0 : i32
    %c0_i32_2 = arith.constant 0 : i32
    return %c0_i32, %c0_i32_0, %c0_i32_1 : i32, i32, i32
  }
  func.func @transform_5(%arg0: i32) -> (i32, i32, i32) {
    %c0_i32 = arith.constant 0 : i32
    %c0_i32_0 = arith.constant 0 : i32
    %c0_i32_1 = arith.constant 0 : i32
    %c0_i32_2 = arith.constant 0 : i32
    return %c0_i32, %c0_i32_0, %c0_i32_1 : i32, i32, i32
  }
  func.func @transform_6(%arg0: i32) -> (i32, i32) {
    %c0_i32 = arith.constant 0 : i32
    %c0_i32_0 = arith.constant 0 : i32
    %c0_i32_1 = arith.constant 0 : i32
    return %c0_i32, %c0_i32_0 : i32, i32
  }
}

</mosaic_0001>

<llo_original>
// kernel: gpt_forward.1
$region0: #{gpt_forward.1}
  #allocation0 [shape = 'u32[]', space=smem, size = 0x4, offset = 0x4, fixed_abs, tag = 'smem constant byte address 0x4 - core index']
  #allocation1 [shape = 'u32[72,128]{1,0:T(1,128)}', space=vmem, size = 0x9000, scoped, tag = 'internal scratch']
  %s0 = inlined_call_operand.vmem [shape: s32[16,2], index: 0, kind: input, shape index: {}]
  %s1 = inlined_call_operand.vmem [shape: f32[16,16], index: 1, kind: input, shape index: {}]
  %s2 = inlined_call_operand.vmem [shape: f32[80,32], index: 2, kind: input, shape index: {}]
  %s3 = inlined_call_operand.vmem [shape: bf16[7,32,384], index: 3, kind: input, shape index: {}]
  %s4 = inlined_call_operand.vmem [shape: bf16[6,64,32], index: 4, kind: input, shape index: {}]
  %s5 = inlined_call_operand.hbm [shape: f32[7,8,128], index: 5, kind: input, shape index: {}]
  %s6 = inlined_call_operand.hbm [shape: f32[16,64], index: 6, kind: output, shape index: {}]
  %s7 = sld [smem:[#allocation0]]
  $region38: #{gpt_forward.1} parent=0
    _
  %s9 = ssub.s32 1, %s7
  %s10 = scalar_select 0, %s9, %s7
  $region1: #{gpt_forward.1} parent=0
    #allocation2 [shape = 'u8[28672]{0}', space=vmem, size = 0x7000, scoped, tag = 'input window, operand 5, single buffered']
    #allocation3 [shape = 's32[1]{0}', space=sflag, size = 0x4, scoped, tag = 'scoped memory for gpt_forward.1']
    #allocation4 [shape = 's32[1]{0}', space=sflag, size = 0x4, scoped, tag = 'scoped memory for gpt_forward.1']
    #allocation5 [shape = 'u8[8192]{0}', space=vmem, size = 0x2000, scoped, tag = 'output window, operand 0, single buffered']
    %11 = vsyncpa [#allocation3], 0
    %12 = vsyncpa [#allocation4], 0
    // Predicated region
    $region2: #{gpt_forward.1} parent=1 // pred_check
      _
    $region3: #{gpt_forward.1} parent=1 // pred_check_branch
      %14 = sbr.rel (0) target = $region5
    $region4: #{gpt_forward.1} parent=1 // pred_region
      _
    $region5: #{gpt_forward.1} parent=1 // pred_fallthru
      _
    // Predicated region
    $region6: #{gpt_forward.1} parent=1 // pred_check
      _
    $region7: #{gpt_forward.1} parent=1 // pred_check_branch
      %16 = sbr.rel (0) target = $region9
    $region8: #{gpt_forward.1} parent=1 // pred_region
      _
    $region9: #{gpt_forward.1} parent=1 // pred_fallthru
      _
    // Predicated region
    $region10: #{gpt_forward.1} parent=1 // pred_check
      _
    $region11: #{gpt_forward.1} parent=1 // pred_check_branch
      %18 = sbr.rel (0) target = $region13
    $region12: #{gpt_forward.1} parent=1 // pred_region
      _
    $region13: #{gpt_forward.1} parent=1 // pred_fallthru
      _
    // Predicated region
    $region14: #{gpt_forward.1} parent=1 // pred_check
      _
    $region15: #{gpt_forward.1} parent=1 // pred_check_branch
      %20 = sbr.rel (0) target = $region17
    $region16: #{gpt_forward.1} parent=1 // pred_region
      _
    $region17: #{gpt_forward.1} parent=1 // pred_fallthru
      _
    // Predicated region
    $region18: #{gpt_forward.1} parent=1 // pred_check
      _
    $region19: #{gpt_forward.1} parent=1 // pred_check_branch
      %22 = sbr.rel (0) target = $region21
    $region20: #{gpt_forward.1} parent=1 // pred_region
      _
    $region21: #{gpt_forward.1} parent=1 // pred_fallthru
      _
    // Predicated region
    $region22: #{gpt_forward.1} parent=1 // pred_check
      _
    $region23: #{gpt_forward.1} parent=1 // pred_check_branch
      %24 = sbr.rel (0) target = $region25
    $region24: #{gpt_forward.1} parent=1 // pred_region
      %26 = vsyncadd [#allocation3], 0
      %s27 = sshll.u32 %s5, 4
      %s28 = int_to_ptr.hbm [resolvable:$true] %s27
      %s29 = sshll.u32 [#allocation2], 4
      %s30 = int_to_ptr.vmem [resolvable:$true] %s29
      %35 = dma.hbm_to_vmem [thread:$0]  %s28, 896, %s30, [#allocation3], 128, 128, 8
    $region25: #{gpt_forward.1} parent=1 // pred_fallthru
      _
    // Predicated region
    $region26: #{gpt_forward.1} parent=1 // pred_check
      _
    $region27: #{gpt_forward.1} parent=1 // pred_check_branch
      %37 = sbr.rel (0) target = $region29
    $region28: #{gpt_forward.1} parent=1 // pred_region
      %39 = dma.done [#allocation3], 896
    $region29: #{gpt_forward.1} parent=1 // pred_fallthru
      _
    %v41 = vlaneseq
    %v42 = vand.u32 %v41, 127
    %v43 = vld [vmem:[%s0] sm:$0xff]
    %v44 = vld [vmem:[%s0 + $0x8] sm:$0xff]
    %45 = vset.pattern.permute.xlu0 0
    %46 = vperm.xlu0 %45, %v43
    %v47 = vpop.permute.xlu0 %46
    %48 = vset.pattern.permute.xlu0 0
    %49 = vperm.xlu0 %48, %v44
    %v50 = vpop.permute.xlu0 %49
    %vm51 = vcmp.eq.s32.totalorder %v42, %v47
    %vm52 = vcmp.eq.s32.totalorder %v42, %v50
    %v53 = vsel %vm51, 1, 0
    %v54 = vsel %vm52, 1, 0
    %v55 = vcvt.s32.f32 %v53
    %v56 = vcvt.s32.f32 %v54
    %57 = vset.pattern.permute.xlu0 1
    %58 = vperm.xlu0 %57, %v43
    %v59 = vpop.permute.xlu0 %58
    %60 = vset.pattern.permute.xlu0 1
    %61 = vperm.xlu0 %60, %v44
    %v62 = vpop.permute.xlu0 %61
    %vm63 = vcmp.eq.s32.totalorder %v42, %v59
    %vm64 = vcmp.eq.s32.totalorder %v42, %v62
    %v65 = vsel %vm63, 1, 0
    %v66 = vsel %vm64, 1, 0
    %v67 = vcvt.s32.f32 %v65
    %v68 = vcvt.s32.f32 %v66
    %v69 = vadd.f32 %v55, %v67
    %v70 = vadd.f32 %v56, %v68
    %v71 = vld [vmem:[%s2] sm:$0xff]
    %v72 = vld [vmem:[%s2 + $0x8] sm:$0xff]
    %v73 = vld [vmem:[%s2 + $0x10] sm:$0xff]
    %v74 = vld [vmem:[%s2 + $0x18] sm:$0xff]
    %v75 = vld [vmem:[%s2 + $0x20] sm:$0xff]
    %v76 = vld [vmem:[%s2 + $0x28] sm:$0xff]
    %v77 = vld [vmem:[%s2 + $0x30] sm:$0xff]
    %v78 = vld [vmem:[%s2 + $0x38] sm:$0xff]
    %v79 = vld [vmem:[%s2 + $0x40] sm:$0xff]
    %v80 = vld [vmem:[%s2 + $0x48] sm:$0xff]
    %vm81 = vcmask 654336
    %v83 = vsel %vm81, %v69, 0
    %v86 = vsel %vm81, %v70, 0
    %88 = vmatpush.msra.mxu0 0.0
    %89 = vmatpush.msra.mxu0 0.0
    %90 = vmatpush.msra.mxu0 0.0
    %91 = vmatpush.msra.mxu0 0.0
    %92 = vmatpush.msra.mxu0 0.0
    %93 = vmatpush.msra.mxu0 0.0
    %94 = vmatpush.msra.mxu0 %v80
    %95 = vmatpush.msra.mxu0 %v79
    %96 = vmatpush.msra.mxu0 %v78
    %97 = vmatpush.msra.mxu0 %v77
    %98 = vmatpush.msra.mxu0 %v76
    %99 = vmatpush.msra.mxu0 %v75
    %100 = vmatpush.msra.mxu0 %v74
    %101 = vmatpush.msra.mxu0 %v73
    %102 = vmatpush.msra.mxu0 %v72
    %103 = vmatpush.msra.mxu0 %v71
    %104 = vmatmul.f32.gmra.mxu0 %v83
    %v105 = vpop.f32.mrf.mxu0
    %v106 = vadd.f32 0.0, %v105
    %107 = vmatmul.f32.gmra.mxu0 %v86
    %v108 = vpop.f32.mrf.mxu0
    %v109 = vadd.f32 0.0, %v108
    %110 = vdwg.mxu0
    %v111 = vlaneseq
    %v112 = vshrl.u32 %v111, 7
    %v113 = vadd.s32 %v112, 8
    %v114 = vadd.s32 %v112, 16
    %v115 = vadd.s32 %v112, 24
    %v116 = vadd.s32 %v112, 32
    %v117 = vadd.s32 %v112, 40
    %v118 = vadd.s32 %v112, 48
    %v119 = vadd.s32 %v112, 56
    %vm120 = vcmp.ge.s32.totalorder %v112, 0
    %vm121 = vcmp.ge.s32.totalorder %v113, 0
    %vm122 = vcmp.ge.s32.totalorder %v114, 0
    %vm123 = vcmp.ge.s32.totalorder %v115, 0
    %vm124 = vcmp.ge.s32.totalorder %v116, 0
    %vm125 = vcmp.ge.s32.totalorder %v117, 0
    %vm126 = vcmp.ge.s32.totalorder %v118, 0
    %vm127 = vcmp.ge.s32.totalorder %v119, 0
    %vm128 = vcmp.lt.s32.totalorder %v112, 16
    %vm129 = vcmp.lt.s32.totalorder %v113, 16
    %vm130 = vcmp.lt.s32.totalorder %v114, 16
    %vm131 = vcmp.lt.s32.totalorder %v115, 16
    %vm132 = vcmp.lt.s32.totalorder %v116, 16
    %vm133 = vcmp.lt.s32.totalorder %v117, 16
    %vm134 = vcmp.lt.s32.totalorder %v118, 16
    %vm135 = vcmp.lt.s32.totalorder %v119, 16
    %vm136 = vmand %vm120, %vm128
    %vm137 = vmand %vm121, %vm129
    %vm138 = vmand %vm122, %vm130
    %vm139 = vmand %vm123, %vm131
    %vm140 = vmand %vm124, %vm132
    %vm141 = vmand %vm125, %vm133
    %vm142 = vmand %vm126, %vm134
    %vm143 = vmand %vm127, %vm135
    %vm144 = vcmp.ge.s32.totalorder %v42, 0
    %vm145 = vmand %vm136, %vm144
    %vm146 = vmand %vm137, %vm144
    %vm147 = vmand %vm138, %vm144
    %vm148 = vmand %vm139, %vm144
    %vm149 = vmand %vm140, %vm144
    %vm150 = vmand %vm141, %vm144
    %vm151 = vmand %vm142, %vm144
    %vm152 = vmand %vm143, %vm144
    %vm153 = vcmp.lt.s32.totalorder %v42, 8
    %vm154 = vmand %vm145, %vm153
    %vm155 = vmand %vm146, %vm153
    %vm156 = vmand %vm147, %vm153
    %vm157 = vmand %vm148, %vm153
    %vm158 = vmand %vm149, %vm153
    %vm159 = vmand %vm150, %vm153
    %vm160 = vmand %vm151, %vm153
    %vm161 = vmand %vm152, %vm153
    %v162 = vsel %vm154, 1, 0
    %v163 = vsel %vm155, 1, 0
    %v164 = vsel %vm156, 1, 0
    %v165 = vsel %vm157, 1, 0
    %v166 = vsel %vm158, 1, 0
    %v167 = vsel %vm159, 1, 0
    %v168 = vsel %vm160, 1, 0
    %v169 = vsel %vm161, 1, 0
    %v170 = vcvt.s32.f32 %v162
    %v171 = vcvt.s32.f32 %v163
    %v172 = vcvt.s32.f32 %v164
    %v173 = vcvt.s32.f32 %v165
    %v174 = vcvt.s32.f32 %v166
    %v175 = vcvt.s32.f32 %v167
    %v176 = vcvt.s32.f32 %v168
    %v177 = vcvt.s32.f32 %v169
    %vm178 = vcmp.ge.s32.totalorder %v112, 16
    %vm179 = vcmp.ge.s32.totalorder %v113, 16
    %vm180 = vcmp.ge.s32.totalorder %v114, 16
    %vm181 = vcmp.ge.s32.totalorder %v115, 16
    %vm182 = vcmp.ge.s32.totalorder %v116, 16
    %vm183 = vcmp.ge.s32.totalorder %v117, 16
    %vm184 = vcmp.ge.s32.totalorder %v118, 16
    %vm185 = vcmp.ge.s32.totalorder %v119, 16
    %vm186 = vcmp.lt.s32.totalorder %v112, 32
    %vm187 = vcmp.lt.s32.totalorder %v113, 32
    %vm188 = vcmp.lt.s32.totalorder %v114, 32
    %vm189 = vcmp.lt.s32.totalorder %v115, 32
    %vm190 = vcmp.lt.s32.totalorder %v116, 32
    %vm191 = vcmp.lt.s32.totalorder %v117, 32
    %vm192 = vcmp.lt.s32.totalorder %v118, 32
    %vm193 = vcmp.lt.s32.totalorder %v119, 32
    %vm194 = vmand %vm178, %vm186
    %vm195 = vmand %vm179, %vm187
    %vm196 = vmand %vm180, %vm188
    %vm197 = vmand %vm181, %vm189
    %vm198 = vmand %vm182, %vm190
    %vm199 = vmand %vm183, %vm191
    %vm200 = vmand %vm184, %vm192
    %vm201 = vmand %vm185, %vm193
    %vm202 = vcmp.ge.s32.totalorder %v42, 8
    %vm203 = vmand %vm194, %vm202
    %vm204 = vmand %vm195, %vm202
    %vm205 = vmand %vm196, %vm202
    %vm206 = vmand %vm197, %vm202
    %vm207 = vmand %vm198, %vm202
    %vm208 = vmand %vm199, %vm202
    %vm209 = vmand %vm200, %vm202
    %vm210 = vmand %vm201, %vm202
    %vm211 = vcmp.lt.s32.totalorder %v42, 16
    %vm212 = vmand %vm203, %vm211
    %vm213 = vmand %vm204, %vm211
    %vm214 = vmand %vm205, %vm211
    %vm215 = vmand %vm206, %vm211
    %vm216 = vmand %vm207, %vm211
    %vm217 = vmand %vm208, %vm211
    %vm218 = vmand %vm209, %vm211
    %vm219 = vmand %vm210, %vm211
    %v220 = vsel %vm212, 1, 0
    %v221 = vsel %vm213, 1, 0
    %v222 = vsel %vm214, 1, 0
    %v223 = vsel %vm215, 1, 0
    %v224 = vsel %vm216, 1, 0
    %v225 = vsel %vm217, 1, 0
    %v226 = vsel %vm218, 1, 0
    %v227 = vsel %vm219, 1, 0
    %v228 = vcvt.s32.f32 %v220
    %v229 = vcvt.s32.f32 %v221
    %v230 = vcvt.s32.f32 %v222
    %v231 = vcvt.s32.f32 %v223
    %v232 = vcvt.s32.f32 %v224
    %v233 = vcvt.s32.f32 %v225
    %v234 = vcvt.s32.f32 %v226
    %v235 = vcvt.s32.f32 %v227
    %v236 = vadd.f32 %v170, %v228
    %v237 = vadd.f32 %v171, %v229
    %v238 = vadd.f32 %v172, %v230
    %v239 = vadd.f32 %v173, %v231
    %v240 = vadd.f32 %v174, %v232
    %v241 = vadd.f32 %v175, %v233
    %v242 = vadd.f32 %v176, %v234
    %v243 = vadd.f32 %v177, %v235
    %vm244 = vcmp.ge.s32.totalorder %v112, 32
    %vm245 = vcmp.ge.s32.totalorder %v113, 32
    %vm246 = vcmp.ge.s32.totalorder %v114, 32
    %vm247 = vcmp.ge.s32.totalorder %v115, 32
    %vm248 = vcmp.ge.s32.totalorder %v116, 32
    %vm249 = vcmp.ge.s32.totalorder %v117, 32
    %vm250 = vcmp.ge.s32.totalorder %v118, 32
    %vm251 = vcmp.ge.s32.totalorder %v119, 32
    %vm252 = vcmp.lt.s32.totalorder %v112, 48
    %vm253 = vcmp.lt.s32.totalorder %v113, 48
    %vm254 = vcmp.lt.s32.totalorder %v114, 48
    %vm255 = vcmp.lt.s32.totalorder %v115, 48
    %vm256 = vcmp.lt.s32.totalorder %v116, 48
    %vm257 = vcmp.lt.s32.totalorder %v117, 48
    %vm258 = vcmp.lt.s32.totalorder %v118, 48
    %vm259 = vcmp.lt.s32.totalorder %v119, 48
    %vm260 = vmand %vm244, %vm252
    %vm261 = vmand %vm245, %vm253
    %vm262 = vmand %vm246, %vm254
    %vm263 = vmand %vm247, %vm255
    %vm264 = vmand %vm248, %vm256
    %vm265 = vmand %vm249, %vm257
    %vm266 = vmand %vm250, %vm258
    %vm267 = vmand %vm251, %vm259
    %vm268 = vcmp.ge.s32.totalorder %v42, 16
    %vm269 = vmand %vm260, %vm268
    %vm270 = vmand %vm261, %vm268
    %vm271 = vmand %vm262, %vm268
    %vm272 = vmand %vm263, %vm268
    %vm273 = vmand %vm264, %vm268
    %vm274 = vmand %vm265, %vm268
    %vm275 = vmand %vm266, %vm268
    %vm276 = vmand %vm267, %vm268
    %vm277 = vcmp.lt.s32.totalorder %v42, 24
    %vm278 = vmand %vm269, %vm277
    %vm279 = vmand %vm270, %vm277
    %vm280 = vmand %vm271, %vm277
    %vm281 = vmand %vm272, %vm277
    %vm282 = vmand %vm273, %vm277
    %vm283 = vmand %vm274, %vm277
    %vm284 = vmand %vm275, %vm277
    %vm285 = vmand %vm276, %vm277
    %v286 = vsel %vm278, 1, 0
    %v287 = vsel %vm279, 1, 0
    %v288 = vsel %vm280, 1, 0
    %v289 = vsel %vm281, 1, 0
    %v290 = vsel %vm282, 1, 0
    %v291 = vsel %vm283, 1, 0
    %v292 = vsel %vm284, 1, 0
    %v293 = vsel %vm285, 1, 0
    %v294 = vcvt.s32.f32 %v286
    %v295 = vcvt.s32.f32 %v287
    %v296 = vcvt.s32.f32 %v288
    %v297 = vcvt.s32.f32 %v289
    %v298 = vcvt.s32.f32 %v290
    %v299 = vcvt.s32.f32 %v291
    %v300 = vcvt.s32.f32 %v292
    %v301 = vcvt.s32.f32 %v293
    %v302 = vadd.f32 %v236, %v294
    %v303 = vadd.f32 %v237, %v295
    %v304 = vadd.f32 %v238, %v296
    %v305 = vadd.f32 %v239, %v297
    %v306 = vadd.f32 %v240, %v298
    %v307 = vadd.f32 %v241, %v299
    %v308 = vadd.f32 %v242, %v300
    %v309 = vadd.f32 %v243, %v301
    %vm310 = vcmp.ge.s32.totalorder %v112, 48
    %vm311 = vcmp.ge.s32.totalorder %v113, 48
    %vm312 = vcmp.ge.s32.totalorder %v114, 48
    %vm313 = vcmp.ge.s32.totalorder %v115, 48
    %vm314 = vcmp.ge.s32.totalorder %v116, 48
    %vm315 = vcmp.ge.s32.totalorder %v117, 48
    %vm316 = vcmp.ge.s32.totalorder %v118, 48
    %vm317 = vcmp.ge.s32.totalorder %v119, 48
    %vm318 = vcmp.lt.s32.totalorder %v112, 64
    %vm319 = vcmp.lt.s32.totalorder %v113, 64
    %vm320 = vcmp.lt.s32.totalorder %v114, 64
    %vm321 = vcmp.lt.s32.totalorder %v115, 64
    %vm322 = vcmp.lt.s32.totalorder %v116, 64
    %vm323 = vcmp.lt.s32.totalorder %v117, 64
    %vm324 = vcmp.lt.s32.totalorder %v118, 64
    %vm325 = vcmp.lt.s32.totalorder %v119, 64
    %vm326 = vmand %vm310, %vm318
    %vm327 = vmand %vm311, %vm319
    %vm328 = vmand %vm312, %vm320
    %vm329 = vmand %vm313, %vm321
    %vm330 = vmand %vm314, %vm322
    %vm331 = vmand %vm315, %vm323
    %vm332 = vmand %vm316, %vm324
    %vm333 = vmand %vm317, %vm325
    %vm334 = vcmp.ge.s32.totalorder %v42, 24
    %vm335 = vmand %vm326, %vm334
    %vm336 = vmand %vm327, %vm334
    %vm337 = vmand %vm328, %vm334
    %vm338 = vmand %vm329, %vm334
    %vm339 = vmand %vm330, %vm334
    %vm340 = vmand %vm331, %vm334
    %vm341 = vmand %vm332, %vm334
    %vm342 = vmand %vm333, %vm334
    %vm343 = vcmp.lt.s32.totalorder %v42, 32
    %vm344 = vmand %vm335, %vm343
    %vm345 = vmand %vm336, %vm343
    %vm346 = vmand %vm337, %vm343
    %vm347 = vmand %vm338, %vm343
    %vm348 = vmand %vm339, %vm343
    %vm349 = vmand %vm340, %vm343
    %vm350 = vmand %vm341, %vm343
    %vm351 = vmand %vm342, %vm343
    %v352 = vsel %vm344, 1, 0
    %v353 = vsel %vm345, 1, 0
    %v354 = vsel %vm346, 1, 0
    %v355 = vsel %vm347, 1, 0
    %v356 = vsel %vm348, 1, 0
    %v357 = vsel %vm349, 1, 0
    %v358 = vsel %vm350, 1, 0
    %v359 = vsel %vm351, 1, 0
    %v360 = vcvt.s32.f32 %v352
    %v361 = vcvt.s32.f32 %v353
    %v362 = vcvt.s32.f32 %v354
    %v363 = vcvt.s32.f32 %v355
    %v364 = vcvt.s32.f32 %v356
    %v365 = vcvt.s32.f32 %v357
    %v366 = vcvt.s32.f32 %v358
    %v367 = vcvt.s32.f32 %v359
    %v368 = vadd.f32 %v302, %v360
    %v369 = vadd.f32 %v303, %v361
    %v370 = vadd.f32 %v304, %v362
    %v371 = vadd.f32 %v305, %v363
    %v372 = vadd.f32 %v306, %v364
    %v373 = vadd.f32 %v307, %v365
    %v374 = vadd.f32 %v308, %v366
    %v375 = vadd.f32 %v309, %v367
    %v376 = vld [vmem:[%s1] sm:$0xff]
    %v377 = vld [vmem:[%s1 + $0x8] sm:$0xff]
    %v378 = vpack.c.bf16 %v109, %v106
    %v379 = vld [vmem:[%s3] sm:$0xf]
    %v380 = vld [vmem:[%s3 + $0xc] sm:$0xf]
    %v381 = vld [vmem:[%s3 + $0x18] sm:$0xf]
    %v382 = vld [vmem:[%s3 + $0x24] sm:$0xf]
    %v383 = vld [vmem:[#allocation2] sm:$0x1]
    %v384 = vperm.slane %v383, 0
    %v389 = vunpack.c.l.b16 %v379
    %v390 = vunpack.c.l.b16 %v380
    %v391 = vunpack.c.l.b16 %v381
    %v392 = vunpack.c.l.b16 %v382
    %v393 = vpack.c.b16 %v390, %v389
    %v394 = vpack.c.b16 %v392, %v391
    %vm397 = vcmask 261120
    %v399 = vsel %vm397, %v378, 0
    %401 = vmatpush.bf16.msra.mxu0 0
    %402 = vmatpush.bf16.msra.mxu0 0
    %403 = vmatpush.bf16.msra.mxu0 0
    %404 = vmatpush.bf16.msra.mxu0 0
    %405 = vmatpush.bf16.msra.mxu0 0
    %406 = vmatpush.bf16.msra.mxu0 0
    %407 = vmatpush.bf16.msra.mxu0 %v394
    %408 = vmatpush.bf16.msra.mxu0 %v393
    %409 = vmatmul.bf16.gmra.mxu0 %v399
    %v410 = vpop.f32.mrf.mxu0
    %v411 = vadd.f32 %v384, %v410
    %v412 = vpop.f32.mrf.mxu0
    %v413 = vadd.f32 %v384, %v412
    %414 = vdwg.mxu0
    %v415 = vmul.f32 %v411, %v368
    %v416 = vmul.f32 %v413, %v369
    %v417 = vmul.f32 %v411, %v370
    %v418 = vmul.f32 %v413, %v371
    %v419 = vmul.f32 %v411, %v372
    %v420 = vmul.f32 %v413, %v373
    %v421 = vmul.f32 %v411, %v374
    %v422 = vmul.f32 %v413, %v375
    %425 = vrot.lane.b32.xlu0 %v411, 96
    %v426 = vpop.permute.xlu0 %425
    %427 = vrot.lane.b32.xlu0 %v413, 96
    %v428 = vpop.permute.xlu0 %427
    %v430 = vsel %vm397, %v415, 0
    %v433 = vsel %vm397, %v416, 0
    %v436 = vsel %vm397, %v417, 0
    %v439 = vsel %vm397, %v418, 0
    %v442 = vsel %vm397, %v419, 0
    %v445 = vsel %vm397, %v420, 0
    %v448 = vsel %vm397, %v421, 0
    %v451 = vsel %vm397, %v422, 0
    %v453 = vsel %vm397, %v426, 0
    %v455 = vsel %vm397, %v428, 0
    %457 = vmatpush.xpose.msra.mxu0 0.0
    %458 = vmatpush.xpose.msra.mxu0 0.0
    %459 = vmatpush.xpose.msra.mxu0 0.0
    %460 = vmatpush.xpose.msra.mxu0 0.0
    %461 = vmatpush.xpose.msra.mxu0 0.0
    %462 = vmatpush.xpose.msra.mxu0 0.0
    %463 = vmatpush.xpose.msra.mxu0 0.0
    %464 = vmatpush.xpose.msra.mxu0 0.0
    %465 = vmatpush.xpose.msra.mxu0 0.0
    %466 = vmatpush.xpose.msra.mxu0 0.0
    %467 = vmatpush.xpose.msra.mxu0 0.0
    %468 = vmatpush.xpose.msra.mxu0 0.0
    %469 = vmatpush.xpose.msra.mxu0 0.0
    %470 = vmatpush.xpose.msra.mxu0 0.0
    %471 = vmatpush.xpose.msra.mxu0 %v455
    %472 = vmatpush.xpose.msra.mxu0 %v453
    %473 = vmatmul.f32.gmra.mxu0 %v430
    %v474 = vpop.f32.mrf.mxu0
    %v475 = vadd.f32 %v376, %v474
    %476 = vmatmul.f32.gmra.mxu0 %v433
    %v477 = vpop.f32.mrf.mxu0
    %v478 = vadd.f32 %v377, %v477
    %479 = vmatmul.f32.gmra.mxu0 %v436
    %v480 = vpop.f32.mrf.mxu0
    %v481 = vadd.f32 %v376, %v480
    %482 = vmatmul.f32.gmra.mxu0 %v439
    %v483 = vpop.f32.mrf.mxu0
    %v484 = vadd.f32 %v377, %v483
    %485 = vmatmul.f32.gmra.mxu0 %v442
    %v486 = vpop.f32.mrf.mxu0
    %v487 = vadd.f32 %v376, %v486
    %488 = vmatmul.f32.gmra.mxu0 %v445
    %v489 = vpop.f32.mrf.mxu0
    %v490 = vadd.f32 %v377, %v489
    %491 = vmatmul.f32.gmra.mxu0 %v448
    %v492 = vpop.f32.mrf.mxu0
    %v493 = vadd.f32 %v376, %v492
    %494 = vmatmul.f32.gmra.mxu0 %v451
    %v495 = vpop.f32.mrf.mxu0
    %v496 = vadd.f32 %v377, %v495
    %497 = vdwg.mxu0
    %vm498 = vcmask 130048
    %v499 = vsel %vm498, %v475, -inf
    %500 = vmax.xlane.f32.xlu0 %v499
    %v501 = vpop.xlane.xlu0 %500
    %v502 = vsel %vm498, %v478, -inf
    %503 = vmax.xlane.f32.xlu0 %v502
    %v504 = vpop.xlane.xlu0 %503
    %v505 = vsel %vm498, %v481, -inf
    %506 = vmax.xlane.f32.xlu0 %v505
    %v507 = vpop.xlane.xlu0 %506
    %v508 = vsel %vm498, %v484, -inf
    %509 = vmax.xlane.f32.xlu0 %v508
    %v510 = vpop.xlane.xlu0 %509
    %v511 = vsel %vm498, %v487, -inf
    %512 = vmax.xlane.f32.xlu0 %v511
    %v513 = vpop.xlane.xlu0 %512
    %v514 = vsel %vm498, %v490, -inf
    %515 = vmax.xlane.f32.xlu0 %v514
    %v516 = vpop.xlane.xlu0 %515
    %v517 = vsel %vm498, %v493, -inf
    %518 = vmax.xlane.f32.xlu0 %v517
    %v519 = vpop.xlane.xlu0 %518
    %v520 = vsel %vm498, %v496, -inf
    %521 = vmax.xlane.f32.xlu0 %v520
    %v522 = vpop.xlane.xlu0 %521
    %v523 = vsub.f32 %v475, %v501
    %v524 = vsub.f32 %v478, %v504
    %v525 = vsub.f32 %v481, %v507
    %v526 = vsub.f32 %v484, %v510
    %v527 = vsub.f32 %v487, %v513
    %v528 = vsub.f32 %v490, %v516
    %v529 = vsub.f32 %v493, %v519
    %v530 = vsub.f32 %v496, %v522
    %v531 = vmul.f32 %v523, 1.442695
    %v532 = vpow.pop %v531
    %v533 = vmul.f32 %v524, 1.442695
    %v534 = vpow.pop %v533
    %v535 = vmul.f32 %v525, 1.442695
    %v536 = vpow.pop %v535
    %v537 = vmul.f32 %v526, 1.442695
    %v538 = vpow.pop %v537
    %v539 = vmul.f32 %v527, 1.442695
    %v540 = vpow.pop %v539
    %v541 = vmul.f32 %v528, 1.442695
    %v542 = vpow.pop %v541
    %v543 = vmul.f32 %v529, 1.442695
    %v544 = vpow.pop %v543
    %v545 = vmul.f32 %v530, 1.442695
    %v546 = vpow.pop %v545
    %v547 = vsel %vm498, %v532, 0.0
    %548 = vadd.xlane.f32.xlu0 %v547
    %v549 = vpop.xlane.xlu0 %548
    %v550 = vsel %vm498, %v534, 0.0
    %551 = vadd.xlane.f32.xlu0 %v550
    %v552 = vpop.xlane.xlu0 %551
    %v553 = vsel %vm498, %v536, 0.0
    %554 = vadd.xlane.f32.xlu0 %v553
    %v555 = vpop.xlane.xlu0 %554
    %v556 = vsel %vm498, %v538, 0.0
    %557 = vadd.xlane.f32.xlu0 %v556
    %v558 = vpop.xlane.xlu0 %557
    %v559 = vsel %vm498, %v540, 0.0
    %560 = vadd.xlane.f32.xlu0 %v559
    %v561 = vpop.xlane.xlu0 %560
    %v562 = vsel %vm498, %v542, 0.0
    %563 = vadd.xlane.f32.xlu0 %v562
    %v564 = vpop.xlane.xlu0 %563
    %v565 = vsel %vm498, %v544, 0.0
    %566 = vadd.xlane.f32.xlu0 %v565
    %v567 = vpop.xlane.xlu0 %566
    %v568 = vsel %vm498, %v546, 0.0
    %569 = vadd.xlane.f32.xlu0 %v568
    %v570 = vpop.xlane.xlu0 %569
    %v571 = vrcp.pop %v549
    %v572 = vrcp.pop %v552
    %v573 = vrcp.pop %v555
    %v574 = vrcp.pop %v558
    %v575 = vrcp.pop %v561
    %v576 = vrcp.pop %v564
    %v577 = vrcp.pop %v567
    %v578 = vrcp.pop %v570
    %v579 = vmul.f32 %v532, %v571
    %v580 = vmul.f32 %v534, %v572
    %v581 = vmul.f32 %v536, %v573
    %v582 = vmul.f32 %v538, %v574
    %v583 = vmul.f32 %v540, %v575
    %v584 = vmul.f32 %v542, %v576
    %v585 = vmul.f32 %v544, %v577
    %v586 = vmul.f32 %v546, %v578
    %587 = vrot.lane.b32.xlu0 %v411, 64
    %v588 = vpop.permute.xlu0 %587
    %589 = vrot.lane.b32.xlu0 %v413, 64
    %v590 = vpop.permute.xlu0 %589
    %v594 = vsel %vm498, %v579, 0
    %v597 = vsel %vm498, %v580, 0
    %v600 = vsel %vm498, %v581, 0
    %v603 = vsel %vm498, %v582, 0
    %v606 = vsel %vm498, %v583, 0
    %v609 = vsel %vm498, %v584, 0
    %v612 = vsel %vm498, %v585, 0
    %v615 = vsel %vm498, %v586, 0
    %617 = vmatpush.msra.mxu0 0.0
    %618 = vmatpush.msra.mxu0 0.0
    %619 = vmatpush.msra.mxu0 0.0
    %620 = vmatpush.msra.mxu0 0.0
    %621 = vmatpush.msra.mxu0 0.0
    %622 = vmatpush.msra.mxu0 0.0
    %623 = vmatpush.msra.mxu0 0.0
    %624 = vmatpush.msra.mxu0 0.0
    %625 = vmatpush.msra.mxu0 0.0
    %626 = vmatpush.msra.mxu0 0.0
    %627 = vmatpush.msra.mxu0 0.0
    %628 = vmatpush.msra.mxu0 0.0
    %629 = vmatpush.msra.mxu0 0.0
    %630 = vmatpush.msra.mxu0 0.0
    %631 = vmatpush.msra.mxu0 %v590
    %632 = vmatpush.msra.mxu0 %v588
    %633 = vmatmul.f32.gmra.mxu0 %v594
    %v634 = vpop.f32.mrf.mxu0
    %v635 = vadd.f32 0.0, %v634
    %636 = vmatmul.f32.gmra.mxu0 %v597
    %v637 = vpop.f32.mrf.mxu0
    %v638 = vadd.f32 0.0, %v637
    %639 = vmatmul.f32.gmra.mxu0 %v600
    %v640 = vpop.f32.mrf.mxu0
    %v641 = vadd.f32 0.0, %v640
    %642 = vmatmul.f32.gmra.mxu0 %v603
    %v643 = vpop.f32.mrf.mxu0
    %v644 = vadd.f32 0.0, %v643
    %645 = vmatmul.f32.gmra.mxu0 %v606
    %v646 = vpop.f32.mrf.mxu0
    %v647 = vadd.f32 0.0, %v646
    %648 = vmatmul.f32.gmra.mxu0 %v609
    %v649 = vpop.f32.mrf.mxu0
    %v650 = vadd.f32 0.0, %v649
    %651 = vmatmul.f32.gmra.mxu0 %v612
    %v652 = vpop.f32.mrf.mxu0
    %v653 = vadd.f32 0.0, %v652
    %654 = vmatmul.f32.gmra.mxu0 %v615
    %v655 = vpop.f32.mrf.mxu0
    %v656 = vadd.f32 0.0, %v655
    %657 = vdwg.mxu0
    %v658 = vmul.f32 %v635, %v368
    %v659 = vmul.f32 %v638, %v369
    %v660 = vmul.f32 %v641, %v370
    %v661 = vmul.f32 %v644, %v371
    %v662 = vmul.f32 %v647, %v372
    %v663 = vmul.f32 %v650, %v373
    %v664 = vmul.f32 %v653, %v374
    %v665 = vmul.f32 %v656, %v375
    %v666 = vadd.f32 %v658, %v660
    %v667 = vadd.f32 %v659, %v661
    %v668 = vadd.f32 %v666, %v662
    %v669 = vadd.f32 %v667, %v663
    %v670 = vadd.f32 %v668, %v664
    %v671 = vadd.f32 %v669, %v665
    %v672 = vpack.c.bf16 %v671, %v670
    %v673 = vld [vmem:[%s3 + $0x4] sm:$0xf]
    %v674 = vld [vmem:[%s3 + $0x10] sm:$0xf]
    %v675 = vld [vmem:[%s3 + $0x1c] sm:$0xf]
    %v676 = vld [vmem:[%s3 + $0x28] sm:$0xf]
    %v677 = vld [vmem:[#allocation2 + $0x1] sm:$0x1]
    %v678 = vperm.slane %v677, 0
    %v683 = vunpack.c.l.b16 %v673
    %v684 = vunpack.c.l.b16 %v674
    %v685 = vunpack.c.l.b16 %v675
    %v686 = vunpack.c.l.b16 %v676
    %v687 = vpack.c.b16 %v684, %v683
    %v688 = vpack.c.b16 %v686, %v685
    %v692 = vsel %vm397, %v672, 0
    %694 = vmatpush.bf16.msra.mxu0 0
    %695 = vmatpush.bf16.msra.mxu0 0
    %696 = vmatpush.bf16.msra.mxu0 0
    %697 = vmatpush.bf16.msra.mxu0 0
    %698 = vmatpush.bf16.msra.mxu0 0
    %699 = vmatpush.bf16.msra.mxu0 0
    %700 = vmatpush.bf16.msra.mxu0 %v688
    %701 = vmatpush.bf16.msra.mxu0 %v687
    %702 = vmatmul.bf16.gmra.mxu0 %v692
    %v703 = vpop.f32.mrf.mxu0
    %v704 = vadd.f32 %v678, %v703
    %v705 = vpop.f32.mrf.mxu0
    %v706 = vadd.f32 %v678, %v705
    %707 = vdwg.mxu0
    %v708 = vadd.f32 %v106, %v704
    %v709 = vadd.f32 %v109, %v706
    %v710 = vld [vmem:[#allocation2 + $0x2] sm:$0x1]
    %v711 = vld [vmem:[#allocation2 + $0x3] sm:$0x1]
    %v712 = vsel %vm397, %v708, 0.0
    %713 = vadd.xlane.f32.xlu0 %v712
    %v714 = vpop.xlane.xlu0 %713
    %v715 = vsel %vm397, %v709, 0.0
    %716 = vadd.xlane.f32.xlu0 %v715
    %v717 = vpop.xlane.xlu0 %716
    %v718 = vrcp.pop 32.0
    %v719 = vmul.f32 32.0, %v718
    %v720 = vsub.f32 1.0, %v719
    %v721 = vmul.f32 %v718, %v720
    %v722 = vadd.f32 %v718, %v721
    %vm723 = vweird.f32 %v718
    %v724 = vsel %vm723, %v718, %v722
    %v725 = vmul.f32 %v714, %v724
    %v726 = vmul.f32 %v717, %v724
    %v727 = vsub.f32 %v708, %v725
    %v728 = vsub.f32 %v709, %v726
    %v729 = vmul.f32 %v727, %v727
    %v730 = vmul.f32 %v728, %v728
    %v731 = vsel %vm397, %v729, 0.0
    %732 = vadd.xlane.f32.xlu0 %v731
    %v733 = vpop.xlane.xlu0 %732
    %v734 = vsel %vm397, %v730, 0.0
    %735 = vadd.xlane.f32.xlu0 %v734
    %v736 = vpop.xlane.xlu0 %735
    %v737 = vmul.f32 %v733, %v724
    %v738 = vmul.f32 %v736, %v724
    %v739 = vadd.f32 %v737, 1e-05
    %v740 = vadd.f32 %v738, 1e-05
    %v741 = vrsqrt.pop %v739
    %v742 = vmul.f32 %v741, %v739
    %v743 = vmul.f32 %v742, %v741
    %v744 = vmul.f32 0.5, %v743
    %v745 = vsub.f32 1.5, %v744
    %v746 = vmul.f32 %v741, %v745
    %vm747 = vweird.f32 %v739
    %vm748 = vweird.f32 %v741
    %vm749 = vmor %vm747, %vm748
    %v750 = vsel %vm749, %v741, %v746
    %v751 = vrsqrt.pop %v740
    %v752 = vmul.f32 %v751, %v740
    %v753 = vmul.f32 %v752, %v751
    %v754 = vmul.f32 0.5, %v753
    %v755 = vsub.f32 1.5, %v754
    %v756 = vmul.f32 %v751, %v755
    %vm757 = vweird.f32 %v740
    %vm758 = vweird.f32 %v751
    %vm759 = vmor %vm757, %vm758
    %v760 = vsel %vm759, %v751, %v756
    %v761 = vmul.f32 %v727, %v750
    %v762 = vmul.f32 %v728, %v760
    %v763 = vperm.slane %v710, 0
    %v764 = vmul.f32 %v761, %v763
    %v765 = vmul.f32 %v762, %v763
    %v766 = vperm.slane %v711, 0
    %v767 = vadd.f32 %v764, %v766
    %v768 = vadd.f32 %v765, %v766
    %v769 = vpack.c.bf16 %v768, %v767
    %v770 = vld [vmem:[%s3 + $0x8] sm:$0xf]
    %v771 = vld [vmem:[%s3 + $0x14] sm:$0xf]
    %v772 = vld [vmem:[%s3 + $0x20] sm:$0xf]
    %v773 = vld [vmem:[%s3 + $0x2c] sm:$0xf]
    %v774 = vld [vmem:[#allocation2 + $0x4] sm:$0x1]
    %v775 = vperm.slane %v774, 0
    %v780 = vunpack.c.l.b16 %v770
    %v781 = vunpack.c.l.b16 %v771
    %v782 = vunpack.c.l.b16 %v772
    %v783 = vunpack.c.l.b16 %v773
    %v784 = vpack.c.b16 %v781, %v780
    %v785 = vpack.c.b16 %v783, %v782
    %v789 = vsel %vm397, %v769, 0
    %791 = vmatpush.bf16.msra.mxu0 0
    %792 = vmatpush.bf16.msra.mxu0 0
    %793 = vmatpush.bf16.msra.mxu0 0
    %794 = vmatpush.bf16.msra.mxu0 0
    %795 = vmatpush.bf16.msra.mxu0 0
    %796 = vmatpush.bf16.msra.mxu0 0
    %797 = vmatpush.bf16.msra.mxu0 %v785
    %798 = vmatpush.bf16.msra.mxu0 %v784
    %799 = vmatmul.bf16.gmra.mxu0 %v789
    %v800 = vpop.f32.mrf.mxu0
    %v801 = vadd.f32 %v775, %v800
    %v802 = vpop.f32.mrf.mxu0
    %v803 = vadd.f32 %v775, %v802
    %804 = vdwg.mxu0
    %v805 = vmax.f32 %v801, 0.0
    %v806 = vmax.f32 %v803, 0.0
    %v807 = vpack.c.bf16 %v806, %v805
    %v808 = vld [vmem:[%s4] sm:$0xf]
    %v809 = vld [vmem:[%s4 + $0x4] sm:$0xf]
    %v810 = vld [vmem:[%s4 + $0x8] sm:$0xf]
    %v811 = vld [vmem:[%s4 + $0xc] sm:$0xf]
    %v812 = vld [vmem:[%s4 + $0x10] sm:$0xf]
    %v813 = vld [vmem:[%s4 + $0x14] sm:$0xf]
    %v814 = vld [vmem:[%s4 + $0x18] sm:$0xf]
    %v815 = vld [vmem:[%s4 + $0x1c] sm:$0xf]
    %v816 = vld [vmem:[#allocation2 + $0x5] sm:$0x1]
    %v817 = vperm.slane %v816, 0
    %v826 = vunpack.c.l.b16 %v808
    %v827 = vunpack.c.l.b16 %v809
    %v828 = vunpack.c.l.b16 %v810
    %v829 = vunpack.c.l.b16 %v811
    %v830 = vunpack.c.l.b16 %v812
    %v831 = vunpack.c.l.b16 %v813
    %v832 = vunpack.c.l.b16 %v814
    %v833 = vunpack.c.l.b16 %v815
    %v834 = vpack.c.b16 %v827, %v826
    %v835 = vpack.c.b16 %v829, %v828
    %v836 = vpack.c.b16 %v831, %v830
    %v837 = vpack.c.b16 %v833, %v832
    %vm842 = vcmask 523264
    %v844 = vsel %vm842, %v807, 0
    %846 = vmatpush.bf16.msra.mxu0 0
    %847 = vmatpush.bf16.msra.mxu0 0
    %848 = vmatpush.bf16.msra.mxu0 0
    %849 = vmatpush.bf16.msra.mxu0 0
    %850 = vmatpush.bf16.msra.mxu0 %v837
    %851 = vmatpush.bf16.msra.mxu0 %v836
    %852 = vmatpush.bf16.msra.mxu0 %v835
    %853 = vmatpush.bf16.msra.mxu0 %v834
    %854 = vmatmul.bf16.gmra.mxu0 %v844
    %v855 = vpop.f32.mrf.mxu0
    %v856 = vadd.f32 %v817, %v855
    %v857 = vpop.f32.mrf.mxu0
    %v858 = vadd.f32 %v817, %v857
    %859 = vdwg.mxu0
    %v860 = vadd.f32 %v767, %v856
    %v861 = vadd.f32 %v768, %v858
    %v862 = vld [vmem:[#allocation2 + $0x6] sm:$0x1]
    %v863 = vld [vmem:[#allocation2 + $0x7] sm:$0x1]
    %v864 = vsel %vm397, %v860, 0.0
    %865 = vadd.xlane.f32.xlu0 %v864
    %v866 = vpop.xlane.xlu0 %865
    %v867 = vsel %vm397, %v861, 0.0
    %868 = vadd.xlane.f32.xlu0 %v867
    %v869 = vpop.xlane.xlu0 %868
    %v870 = vmul.f32 %v866, %v724
    %v871 = vmul.f32 %v869, %v724
    %v872 = vsub.f32 %v860, %v870
    %v873 = vsub.f32 %v861, %v871
    %v874 = vmul.f32 %v872, %v872
    %v875 = vmul.f32 %v873, %v873
    %v876 = vsel %vm397, %v874, 0.0
    %877 = vadd.xlane.f32.xlu0 %v876
    %v878 = vpop.xlane.xlu0 %877
    %v879 = vsel %vm397, %v875, 0.0
    %880 = vadd.xlane.f32.xlu0 %v879
    %v881 = vpop.xlane.xlu0 %880
    %v882 = vmul.f32 %v878, %v724
    %v883 = vmul.f32 %v881, %v724
    %v884 = vadd.f32 %v882, 1e-05
    %v885 = vadd.f32 %v883, 1e-05
    %v886 = vrsqrt.pop %v884
    %v887 = vmul.f32 %v886, %v884
    %v888 = vmul.f32 %v887, %v886
    %v889 = vmul.f32 0.5, %v888
    %v890 = vsub.f32 1.5, %v889
    %v891 = vmul.f32 %v886, %v890
    %vm892 = vweird.f32 %v884
    %vm893 = vweird.f32 %v886
    %vm894 = vmor %vm892, %vm893
    %v895 = vsel %vm894, %v886, %v891
    %v896 = vrsqrt.pop %v885
    %v897 = vmul.f32 %v896, %v885
    %v898 = vmul.f32 %v897, %v896
    %v899 = vmul.f32 0.5, %v898
    %v900 = vsub.f32 1.5, %v899
    %v901 = vmul.f32 %v896, %v900
    %vm902 = vweird.f32 %v885
    %vm903 = vweird.f32 %v896
    %vm904 = vmor %vm902, %vm903
    %v905 = vsel %vm904, %v896, %v901
    %v906 = vmul.f32 %v872, %v895
    %v907 = vmul.f32 %v873, %v905
    %v908 = vperm.slane %v862, 0
    %v909 = vmul.f32 %v906, %v908
    %v910 = vmul.f32 %v907, %v908
    %v911 = vperm.slane %v863, 0
    %v912 = vadd.f32 %v909, %v911
    %v913 = vadd.f32 %v910, %v911
    %v914 = vpack.c.bf16 %v913, %v912
    %s915 = scalar_lea.vmem %s3, 48
    %v916 = vld [vmem:[%s915] sm:$0xf]
    %v917 = vld [vmem:[%s915 + $0xc] sm:$0xf]
    %v918 = vld [vmem:[%s915 + $0x18] sm:$0xf]
    %v919 = vld [vmem:[%s915 + $0x24] sm:$0xf]
    %s920 = scalar_lea.vmem [#allocation2], 8
    %v921 = vld [vmem:[%s920] sm:$0x1]
    %v922 = vperm.slane %v921, 0
    %v927 = vunpack.c.l.b16 %v916
    %v928 = vunpack.c.l.b16 %v917
    %v929 = vunpack.c.l.b16 %v918
    %v930 = vunpack.c.l.b16 %v919
    %v931 = vpack.c.b16 %v928, %v927
    %v932 = vpack.c.b16 %v930, %v929
    %v936 = vsel %vm397, %v914, 0
    %938 = vmatpush.bf16.msra.mxu0 0
    %939 = vmatpush.bf16.msra.mxu0 0
    %940 = vmatpush.bf16.msra.mxu0 0
    %941 = vmatpush.bf16.msra.mxu0 0
    %942 = vmatpush.bf16.msra.mxu0 0
    %943 = vmatpush.bf16.msra.mxu0 0
    %944 = vmatpush.bf16.msra.mxu0 %v932
    %945 = vmatpush.bf16.msra.mxu0 %v931
    %946 = vmatmul.bf16.gmra.mxu0 %v936
    %v947 = vpop.f32.mrf.mxu0
    %v948 = vadd.f32 %v922, %v947
    %v949 = vpop.f32.mrf.mxu0
    %v950 = vadd.f32 %v922, %v949
    %951 = vdwg.mxu0
    %v952 = vmul.f32 %v948, %v368
    %v953 = vmul.f32 %v950, %v369
    %v954 = vmul.f32 %v948, %v370
    %v955 = vmul.f32 %v950, %v371
    %v956 = vmul.f32 %v948, %v372
    %v957 = vmul.f32 %v950, %v373
    %v958 = vmul.f32 %v948, %v374
    %v959 = vmul.f32 %v950, %v375
    %962 = vrot.lane.b32.xlu0 %v948, 96
    %v963 = vpop.permute.xlu0 %962
    %964 = vrot.lane.b32.xlu0 %v950, 96
    %v965 = vpop.permute.xlu0 %964
    %v967 = vsel %vm397, %v952, 0
    %v970 = vsel %vm397, %v953, 0
    %v973 = vsel %vm397, %v954, 0
    %v976 = vsel %vm397, %v955, 0
    %v979 = vsel %vm397, %v956, 0
    %v982 = vsel %vm397, %v957, 0
    %v985 = vsel %vm397, %v958, 0
    %v988 = vsel %vm397, %v959, 0
    %v990 = vsel %vm397, %v963, 0
    %v992 = vsel %vm397, %v965, 0
    %994 = vmatpush.xpose.msra.mxu0 0.0
    %995 = vmatpush.xpose.msra.mxu0 0.0
    %996 = vmatpush.xpose.msra.mxu0 0.0
    %997 = vmatpush.xpose.msra.mxu0 0.0
    %998 = vmatpush.xpose.msra.mxu0 0.0
    %999 = vmatpush.xpose.msra.mxu0 0.0
    %1000 = vmatpush.xpose.msra.mxu0 0.0
    %1001 = vmatpush.xpose.msra.mxu0 0.0
    %1002 = vmatpush.xpose.msra.mxu0 0.0
    %1003 = vmatpush.xpose.msra.mxu0 0.0
    %1004 = vmatpush.xpose.msra.mxu0 0.0
    %1005 = vmatpush.xpose.msra.mxu0 0.0
    %1006 = vmatpush.xpose.msra.mxu0 0.0
    %1007 = vmatpush.xpose.msra.mxu0 0.0
    %1008 = vmatpush.xpose.msra.mxu0 %v992
    %1009 = vmatpush.xpose.msra.mxu0 %v990
    %1010 = vmatmul.f32.gmra.mxu0 %v967
    %v1011 = vpop.f32.mrf.mxu0
    %v1012 = vadd.f32 %v376, %v1011
    %1013 = vmatmul.f32.gmra.mxu0 %v970
    %v1014 = vpop.f32.mrf.mxu0
    %v1015 = vadd.f32 %v377, %v1014
    %1016 = vmatmul.f32.gmra.mxu0 %v973
    %v1017 = vpop.f32.mrf.mxu0
    %v1018 = vadd.f32 %v376, %v1017
    %1019 = vmatmul.f32.gmra.mxu0 %v976
    %v1020 = vpop.f32.mrf.mxu0
    %v1021 = vadd.f32 %v377, %v1020
    %1022 = vmatmul.f32.gmra.mxu0 %v979
    %v1023 = vpop.f32.mrf.mxu0
    %v1024 = vadd.f32 %v376, %v1023
    %1025 = vmatmul.f32.gmra.mxu0 %v982
    %v1026 = vpop.f32.mrf.mxu0
    %v1027 = vadd.f32 %v377, %v1026
    %1028 = vmatmul.f32.gmra.mxu0 %v985
    %v1029 = vpop.f32.mrf.mxu0
    %v1030 = vadd.f32 %v376, %v1029
    %1031 = vmatmul.f32.gmra.mxu0 %v988
    %v1032 = vpop.f32.mrf.mxu0
    %v1033 = vadd.f32 %v377, %v1032
    %1034 = vdwg.mxu0
    %v1035 = vsel %vm498, %v1012, -inf
    %1036 = vmax.xlane.f32.xlu0 %v1035
    %v1037 = vpop.xlane.xlu0 %1036
    %v1038 = vsel %vm498, %v1015, -inf
    %1039 = vmax.xlane.f32.xlu0 %v1038
    %v1040 = vpop.xlane.xlu0 %1039
    %v1041 = vsel %vm498, %v1018, -inf
    %1042 = vmax.xlane.f32.xlu0 %v1041
    %v1043 = vpop.xlane.xlu0 %1042
    %v1044 = vsel %vm498, %v1021, -inf
    %1045 = vmax.xlane.f32.xlu0 %v1044
    %v1046 = vpop.xlane.xlu0 %1045
    %v1047 = vsel %vm498, %v1024, -inf
    %1048 = vmax.xlane.f32.xlu0 %v1047
    %v1049 = vpop.xlane.xlu0 %1048
    %v1050 = vsel %vm498, %v1027, -inf
    %1051 = vmax.xlane.f32.xlu0 %v1050
    %v1052 = vpop.xlane.xlu0 %1051
    %v1053 = vsel %vm498, %v1030, -inf
    %1054 = vmax.xlane.f32.xlu0 %v1053
    %v1055 = vpop.xlane.xlu0 %1054
    %v1056 = vsel %vm498, %v1033, -inf
    %1057 = vmax.xlane.f32.xlu0 %v1056
    %v1058 = vpop.xlane.xlu0 %1057
    %v1059 = vsub.f32 %v1012, %v1037
    %v1060 = vsub.f32 %v1015, %v1040
    %v1061 = vsub.f32 %v1018, %v1043
    %v1062 = vsub.f32 %v1021, %v1046
    %v1063 = vsub.f32 %v1024, %v1049
    %v1064 = vsub.f32 %v1027, %v1052
    %v1065 = vsub.f32 %v1030, %v1055
    %v1066 = vsub.f32 %v1033, %v1058
    %v1067 = vmul.f32 %v1059, 1.442695
    %v1068 = vpow.pop %v1067
    %v1069 = vmul.f32 %v1060, 1.442695
    %v1070 = vpow.pop %v1069
    %v1071 = vmul.f32 %v1061, 1.442695
    %v1072 = vpow.pop %v1071
    %v1073 = vmul.f32 %v1062, 1.442695
    %v1074 = vpow.pop %v1073
    %v1075 = vmul.f32 %v1063, 1.442695
    %v1076 = vpow.pop %v1075
    %v1077 = vmul.f32 %v1064, 1.442695
    %v1078 = vpow.pop %v1077
    %v1079 = vmul.f32 %v1065, 1.442695
    %v1080 = vpow.pop %v1079
    %v1081 = vmul.f32 %v1066, 1.442695
    %v1082 = vpow.pop %v1081
    %v1083 = vsel %vm498, %v1068, 0.0
    %1084 = vadd.xlane.f32.xlu0 %v1083
    %v1085 = vpop.xlane.xlu0 %1084
    %v1086 = vsel %vm498, %v1070, 0.0
    %1087 = vadd.xlane.f32.xlu0 %v1086
    %v1088 = vpop.xlane.xlu0 %1087
    %v1089 = vsel %vm498, %v1072, 0.0
    %1090 = vadd.xlane.f32.xlu0 %v1089
    %v1091 = vpop.xlane.xlu0 %1090
    %v1092 = vsel %vm498, %v1074, 0.0
    %1093 = vadd.xlane.f32.xlu0 %v1092
    %v1094 = vpop.xlane.xlu0 %1093
    %v1095 = vsel %vm498, %v1076, 0.0
    %1096 = vadd.xlane.f32.xlu0 %v1095
    %v1097 = vpop.xlane.xlu0 %1096
    %v1098 = vsel %vm498, %v1078, 0.0
    %1099 = vadd.xlane.f32.xlu0 %v1098
    %v1100 = vpop.xlane.xlu0 %1099
    %v1101 = vsel %vm498, %v1080, 0.0
    %1102 = vadd.xlane.f32.xlu0 %v1101
    %v1103 = vpop.xlane.xlu0 %1102
    %v1104 = vsel %vm498, %v1082, 0.0
    %1105 = vadd.xlane.f32.xlu0 %v1104
    %v1106 = vpop.xlane.xlu0 %1105
    %v1107 = vrcp.pop %v1085
    %v1108 = vrcp.pop %v1088
    %v1109 = vrcp.pop %v1091
    %v1110 = vrcp.pop %v1094
    %v1111 = vrcp.pop %v1097
    %v1112 = vrcp.pop %v1100
    %v1113 = vrcp.pop %v1103
    %v1114 = vrcp.pop %v1106
    %v1115 = vmul.f32 %v1068, %v1107
    %v1116 = vmul.f32 %v1070, %v1108
    %v1117 = vmul.f32 %v1072, %v1109
    %v1118 = vmul.f32 %v1074, %v1110
    %v1119 = vmul.f32 %v1076, %v1111
    %v1120 = vmul.f32 %v1078, %v1112
    %v1121 = vmul.f32 %v1080, %v1113
    %v1122 = vmul.f32 %v1082, %v1114
    %1123 = vrot.lane.b32.xlu0 %v948, 64
    %v1124 = vpop.permute.xlu0 %1123
    %1125 = vrot.lane.b32.xlu0 %v950, 64
    %v1126 = vpop.permute.xlu0 %1125
    %v1130 = vsel %vm498, %v1115, 0
    %v1133 = vsel %vm498, %v1116, 0
    %v1136 = vsel %vm498, %v1117, 0
    %v1139 = vsel %vm498, %v1118, 0
    %v1142 = vsel %vm498, %v1119, 0
    %v1145 = vsel %vm498, %v1120, 0
    %v1148 = vsel %vm498, %v1121, 0
    %v1151 = vsel %vm498, %v1122, 0
    %1153 = vmatpush.msra.mxu0 0.0
    %1154 = vmatpush.msra.mxu0 0.0
    %1155 = vmatpush.msra.mxu0 0.0
    %1156 = vmatpush.msra.mxu0 0.0
    %1157 = vmatpush.msra.mxu0 0.0
    %1158 = vmatpush.msra.mxu0 0.0
    %1159 = vmatpush.msra.mxu0 0.0
    %1160 = vmatpush.msra.mxu0 0.0
    %1161 = vmatpush.msra.mxu0 0.0
    %1162 = vmatpush.msra.mxu0 0.0
    %1163 = vmatpush.msra.mxu0 0.0
    %1164 = vmatpush.msra.mxu0 0.0
    %1165 = vmatpush.msra.mxu0 0.0
    %1166 = vmatpush.msra.mxu0 0.0
    %1167 = vmatpush.msra.mxu0 %v1126
    %1168 = vmatpush.msra.mxu0 %v1124
    %1169 = vmatmul.f32.gmra.mxu0 %v1130
    %v1170 = vpop.f32.mrf.mxu0
    %v1171 = vadd.f32 0.0, %v1170
    %1172 = vmatmul.f32.gmra.mxu0 %v1133
    %v1173 = vpop.f32.mrf.mxu0
    %v1174 = vadd.f32 0.0, %v1173
    %1175 = vmatmul.f32.gmra.mxu0 %v1136
    %v1176 = vpop.f32.mrf.mxu0
    %v1177 = vadd.f32 0.0, %v1176
    %1178 = vmatmul.f32.gmra.mxu0 %v1139
    %v1179 = vpop.f32.mrf.mxu0
    %v1180 = vadd.f32 0.0, %v1179
    %1181 = vmatmul.f32.gmra.mxu0 %v1142
    %v1182 = vpop.f32.mrf.mxu0
    %v1183 = vadd.f32 0.0, %v1182
    %1184 = vmatmul.f32.gmra.mxu0 %v1145
    %v1185 = vpop.f32.mrf.mxu0
    %v1186 = vadd.f32 0.0, %v1185
    %1187 = vmatmul.f32.gmra.mxu0 %v1148
    %v1188 = vpop.f32.mrf.mxu0
    %v1189 = vadd.f32 0.0, %v1188
    %1190 = vmatmul.f32.gmra.mxu0 %v1151
    %v1191 = vpop.f32.mrf.mxu0
    %v1192 = vadd.f32 0.0, %v1191
    %1193 = vdwg.mxu0
    %v1194 = vmul.f32 %v1171, %v368
    %v1195 = vmul.f32 %v1174, %v369
    %v1196 = vmul.f32 %v1177, %v370
    %v1197 = vmul.f32 %v1180, %v371
    %v1198 = vmul.f32 %v1183, %v372
    %v1199 = vmul.f32 %v1186, %v373
    %v1200 = vmul.f32 %v1189, %v374
    %v1201 = vmul.f32 %v1192, %v375
    %v1202 = vadd.f32 %v1194, %v1196
    %v1203 = vadd.f32 %v1195, %v1197
    %v1204 = vadd.f32 %v1202, %v1198
    %v1205 = vadd.f32 %v1203, %v1199
    %v1206 = vadd.f32 %v1204, %v1200
    %v1207 = vadd.f32 %v1205, %v1201
    %v1208 = vpack.c.bf16 %v1207, %v1206
    %v1209 = vld [vmem:[%s915 + $0x4] sm:$0xf]
    %v1210 = vld [vmem:[%s915 + $0x10] sm:$0xf]
    %v1211 = vld [vmem:[%s915 + $0x1c] sm:$0xf]
    %v1212 = vld [vmem:[%s915 + $0x28] sm:$0xf]
    %v1213 = vld [vmem:[%s920 + $0x1] sm:$0x1]
    %v1214 = vperm.slane %v1213, 0
    %v1219 = vunpack.c.l.b16 %v1209
    %v1220 = vunpack.c.l.b16 %v1210
    %v1221 = vunpack.c.l.b16 %v1211
    %v1222 = vunpack.c.l.b16 %v1212
    %v1223 = vpack.c.b16 %v1220, %v1219
    %v1224 = vpack.c.b16 %v1222, %v1221
    %v1228 = vsel %vm397, %v1208, 0
    %1230 = vmatpush.bf16.msra.mxu0 0
    %1231 = vmatpush.bf16.msra.mxu0 0
    %1232 = vmatpush.bf16.msra.mxu0 0
    %1233 = vmatpush.bf16.msra.mxu0 0
    %1234 = vmatpush.bf16.msra.mxu0 0
    %1235 = vmatpush.bf16.msra.mxu0 0
    %1236 = vmatpush.bf16.msra.mxu0 %v1224
    %1237 = vmatpush.bf16.msra.mxu0 %v1223
    %1238 = vmatmul.bf16.gmra.mxu0 %v1228
    %v1239 = vpop.f32.mrf.mxu0
    %v1240 = vadd.f32 %v1214, %v1239
    %v1241 = vpop.f32.mrf.mxu0
    %v1242 = vadd.f32 %v1214, %v1241
    %1243 = vdwg.mxu0
    %v1244 = vadd.f32 %v912, %v1240
    %v1245 = vadd.f32 %v913, %v1242
    %v1246 = vld [vmem:[%s920 + $0x2] sm:$0x1]
    %v1247 = vld [vmem:[%s920 + $0x3] sm:$0x1]
    %v1248 = vsel %vm397, %v1244, 0.0
    %1249 = vadd.xlane.f32.xlu0 %v1248
    %v1250 = vpop.xlane.xlu0 %1249
    %v1251 = vsel %vm397, %v1245, 0.0
    %1252 = vadd.xlane.f32.xlu0 %v1251
    %v1253 = vpop.xlane.xlu0 %1252
    %v1254 = vmul.f32 %v1250, %v724
    %v1255 = vmul.f32 %v1253, %v724
    %v1256 = vsub.f32 %v1244, %v1254
    %v1257 = vsub.f32 %v1245, %v1255
    %v1258 = vmul.f32 %v1256, %v1256
    %v1259 = vmul.f32 %v1257, %v1257
    %v1260 = vsel %vm397, %v1258, 0.0
    %1261 = vadd.xlane.f32.xlu0 %v1260
    %v1262 = vpop.xlane.xlu0 %1261
    %v1263 = vsel %vm397, %v1259, 0.0
    %1264 = vadd.xlane.f32.xlu0 %v1263
    %v1265 = vpop.xlane.xlu0 %1264
    %v1266 = vmul.f32 %v1262, %v724
    %v1267 = vmul.f32 %v1265, %v724
    %v1268 = vadd.f32 %v1266, 1e-05
    %v1269 = vadd.f32 %v1267, 1e-05
    %v1270 = vrsqrt.pop %v1268
    %v1271 = vmul.f32 %v1270, %v1268
    %v1272 = vmul.f32 %v1271, %v1270
    %v1273 = vmul.f32 0.5, %v1272
    %v1274 = vsub.f32 1.5, %v1273
    %v1275 = vmul.f32 %v1270, %v1274
    %vm1276 = vweird.f32 %v1268
    %vm1277 = vweird.f32 %v1270
    %vm1278 = vmor %vm1276, %vm1277
    %v1279 = vsel %vm1278, %v1270, %v1275
    %v1280 = vrsqrt.pop %v1269
    %v1281 = vmul.f32 %v1280, %v1269
    %v1282 = vmul.f32 %v1281, %v1280
    %v1283 = vmul.f32 0.5, %v1282
    %v1284 = vsub.f32 1.5, %v1283
    %v1285 = vmul.f32 %v1280, %v1284
    %vm1286 = vweird.f32 %v1269
    %vm1287 = vweird.f32 %v1280
    %vm1288 = vmor %vm1286, %vm1287
    %v1289 = vsel %vm1288, %v1280, %v1285
    %v1290 = vmul.f32 %v1256, %v1279
    %v1291 = vmul.f32 %v1257, %v1289
    %v1292 = vperm.slane %v1246, 0
    %v1293 = vmul.f32 %v1290, %v1292
    %v1294 = vmul.f32 %v1291, %v1292
    %v1295 = vperm.slane %v1247, 0
    %v1296 = vadd.f32 %v1293, %v1295
    %v1297 = vadd.f32 %v1294, %v1295
    %v1298 = vpack.c.bf16 %v1297, %v1296
    %v1299 = vld [vmem:[%s915 + $0x8] sm:$0xf]
    %v1300 = vld [vmem:[%s915 + $0x14] sm:$0xf]
    %v1301 = vld [vmem:[%s915 + $0x20] sm:$0xf]
    %v1302 = vld [vmem:[%s915 + $0x2c] sm:$0xf]
    %v1303 = vld [vmem:[%s920 + $0x4] sm:$0x1]
    %v1304 = vperm.slane %v1303, 0
    %v1309 = vunpack.c.l.b16 %v1299
    %v1310 = vunpack.c.l.b16 %v1300
    %v1311 = vunpack.c.l.b16 %v1301
    %v1312 = vunpack.c.l.b16 %v1302
    %v1313 = vpack.c.b16 %v1310, %v1309
    %v1314 = vpack.c.b16 %v1312, %v1311
    %v1318 = vsel %vm397, %v1298, 0
    %1320 = vmatpush.bf16.msra.mxu0 0
    %1321 = vmatpush.bf16.msra.mxu0 0
    %1322 = vmatpush.bf16.msra.mxu0 0
    %1323 = vmatpush.bf16.msra.mxu0 0
    %1324 = vmatpush.bf16.msra.mxu0 0
    %1325 = vmatpush.bf16.msra.mxu0 0
    %1326 = vmatpush.bf16.msra.mxu0 %v1314
    %1327 = vmatpush.bf16.msra.mxu0 %v1313
    %1328 = vmatmul.bf16.gmra.mxu0 %v1318
    %v1329 = vpop.f32.mrf.mxu0
    %v1330 = vadd.f32 %v1304, %v1329
    %v1331 = vpop.f32.mrf.mxu0
    %v1332 = vadd.f32 %v1304, %v1331
    %1333 = vdwg.mxu0
    %v1334 = vmax.f32 %v1330, 0.0
    %v1335 = vmax.f32 %v1332, 0.0
    %v1336 = vpack.c.bf16 %v1335, %v1334
    %s1337 = scalar_lea.vmem %s4, 32
    %v1338 = vld [vmem:[%s1337] sm:$0xf]
    %v1339 = vld [vmem:[%s1337 + $0x4] sm:$0xf]
    %v1340 = vld [vmem:[%s1337 + $0x8] sm:$0xf]
    %v1341 = vld [vmem:[%s1337 + $0xc] sm:$0xf]
    %v1342 = vld [vmem:[%s1337 + $0x10] sm:$0xf]
    %v1343 = vld [vmem:[%s1337 + $0x14] sm:$0xf]
    %v1344 = vld [vmem:[%s1337 + $0x18] sm:$0xf]
    %v1345 = vld [vmem:[%s1337 + $0x1c] sm:$0xf]
    %v1346 = vld [vmem:[%s920 + $0x5] sm:$0x1]
    %v1347 = vperm.slane %v1346, 0
    %v1356 = vunpack.c.l.b16 %v1338
    %v1357 = vunpack.c.l.b16 %v1339
    %v1358 = vunpack.c.l.b16 %v1340
    %v1359 = vunpack.c.l.b16 %v1341
    %v1360 = vunpack.c.l.b16 %v1342
    %v1361 = vunpack.c.l.b16 %v1343
    %v1362 = vunpack.c.l.b16 %v1344
    %v1363 = vunpack.c.l.b16 %v1345
    %v1364 = vpack.c.b16 %v1357, %v1356
    %v1365 = vpack.c.b16 %v1359, %v1358
    %v1366 = vpack.c.b16 %v1361, %v1360
    %v1367 = vpack.c.b16 %v1363, %v1362
    %v1373 = vsel %vm842, %v1336, 0
    %1375 = vmatpush.bf16.msra.mxu0 0
    %1376 = vmatpush.bf16.msra.mxu0 0
    %1377 = vmatpush.bf16.msra.mxu0 0
    %1378 = vmatpush.bf16.msra.mxu0 0
    %1379 = vmatpush.bf16.msra.mxu0 %v1367
    %1380 = vmatpush.bf16.msra.mxu0 %v1366
    %1381 = vmatpush.bf16.msra.mxu0 %v1365
    %1382 = vmatpush.bf16.msra.mxu0 %v1364
    %1383 = vmatmul.bf16.gmra.mxu0 %v1373
    %v1384 = vpop.f32.mrf.mxu0
    %v1385 = vadd.f32 %v1347, %v1384
    %v1386 = vpop.f32.mrf.mxu0
    %v1387 = vadd.f32 %v1347, %v1386
    %1388 = vdwg.mxu0
    %v1389 = vadd.f32 %v1296, %v1385
    %v1390 = vadd.f32 %v1297, %v1387
    %v1391 = vld [vmem:[%s920 + $0x6] sm:$0x1]
    %v1392 = vld [vmem:[%s920 + $0x7] sm:$0x1]
    %v1393 = vsel %vm397, %v1389, 0.0
    %1394 = vadd.xlane.f32.xlu0 %v1393
    %v1395 = vpop.xlane.xlu0 %1394
    %v1396 = vsel %vm397, %v1390, 0.0
    %1397 = vadd.xlane.f32.xlu0 %v1396
    %v1398 = vpop.xlane.xlu0 %1397
    %v1399 = vmul.f32 %v1395, %v724
    %v1400 = vmul.f32 %v1398, %v724
    %v1401 = vsub.f32 %v1389, %v1399
    %v1402 = vsub.f32 %v1390, %v1400
    %v1403 = vmul.f32 %v1401, %v1401
    %v1404 = vmul.f32 %v1402, %v1402
    %v1405 = vsel %vm397, %v1403, 0.0
    %1406 = vadd.xlane.f32.xlu0 %v1405
    %v1407 = vpop.xlane.xlu0 %1406
    %v1408 = vsel %vm397, %v1404, 0.0
    %1409 = vadd.xlane.f32.xlu0 %v1408
    %v1410 = vpop.xlane.xlu0 %1409
    %v1411 = vmul.f32 %v1407, %v724
    %v1412 = vmul.f32 %v1410, %v724
    %v1413 = vadd.f32 %v1411, 1e-05
    %v1414 = vadd.f32 %v1412, 1e-05
    %v1415 = vrsqrt.pop %v1413
    %v1416 = vmul.f32 %v1415, %v1413
    %v1417 = vmul.f32 %v1416, %v1415
    %v1418 = vmul.f32 0.5, %v1417
    %v1419 = vsub.f32 1.5, %v1418
    %v1420 = vmul.f32 %v1415, %v1419
    %vm1421 = vweird.f32 %v1413
    %vm1422 = vweird.f32 %v1415
    %vm1423 = vmor %vm1421, %vm1422
    %v1424 = vsel %vm1423, %v1415, %v1420
    %v1425 = vrsqrt.pop %v1414
    %v1426 = vmul.f32 %v1425, %v1414
    %v1427 = vmul.f32 %v1426, %v1425
    %v1428 = vmul.f32 0.5, %v1427
    %v1429 = vsub.f32 1.5, %v1428
    %v1430 = vmul.f32 %v1425, %v1429
    %vm1431 = vweird.f32 %v1414
    %vm1432 = vweird.f32 %v1425
    %vm1433 = vmor %vm1431, %vm1432
    %v1434 = vsel %vm1433, %v1425, %v1430
    %v1435 = vmul.f32 %v1401, %v1424
    %v1436 = vmul.f32 %v1402, %v1434
    %v1437 = vperm.slane %v1391, 0
    %v1438 = vmul.f32 %v1435, %v1437
    %v1439 = vmul.f32 %v1436, %v1437
    %v1440 = vperm.slane %v1392, 0
    %v1441 = vadd.f32 %v1438, %v1440
    %v1442 = vadd.f32 %v1439, %v1440
    %v1443 = vpack.c.bf16 %v1442, %v1441
    %s1444 = scalar_lea.vmem %s3, 96
    %v1445 = vld [vmem:[%s1444] sm:$0xf]
    %v1446 = vld [vmem:[%s1444 + $0xc] sm:$0xf]
    %v1447 = vld [vmem:[%s1444 + $0x18] sm:$0xf]
    %v1448 = vld [vmem:[%s1444 + $0x24] sm:$0xf]
    %s1449 = scalar_lea.vmem [#allocation2], 16
    %v1450 = vld [vmem:[%s1449] sm:$0x1]
    %v1451 = vperm.slane %v1450, 0
    %v1456 = vunpack.c.l.b16 %v1445
    %v1457 = vunpack.c.l.b16 %v1446
    %v1458 = vunpack.c.l.b16 %v1447
    %v1459 = vunpack.c.l.b16 %v1448
    %v1460 = vpack.c.b16 %v1457, %v1456
    %v1461 = vpack.c.b16 %v1459, %v1458
    %v1465 = vsel %vm397, %v1443, 0
    %1467 = vmatpush.bf16.msra.mxu0 0
    %1468 = vmatpush.bf16.msra.mxu0 0
    %1469 = vmatpush.bf16.msra.mxu0 0
    %1470 = vmatpush.bf16.msra.mxu0 0
    %1471 = vmatpush.bf16.msra.mxu0 0
    %1472 = vmatpush.bf16.msra.mxu0 0
    %1473 = vmatpush.bf16.msra.mxu0 %v1461
    %1474 = vmatpush.bf16.msra.mxu0 %v1460
    %1475 = vmatmul.bf16.gmra.mxu0 %v1465
    %v1476 = vpop.f32.mrf.mxu0
    %v1477 = vadd.f32 %v1451, %v1476
    %v1478 = vpop.f32.mrf.mxu0
    %v1479 = vadd.f32 %v1451, %v1478
    %1480 = vdwg.mxu0
    %v1481 = vmul.f32 %v1477, %v368
    %v1482 = vmul.f32 %v1479, %v369
    %v1483 = vmul.f32 %v1477, %v370
    %v1484 = vmul.f32 %v1479, %v371
    %v1485 = vmul.f32 %v1477, %v372
    %v1486 = vmul.f32 %v1479, %v373
    %v1487 = vmul.f32 %v1477, %v374
    %v1488 = vmul.f32 %v1479, %v375
    %1491 = vrot.lane.b32.xlu0 %v1477, 96
    %v1492 = vpop.permute.xlu0 %1491
    %1493 = vrot.lane.b32.xlu0 %v1479, 96
    %v1494 = vpop.permute.xlu0 %1493
    %v1496 = vsel %vm397, %v1481, 0
    %v1499 = vsel %vm397, %v1482, 0
    %v1502 = vsel %vm397, %v1483, 0
    %v1505 = vsel %vm397, %v1484, 0
    %v1508 = vsel %vm397, %v1485, 0
    %v1511 = vsel %vm397, %v1486, 0
    %v1514 = vsel %vm397, %v1487, 0
    %v1517 = vsel %vm397, %v1488, 0
    %v1519 = vsel %vm397, %v1492, 0
    %v1521 = vsel %vm397, %v1494, 0
    %1523 = vmatpush.xpose.msra.mxu0 0.0
    %1524 = vmatpush.xpose.msra.mxu0 0.0
    %1525 = vmatpush.xpose.msra.mxu0 0.0
    %1526 = vmatpush.xpose.msra.mxu0 0.0
    %1527 = vmatpush.xpose.msra.mxu0 0.0
    %1528 = vmatpush.xpose.msra.mxu0 0.0
    %1529 = vmatpush.xpose.msra.mxu0 0.0
    %1530 = vmatpush.xpose.msra.mxu0 0.0
    %1531 = vmatpush.xpose.msra.mxu0 0.0
    %1532 = vmatpush.xpose.msra.mxu0 0.0
    %1533 = vmatpush.xpose.msra.mxu0 0.0
    %1534 = vmatpush.xpose.msra.mxu0 0.0
    %1535 = vmatpush.xpose.msra.mxu0 0.0
    %1536 = vmatpush.xpose.msra.mxu0 0.0
    %1537 = vmatpush.xpose.msra.mxu0 %v1521
    %1538 = vmatpush.xpose.msra.mxu0 %v1519
    %1539 = vmatmul.f32.gmra.mxu0 %v1496
    %v1540 = vpop.f32.mrf.mxu0
    %v1541 = vadd.f32 %v376, %v1540
    %1542 = vmatmul.f32.gmra.mxu0 %v1499
    %v1543 = vpop.f32.mrf.mxu0
    %v1544 = vadd.f32 %v377, %v1543
    %1545 = vmatmul.f32.gmra.mxu0 %v1502
    %v1546 = vpop.f32.mrf.mxu0
    %v1547 = vadd.f32 %v376, %v1546
    %1548 = vmatmul.f32.gmra.mxu0 %v1505
    %v1549 = vpop.f32.mrf.mxu0
    %v1550 = vadd.f32 %v377, %v1549
    %1551 = vmatmul.f32.gmra.mxu0 %v1508
    %v1552 = vpop.f32.mrf.mxu0
    %v1553 = vadd.f32 %v376, %v1552
    %1554 = vmatmul.f32.gmra.mxu0 %v1511
    %v1555 = vpop.f32.mrf.mxu0
    %v1556 = vadd.f32 %v377, %v1555
    %1557 = vmatmul.f32.gmra.mxu0 %v1514
    %v1558 = vpop.f32.mrf.mxu0
    %v1559 = vadd.f32 %v376, %v1558
    %1560 = vmatmul.f32.gmra.mxu0 %v1517
    %v1561 = vpop.f32.mrf.mxu0
    %v1562 = vadd.f32 %v377, %v1561
    %1563 = vdwg.mxu0
    %v1564 = vsel %vm498, %v1541, -inf
    %1565 = vmax.xlane.f32.xlu0 %v1564
    %v1566 = vpop.xlane.xlu0 %1565
    %v1567 = vsel %vm498, %v1544, -inf
    %1568 = vmax.xlane.f32.xlu0 %v1567
    %v1569 = vpop.xlane.xlu0 %1568
    %v1570 = vsel %vm498, %v1547, -inf
    %1571 = vmax.xlane.f32.xlu0 %v1570
    %v1572 = vpop.xlane.xlu0 %1571
    %v1573 = vsel %vm498, %v1550, -inf
    %1574 = vmax.xlane.f32.xlu0 %v1573
    %v1575 = vpop.xlane.xlu0 %1574
    %v1576 = vsel %vm498, %v1553, -inf
    %1577 = vmax.xlane.f32.xlu0 %v1576
    %v1578 = vpop.xlane.xlu0 %1577
    %v1579 = vsel %vm498, %v1556, -inf
    %1580 = vmax.xlane.f32.xlu0 %v1579
    %v1581 = vpop.xlane.xlu0 %1580
    %v1582 = vsel %vm498, %v1559, -inf
    %1583 = vmax.xlane.f32.xlu0 %v1582
    %v1584 = vpop.xlane.xlu0 %1583
    %v1585 = vsel %vm498, %v1562, -inf
    %1586 = vmax.xlane.f32.xlu0 %v1585
    %v1587 = vpop.xlane.xlu0 %1586
    %v1588 = vsub.f32 %v1541, %v1566
    %v1589 = vsub.f32 %v1544, %v1569
    %v1590 = vsub.f32 %v1547, %v1572
    %v1591 = vsub.f32 %v1550, %v1575
    %v1592 = vsub.f32 %v1553, %v1578
    %v1593 = vsub.f32 %v1556, %v1581
    %v1594 = vsub.f32 %v1559, %v1584
    %v1595 = vsub.f32 %v1562, %v1587
    %v1596 = vmul.f32 %v1588, 1.442695
    %v1597 = vpow.pop %v1596
    %v1598 = vmul.f32 %v1589, 1.442695
    %v1599 = vpow.pop %v1598
    %v1600 = vmul.f32 %v1590, 1.442695
    %v1601 = vpow.pop %v1600
    %v1602 = vmul.f32 %v1591, 1.442695
    %v1603 = vpow.pop %v1602
    %v1604 = vmul.f32 %v1592, 1.442695
    %v1605 = vpow.pop %v1604
    %v1606 = vmul.f32 %v1593, 1.442695
    %v1607 = vpow.pop %v1606
    %v1608 = vmul.f32 %v1594, 1.442695
    %v1609 = vpow.pop %v1608
    %v1610 = vmul.f32 %v1595, 1.442695
    %v1611 = vpow.pop %v1610
    %v1612 = vsel %vm498, %v1597, 0.0
    %1613 = vadd.xlane.f32.xlu0 %v1612
    %v1614 = vpop.xlane.xlu0 %1613
    %v1615 = vsel %vm498, %v1599, 0.0
    %1616 = vadd.xlane.f32.xlu0 %v1615
    %v1617 = vpop.xlane.xlu0 %1616
    %v1618 = vsel %vm498, %v1601, 0.0
    %1619 = vadd.xlane.f32.xlu0 %v1618
    %v1620 = vpop.xlane.xlu0 %1619
    %v1621 = vsel %vm498, %v1603, 0.0
    %1622 = vadd.xlane.f32.xlu0 %v1621
    %v1623 = vpop.xlane.xlu0 %1622
    %v1624 = vsel %vm498, %v1605, 0.0
    %1625 = vadd.xlane.f32.xlu0 %v1624
    %v1626 = vpop.xlane.xlu0 %1625
    %v1627 = vsel %vm498, %v1607, 0.0
    %1628 = vadd.xlane.f32.xlu0 %v1627
    %v1629 = vpop.xlane.xlu0 %1628
    %v1630 = vsel %vm498, %v1609, 0.0
    %1631 = vadd.xlane.f32.xlu0 %v1630
    %v1632 = vpop.xlane.xlu0 %1631
    %v1633 = vsel %vm498, %v1611, 0.0
    %1634 = vadd.xlane.f32.xlu0 %v1633
    %v1635 = vpop.xlane.xlu0 %1634
    %v1636 = vrcp.pop %v1614
    %v1637 = vrcp.pop %v1617
    %v1638 = vrcp.pop %v1620
    %v1639 = vrcp.pop %v1623
    %v1640 = vrcp.pop %v1626
    %v1641 = vrcp.pop %v1629
    %v1642 = vrcp.pop %v1632
    %v1643 = vrcp.pop %v1635
    %v1644 = vmul.f32 %v1597, %v1636
    %v1645 = vmul.f32 %v1599, %v1637
    %v1646 = vmul.f32 %v1601, %v1638
    %v1647 = vmul.f32 %v1603, %v1639
    %v1648 = vmul.f32 %v1605, %v1640
    %v1649 = vmul.f32 %v1607, %v1641
    %v1650 = vmul.f32 %v1609, %v1642
    %v1651 = vmul.f32 %v1611, %v1643
    %1652 = vrot.lane.b32.xlu0 %v1477, 64
    %v1653 = vpop.permute.xlu0 %1652
    %1654 = vrot.lane.b32.xlu0 %v1479, 64
    %v1655 = vpop.permute.xlu0 %1654
    %v1659 = vsel %vm498, %v1644, 0
    %v1662 = vsel %vm498, %v1645, 0
    %v1665 = vsel %vm498, %v1646, 0
    %v1668 = vsel %vm498, %v1647, 0
    %v1671 = vsel %vm498, %v1648, 0
    %v1674 = vsel %vm498, %v1649, 0
    %v1677 = vsel %vm498, %v1650, 0
    %v1680 = vsel %vm498, %v1651, 0
    %1682 = vmatpush.msra.mxu0 0.0
    %1683 = vmatpush.msra.mxu0 0.0
    %1684 = vmatpush.msra.mxu0 0.0
    %1685 = vmatpush.msra.mxu0 0.0
    %1686 = vmatpush.msra.mxu0 0.0
    %1687 = vmatpush.msra.mxu0 0.0
    %1688 = vmatpush.msra.mxu0 0.0
    %1689 = vmatpush.msra.mxu0 0.0
    %1690 = vmatpush.msra.mxu0 0.0
    %1691 = vmatpush.msra.mxu0 0.0
    %1692 = vmatpush.msra.mxu0 0.0
    %1693 = vmatpush.msra.mxu0 0.0
    %1694 = vmatpush.msra.mxu0 0.0
    %1695 = vmatpush.msra.mxu0 0.0
    %1696 = vmatpush.msra.mxu0 %v1655
    %1697 = vmatpush.msra.mxu0 %v1653
    %1698 = vmatmul.f32.gmra.mxu0 %v1659
    %v1699 = vpop.f32.mrf.mxu0
    %v1700 = vadd.f32 0.0, %v1699
    %1701 = vmatmul.f32.gmra.mxu0 %v1662
    %v1702 = vpop.f32.mrf.mxu0
    %v1703 = vadd.f32 0.0, %v1702
    %1704 = vmatmul.f32.gmra.mxu0 %v1665
    %v1705 = vpop.f32.mrf.mxu0
    %v1706 = vadd.f32 0.0, %v1705
    %1707 = vmatmul.f32.gmra.mxu0 %v1668
    %v1708 = vpop.f32.mrf.mxu0
    %v1709 = vadd.f32 0.0, %v1708
    %1710 = vmatmul.f32.gmra.mxu0 %v1671
    %v1711 = vpop.f32.mrf.mxu0
    %v1712 = vadd.f32 0.0, %v1711
    %1713 = vmatmul.f32.gmra.mxu0 %v1674
    %v1714 = vpop.f32.mrf.mxu0
    %v1715 = vadd.f32 0.0, %v1714
    %1716 = vmatmul.f32.gmra.mxu0 %v1677
    %v1717 = vpop.f32.mrf.mxu0
    %v1718 = vadd.f32 0.0, %v1717
    %1719 = vmatmul.f32.gmra.mxu0 %v1680
    %v1720 = vpop.f32.mrf.mxu0
    %v1721 = vadd.f32 0.0, %v1720
    %1722 = vdwg.mxu0
    %v1723 = vmul.f32 %v1700, %v368
    %v1724 = vmul.f32 %v1703, %v369
    %v1725 = vmul.f32 %v1706, %v370
    %v1726 = vmul.f32 %v1709, %v371
    %v1727 = vmul.f32 %v1712, %v372
    %v1728 = vmul.f32 %v1715, %v373
    %v1729 = vmul.f32 %v1718, %v374
    %v1730 = vmul.f32 %v1721, %v375
    %v1731 = vadd.f32 %v1723, %v1725
    %v1732 = vadd.f32 %v1724, %v1726
    %v1733 = vadd.f32 %v1731, %v1727
    %v1734 = vadd.f32 %v1732, %v1728
    %v1735 = vadd.f32 %v1733, %v1729
    %v1736 = vadd.f32 %v1734, %v1730
    %v1737 = vpack.c.bf16 %v1736, %v1735
    %v1738 = vld [vmem:[%s1444 + $0x4] sm:$0xf]
    %v1739 = vld [vmem:[%s1444 + $0x10] sm:$0xf]
    %v1740 = vld [vmem:[%s1444 + $0x1c] sm:$0xf]
    %v1741 = vld [vmem:[%s1444 + $0x28] sm:$0xf]
    %v1742 = vld [vmem:[%s1449 + $0x1] sm:$0x1]
    %v1743 = vperm.slane %v1742, 0
    %v1748 = vunpack.c.l.b16 %v1738
    %v1749 = vunpack.c.l.b16 %v1739
    %v1750 = vunpack.c.l.b16 %v1740
    %v1751 = vunpack.c.l.b16 %v1741
    %v1752 = vpack.c.b16 %v1749, %v1748
    %v1753 = vpack.c.b16 %v1751, %v1750
    %v1757 = vsel %vm397, %v1737, 0
    %1759 = vmatpush.bf16.msra.mxu0 0
    %1760 = vmatpush.bf16.msra.mxu0 0
    %1761 = vmatpush.bf16.msra.mxu0 0
    %1762 = vmatpush.bf16.msra.mxu0 0
    %1763 = vmatpush.bf16.msra.mxu0 0
    %1764 = vmatpush.bf16.msra.mxu0 0
    %1765 = vmatpush.bf16.msra.mxu0 %v1753
    %1766 = vmatpush.bf16.msra.mxu0 %v1752
    %1767 = vmatmul.bf16.gmra.mxu0 %v1757
    %v1768 = vpop.f32.mrf.mxu0
    %v1769 = vadd.f32 %v1743, %v1768
    %v1770 = vpop.f32.mrf.mxu0
    %v1771 = vadd.f32 %v1743, %v1770
    %1772 = vdwg.mxu0
    %v1773 = vadd.f32 %v1441, %v1769
    %v1774 = vadd.f32 %v1442, %v1771
    %v1775 = vld [vmem:[%s1449 + $0x2] sm:$0x1]
    %v1776 = vld [vmem:[%s1449 + $0x3] sm:$0x1]
    %v1777 = vsel %vm397, %v1773, 0.0
    %1778 = vadd.xlane.f32.xlu0 %v1777
    %v1779 = vpop.xlane.xlu0 %1778
    %v1780 = vsel %vm397, %v1774, 0.0
    %1781 = vadd.xlane.f32.xlu0 %v1780
    %v1782 = vpop.xlane.xlu0 %1781
    %v1783 = vmul.f32 %v1779, %v724
    %v1784 = vmul.f32 %v1782, %v724
    %v1785 = vsub.f32 %v1773, %v1783
    %v1786 = vsub.f32 %v1774, %v1784
    %v1787 = vmul.f32 %v1785, %v1785
    %v1788 = vmul.f32 %v1786, %v1786
    %v1789 = vsel %vm397, %v1787, 0.0
    %1790 = vadd.xlane.f32.xlu0 %v1789
    %v1791 = vpop.xlane.xlu0 %1790
    %v1792 = vsel %vm397, %v1788, 0.0
    %1793 = vadd.xlane.f32.xlu0 %v1792
    %v1794 = vpop.xlane.xlu0 %1793
    %v1795 = vmul.f32 %v1791, %v724
    %v1796 = vmul.f32 %v1794, %v724
    %v1797 = vadd.f32 %v1795, 1e-05
    %v1798 = vadd.f32 %v1796, 1e-05
    %v1799 = vrsqrt.pop %v1797
    %v1800 = vmul.f32 %v1799, %v1797
    %v1801 = vmul.f32 %v1800, %v1799
    %v1802 = vmul.f32 0.5, %v1801
    %v1803 = vsub.f32 1.5, %v1802
    %v1804 = vmul.f32 %v1799, %v1803
    %vm1805 = vweird.f32 %v1797
    %vm1806 = vweird.f32 %v1799
    %vm1807 = vmor %vm1805, %vm1806
    %v1808 = vsel %vm1807, %v1799, %v1804
    %v1809 = vrsqrt.pop %v1798
    %v1810 = vmul.f32 %v1809, %v1798
    %v1811 = vmul.f32 %v1810, %v1809
    %v1812 = vmul.f32 0.5, %v1811
    %v1813 = vsub.f32 1.5, %v1812
    %v1814 = vmul.f32 %v1809, %v1813
    %vm1815 = vweird.f32 %v1798
    %vm1816 = vweird.f32 %v1809
    %vm1817 = vmor %vm1815, %vm1816
    %v1818 = vsel %vm1817, %v1809, %v1814
    %v1819 = vmul.f32 %v1785, %v1808
    %v1820 = vmul.f32 %v1786, %v1818
    %v1821 = vperm.slane %v1775, 0
    %v1822 = vmul.f32 %v1819, %v1821
    %v1823 = vmul.f32 %v1820, %v1821
    %v1824 = vperm.slane %v1776, 0
    %v1825 = vadd.f32 %v1822, %v1824
    %v1826 = vadd.f32 %v1823, %v1824
    %v1827 = vpack.c.bf16 %v1826, %v1825
    %v1828 = vld [vmem:[%s1444 + $0x8] sm:$0xf]
    %v1829 = vld [vmem:[%s1444 + $0x14] sm:$0xf]
    %v1830 = vld [vmem:[%s1444 + $0x20] sm:$0xf]
    %v1831 = vld [vmem:[%s1444 + $0x2c] sm:$0xf]
    %v1832 = vld [vmem:[%s1449 + $0x4] sm:$0x1]
    %v1833 = vperm.slane %v1832, 0
    %v1838 = vunpack.c.l.b16 %v1828
    %v1839 = vunpack.c.l.b16 %v1829
    %v1840 = vunpack.c.l.b16 %v1830
    %v1841 = vunpack.c.l.b16 %v1831
    %v1842 = vpack.c.b16 %v1839, %v1838
    %v1843 = vpack.c.b16 %v1841, %v1840
    %v1847 = vsel %vm397, %v1827, 0
    %1849 = vmatpush.bf16.msra.mxu0 0
    %1850 = vmatpush.bf16.msra.mxu0 0
    %1851 = vmatpush.bf16.msra.mxu0 0
    %1852 = vmatpush.bf16.msra.mxu0 0
    %1853 = vmatpush.bf16.msra.mxu0 0
    %1854 = vmatpush.bf16.msra.mxu0 0
    %1855 = vmatpush.bf16.msra.mxu0 %v1843
    %1856 = vmatpush.bf16.msra.mxu0 %v1842
    %1857 = vmatmul.bf16.gmra.mxu0 %v1847
    %v1858 = vpop.f32.mrf.mxu0
    %v1859 = vadd.f32 %v1833, %v1858
    %v1860 = vpop.f32.mrf.mxu0
    %v1861 = vadd.f32 %v1833, %v1860
    %1862 = vdwg.mxu0
    %v1863 = vmax.f32 %v1859, 0.0
    %v1864 = vmax.f32 %v1861, 0.0
    %v1865 = vpack.c.bf16 %v1864, %v1863
    %s1866 = scalar_lea.vmem %s4, 64
    %v1867 = vld [vmem:[%s1866] sm:$0xf]
    %v1868 = vld [vmem:[%s1866 + $0x4] sm:$0xf]
    %v1869 = vld [vmem:[%s1866 + $0x8] sm:$0xf]
    %v1870 = vld [vmem:[%s1866 + $0xc] sm:$0xf]
    %v1871 = vld [vmem:[%s1866 + $0x10] sm:$0xf]
    %v1872 = vld [vmem:[%s1866 + $0x14] sm:$0xf]
    %v1873 = vld [vmem:[%s1866 + $0x18] sm:$0xf]
    %v1874 = vld [vmem:[%s1866 + $0x1c] sm:$0xf]
    %v1875 = vld [vmem:[%s1449 + $0x5] sm:$0x1]
    %v1876 = vperm.slane %v1875, 0
    %v1885 = vunpack.c.l.b16 %v1867
    %v1886 = vunpack.c.l.b16 %v1868
    %v1887 = vunpack.c.l.b16 %v1869
    %v1888 = vunpack.c.l.b16 %v1870
    %v1889 = vunpack.c.l.b16 %v1871
    %v1890 = vunpack.c.l.b16 %v1872
    %v1891 = vunpack.c.l.b16 %v1873
    %v1892 = vunpack.c.l.b16 %v1874
    %v1893 = vpack.c.b16 %v1886, %v1885
    %v1894 = vpack.c.b16 %v1888, %v1887
    %v1895 = vpack.c.b16 %v1890, %v1889
    %v1896 = vpack.c.b16 %v1892, %v1891
    %v1902 = vsel %vm842, %v1865, 0
    %1904 = vmatpush.bf16.msra.mxu0 0
    %1905 = vmatpush.bf16.msra.mxu0 0
    %1906 = vmatpush.bf16.msra.mxu0 0
    %1907 = vmatpush.bf16.msra.mxu0 0
    %1908 = vmatpush.bf16.msra.mxu0 %v1896
    %1909 = vmatpush.bf16.msra.mxu0 %v1895
    %1910 = vmatpush.bf16.msra.mxu0 %v1894
    %1911 = vmatpush.bf16.msra.mxu0 %v1893
    %1912 = vmatmul.bf16.gmra.mxu0 %v1902
    %v1913 = vpop.f32.mrf.mxu0
    %v1914 = vadd.f32 %v1876, %v1913
    %v1915 = vpop.f32.mrf.mxu0
    %v1916 = vadd.f32 %v1876, %v1915
    %1917 = vdwg.mxu0
    %v1918 = vadd.f32 %v1825, %v1914
    %v1919 = vadd.f32 %v1826, %v1916
    %v1920 = vld [vmem:[%s1449 + $0x6] sm:$0x1]
    %v1921 = vld [vmem:[%s1449 + $0x7] sm:$0x1]
    %v1922 = vsel %vm397, %v1918, 0.0
    %1923 = vadd.xlane.f32.xlu0 %v1922
    %v1924 = vpop.xlane.xlu0 %1923
    %v1925 = vsel %vm397, %v1919, 0.0
    %1926 = vadd.xlane.f32.xlu0 %v1925
    %v1927 = vpop.xlane.xlu0 %1926
    %v1928 = vmul.f32 %v1924, %v724
    %v1929 = vmul.f32 %v1927, %v724
    %v1930 = vsub.f32 %v1918, %v1928
    %v1931 = vsub.f32 %v1919, %v1929
    %v1932 = vmul.f32 %v1930, %v1930
    %v1933 = vmul.f32 %v1931, %v1931
    %v1934 = vsel %vm397, %v1932, 0.0
    %1935 = vadd.xlane.f32.xlu0 %v1934
    %v1936 = vpop.xlane.xlu0 %1935
    %v1937 = vsel %vm397, %v1933, 0.0
    %1938 = vadd.xlane.f32.xlu0 %v1937
    %v1939 = vpop.xlane.xlu0 %1938
    %v1940 = vmul.f32 %v1936, %v724
    %v1941 = vmul.f32 %v1939, %v724
    %v1942 = vadd.f32 %v1940, 1e-05
    %v1943 = vadd.f32 %v1941, 1e-05
    %v1944 = vrsqrt.pop %v1942
    %v1945 = vmul.f32 %v1944, %v1942
    %v1946 = vmul.f32 %v1945, %v1944
    %v1947 = vmul.f32 0.5, %v1946
    %v1948 = vsub.f32 1.5, %v1947
    %v1949 = vmul.f32 %v1944, %v1948
    %vm1950 = vweird.f32 %v1942
    %vm1951 = vweird.f32 %v1944
    %vm1952 = vmor %vm1950, %vm1951
    %v1953 = vsel %vm1952, %v1944, %v1949
    %v1954 = vrsqrt.pop %v1943
    %v1955 = vmul.f32 %v1954, %v1943
    %v1956 = vmul.f32 %v1955, %v1954
    %v1957 = vmul.f32 0.5, %v1956
    %v1958 = vsub.f32 1.5, %v1957
    %v1959 = vmul.f32 %v1954, %v1958
    %vm1960 = vweird.f32 %v1943
    %vm1961 = vweird.f32 %v1954
    %vm1962 = vmor %vm1960, %vm1961
    %v1963 = vsel %vm1962, %v1954, %v1959
    %v1964 = vmul.f32 %v1930, %v1953
    %v1965 = vmul.f32 %v1931, %v1963
    %v1966 = vperm.slane %v1920, 0
    %v1967 = vmul.f32 %v1964, %v1966
    %v1968 = vmul.f32 %v1965, %v1966
    %v1969 = vperm.slane %v1921, 0
    %v1970 = vadd.f32 %v1967, %v1969
    %v1971 = vadd.f32 %v1968, %v1969
    %v1972 = vpack.c.bf16 %v1971, %v1970
    %s1973 = scalar_lea.vmem %s3, 144
    %v1974 = vld [vmem:[%s1973] sm:$0xf]
    %v1975 = vld [vmem:[%s1973 + $0xc] sm:$0xf]
    %v1976 = vld [vmem:[%s1973 + $0x18] sm:$0xf]
    %v1977 = vld [vmem:[%s1973 + $0x24] sm:$0xf]
    %s1978 = scalar_lea.vmem [#allocation2], 24
    %v1979 = vld [vmem:[%s1978] sm:$0x1]
    %v1980 = vperm.slane %v1979, 0
    %v1985 = vunpack.c.l.b16 %v1974
    %v1986 = vunpack.c.l.b16 %v1975
    %v1987 = vunpack.c.l.b16 %v1976
    %v1988 = vunpack.c.l.b16 %v1977
    %v1989 = vpack.c.b16 %v1986, %v1985
    %v1990 = vpack.c.b16 %v1988, %v1987
    %v1994 = vsel %vm397, %v1972, 0
    %1996 = vmatpush.bf16.msra.mxu0 0
    %1997 = vmatpush.bf16.msra.mxu0 0
    %1998 = vmatpush.bf16.msra.mxu0 0
    %1999 = vmatpush.bf16.msra.mxu0 0
    %2000 = vmatpush.bf16.msra.mxu0 0
    %2001 = vmatpush.bf16.msra.mxu0 0
    %2002 = vmatpush.bf16.msra.mxu0 %v1990
    %2003 = vmatpush.bf16.msra.mxu0 %v1989
    %2004 = vmatmul.bf16.gmra.mxu0 %v1994
    %v2005 = vpop.f32.mrf.mxu0
    %v2006 = vadd.f32 %v1980, %v2005
    %v2007 = vpop.f32.mrf.mxu0
    %v2008 = vadd.f32 %v1980, %v2007
    %2009 = vdwg.mxu0
    %v2010 = vmul.f32 %v2006, %v368
    %v2011 = vmul.f32 %v2008, %v369
    %v2012 = vmul.f32 %v2006, %v370
    %v2013 = vmul.f32 %v2008, %v371
    %v2014 = vmul.f32 %v2006, %v372
    %v2015 = vmul.f32 %v2008, %v373
    %v2016 = vmul.f32 %v2006, %v374
    %v2017 = vmul.f32 %v2008, %v375
    %2020 = vrot.lane.b32.xlu0 %v2006, 96
    %v2021 = vpop.permute.xlu0 %2020
    %2022 = vrot.lane.b32.xlu0 %v2008, 96
    %v2023 = vpop.permute.xlu0 %2022
    %v2025 = vsel %vm397, %v2010, 0
    %v2028 = vsel %vm397, %v2011, 0
    %v2031 = vsel %vm397, %v2012, 0
    %v2034 = vsel %vm397, %v2013, 0
    %v2037 = vsel %vm397, %v2014, 0
    %v2040 = vsel %vm397, %v2015, 0
    %v2043 = vsel %vm397, %v2016, 0
    %v2046 = vsel %vm397, %v2017, 0
    %v2048 = vsel %vm397, %v2021, 0
    %v2050 = vsel %vm397, %v2023, 0
    %2052 = vmatpush.xpose.msra.mxu0 0.0
    %2053 = vmatpush.xpose.msra.mxu0 0.0
    %2054 = vmatpush.xpose.msra.mxu0 0.0
    %2055 = vmatpush.xpose.msra.mxu0 0.0
    %2056 = vmatpush.xpose.msra.mxu0 0.0
    %2057 = vmatpush.xpose.msra.mxu0 0.0
    %2058 = vmatpush.xpose.msra.mxu0 0.0
    %2059 = vmatpush.xpose.msra.mxu0 0.0
    %2060 = vmatpush.xpose.msra.mxu0 0.0
    %2061 = vmatpush.xpose.msra.mxu0 0.0
    %2062 = vmatpush.xpose.msra.mxu0 0.0
    %2063 = vmatpush.xpose.msra.mxu0 0.0
    %2064 = vmatpush.xpose.msra.mxu0 0.0
    %2065 = vmatpush.xpose.msra.mxu0 0.0
    %2066 = vmatpush.xpose.msra.mxu0 %v2050
    %2067 = vmatpush.xpose.msra.mxu0 %v2048
    %2068 = vmatmul.f32.gmra.mxu0 %v2025
    %v2069 = vpop.f32.mrf.mxu0
    %v2070 = vadd.f32 %v376, %v2069
    %2071 = vmatmul.f32.gmra.mxu0 %v2028
    %v2072 = vpop.f32.mrf.mxu0
    %v2073 = vadd.f32 %v377, %v2072
    %2074 = vmatmul.f32.gmra.mxu0 %v2031
    %v2075 = vpop.f32.mrf.mxu0
    %v2076 = vadd.f32 %v376, %v2075
    %2077 = vmatmul.f32.gmra.mxu0 %v2034
    %v2078 = vpop.f32.mrf.mxu0
    %v2079 = vadd.f32 %v377, %v2078
    %2080 = vmatmul.f32.gmra.mxu0 %v2037
    %v2081 = vpop.f32.mrf.mxu0
    %v2082 = vadd.f32 %v376, %v2081
    %2083 = vmatmul.f32.gmra.mxu0 %v2040
    %v2084 = vpop.f32.mrf.mxu0
    %v2085 = vadd.f32 %v377, %v2084
    %2086 = vmatmul.f32.gmra.mxu0 %v2043
    %v2087 = vpop.f32.mrf.mxu0
    %v2088 = vadd.f32 %v376, %v2087
    %2089 = vmatmul.f32.gmra.mxu0 %v2046
    %v2090 = vpop.f32.mrf.mxu0
    %v2091 = vadd.f32 %v377, %v2090
    %2092 = vdwg.mxu0
    %v2093 = vsel %vm498, %v2070, -inf
    %2094 = vmax.xlane.f32.xlu0 %v2093
    %v2095 = vpop.xlane.xlu0 %2094
    %v2096 = vsel %vm498, %v2073, -inf
    %2097 = vmax.xlane.f32.xlu0 %v2096
    %v2098 = vpop.xlane.xlu0 %2097
    %v2099 = vsel %vm498, %v2076, -inf
    %2100 = vmax.xlane.f32.xlu0 %v2099
    %v2101 = vpop.xlane.xlu0 %2100
    %v2102 = vsel %vm498, %v2079, -inf
    %2103 = vmax.xlane.f32.xlu0 %v2102
    %v2104 = vpop.xlane.xlu0 %2103
    %v2105 = vsel %vm498, %v2082, -inf
    %2106 = vmax.xlane.f32.xlu0 %v2105
    %v2107 = vpop.xlane.xlu0 %2106
    %v2108 = vsel %vm498, %v2085, -inf
    %2109 = vmax.xlane.f32.xlu0 %v2108
    %v2110 = vpop.xlane.xlu0 %2109
    %v2111 = vsel %vm498, %v2088, -inf
    %2112 = vmax.xlane.f32.xlu0 %v2111
    %v2113 = vpop.xlane.xlu0 %2112
    %v2114 = vsel %vm498, %v2091, -inf
    %2115 = vmax.xlane.f32.xlu0 %v2114
    %v2116 = vpop.xlane.xlu0 %2115
    %v2117 = vsub.f32 %v2070, %v2095
    %v2118 = vsub.f32 %v2073, %v2098
    %v2119 = vsub.f32 %v2076, %v2101
    %v2120 = vsub.f32 %v2079, %v2104
    %v2121 = vsub.f32 %v2082, %v2107
    %v2122 = vsub.f32 %v2085, %v2110
    %v2123 = vsub.f32 %v2088, %v2113
    %v2124 = vsub.f32 %v2091, %v2116
    %v2125 = vmul.f32 %v2117, 1.442695
    %v2126 = vpow.pop %v2125
    %v2127 = vmul.f32 %v2118, 1.442695
    %v2128 = vpow.pop %v2127
    %v2129 = vmul.f32 %v2119, 1.442695
    %v2130 = vpow.pop %v2129
    %v2131 = vmul.f32 %v2120, 1.442695
    %v2132 = vpow.pop %v2131
    %v2133 = vmul.f32 %v2121, 1.442695
    %v2134 = vpow.pop %v2133
    %v2135 = vmul.f32 %v2122, 1.442695
    %v2136 = vpow.pop %v2135
    %v2137 = vmul.f32 %v2123, 1.442695
    %v2138 = vpow.pop %v2137
    %v2139 = vmul.f32 %v2124, 1.442695
    %v2140 = vpow.pop %v2139
    %v2141 = vsel %vm498, %v2126, 0.0
    %2142 = vadd.xlane.f32.xlu0 %v2141
    %v2143 = vpop.xlane.xlu0 %2142
    %v2144 = vsel %vm498, %v2128, 0.0
    %2145 = vadd.xlane.f32.xlu0 %v2144
    %v2146 = vpop.xlane.xlu0 %2145
    %v2147 = vsel %vm498, %v2130, 0.0
    %2148 = vadd.xlane.f32.xlu0 %v2147
    %v2149 = vpop.xlane.xlu0 %2148
    %v2150 = vsel %vm498, %v2132, 0.0
    %2151 = vadd.xlane.f32.xlu0 %v2150
    %v2152 = vpop.xlane.xlu0 %2151
    %v2153 = vsel %vm498, %v2134, 0.0
    %2154 = vadd.xlane.f32.xlu0 %v2153
    %v2155 = vpop.xlane.xlu0 %2154
    %v2156 = vsel %vm498, %v2136, 0.0
    %2157 = vadd.xlane.f32.xlu0 %v2156
    %v2158 = vpop.xlane.xlu0 %2157
    %v2159 = vsel %vm498, %v2138, 0.0
    %2160 = vadd.xlane.f32.xlu0 %v2159
    %v2161 = vpop.xlane.xlu0 %2160
    %v2162 = vsel %vm498, %v2140, 0.0
    %2163 = vadd.xlane.f32.xlu0 %v2162
    %v2164 = vpop.xlane.xlu0 %2163
    %v2165 = vrcp.pop %v2143
    %v2166 = vrcp.pop %v2146
    %v2167 = vrcp.pop %v2149
    %v2168 = vrcp.pop %v2152
    %v2169 = vrcp.pop %v2155
    %v2170 = vrcp.pop %v2158
    %v2171 = vrcp.pop %v2161
    %v2172 = vrcp.pop %v2164
    %v2173 = vmul.f32 %v2126, %v2165
    %v2174 = vmul.f32 %v2128, %v2166
    %v2175 = vmul.f32 %v2130, %v2167
    %v2176 = vmul.f32 %v2132, %v2168
    %v2177 = vmul.f32 %v2134, %v2169
    %v2178 = vmul.f32 %v2136, %v2170
    %v2179 = vmul.f32 %v2138, %v2171
    %v2180 = vmul.f32 %v2140, %v2172
    %2181 = vrot.lane.b32.xlu0 %v2006, 64
    %v2182 = vpop.permute.xlu0 %2181
    %2183 = vrot.lane.b32.xlu0 %v2008, 64
    %v2184 = vpop.permute.xlu0 %2183
    %v2188 = vsel %vm498, %v2173, 0
    %v2191 = vsel %vm498, %v2174, 0
    %v2194 = vsel %vm498, %v2175, 0
    %v2197 = vsel %vm498, %v2176, 0
    %v2200 = vsel %vm498, %v2177, 0
    %v2203 = vsel %vm498, %v2178, 0
    %v2206 = vsel %vm498, %v2179, 0
    %v2209 = vsel %vm498, %v2180, 0
    %2211 = vmatpush.msra.mxu0 0.0
    %2212 = vmatpush.msra.mxu0 0.0
    %2213 = vmatpush.msra.mxu0 0.0
    %2214 = vmatpush.msra.mxu0 0.0
    %2215 = vmatpush.msra.mxu0 0.0
    %2216 = vmatpush.msra.mxu0 0.0
    %2217 = vmatpush.msra.mxu0 0.0
    %2218 = vmatpush.msra.mxu0 0.0
    %2219 = vmatpush.msra.mxu0 0.0
    %2220 = vmatpush.msra.mxu0 0.0
    %2221 = vmatpush.msra.mxu0 0.0
    %2222 = vmatpush.msra.mxu0 0.0
    %2223 = vmatpush.msra.mxu0 0.0
    %2224 = vmatpush.msra.mxu0 0.0
    %2225 = vmatpush.msra.mxu0 %v2184
    %2226 = vmatpush.msra.mxu0 %v2182
    %2227 = vmatmul.f32.gmra.mxu0 %v2188
    %v2228 = vpop.f32.mrf.mxu0
    %v2229 = vadd.f32 0.0, %v2228
    %2230 = vmatmul.f32.gmra.mxu0 %v2191
    %v2231 = vpop.f32.mrf.mxu0
    %v2232 = vadd.f32 0.0, %v2231
    %2233 = vmatmul.f32.gmra.mxu0 %v2194
    %v2234 = vpop.f32.mrf.mxu0
    %v2235 = vadd.f32 0.0, %v2234
    %2236 = vmatmul.f32.gmra.mxu0 %v2197
    %v2237 = vpop.f32.mrf.mxu0
    %v2238 = vadd.f32 0.0, %v2237
    %2239 = vmatmul.f32.gmra.mxu0 %v2200
    %v2240 = vpop.f32.mrf.mxu0
    %v2241 = vadd.f32 0.0, %v2240
    %2242 = vmatmul.f32.gmra.mxu0 %v2203
    %v2243 = vpop.f32.mrf.mxu0
    %v2244 = vadd.f32 0.0, %v2243
    %2245 = vmatmul.f32.gmra.mxu0 %v2206
    %v2246 = vpop.f32.mrf.mxu0
    %v2247 = vadd.f32 0.0, %v2246
    %2248 = vmatmul.f32.gmra.mxu0 %v2209
    %v2249 = vpop.f32.mrf.mxu0
    %v2250 = vadd.f32 0.0, %v2249
    %2251 = vdwg.mxu0
    %v2252 = vmul.f32 %v2229, %v368
    %v2253 = vmul.f32 %v2232, %v369
    %v2254 = vmul.f32 %v2235, %v370
    %v2255 = vmul.f32 %v2238, %v371
    %v2256 = vmul.f32 %v2241, %v372
    %v2257 = vmul.f32 %v2244, %v373
    %v2258 = vmul.f32 %v2247, %v374
    %v2259 = vmul.f32 %v2250, %v375
    %v2260 = vadd.f32 %v2252, %v2254
    %v2261 = vadd.f32 %v2253, %v2255
    %v2262 = vadd.f32 %v2260, %v2256
    %v2263 = vadd.f32 %v2261, %v2257
    %v2264 = vadd.f32 %v2262, %v2258
    %v2265 = vadd.f32 %v2263, %v2259
    %v2266 = vpack.c.bf16 %v2265, %v2264
    %v2267 = vld [vmem:[%s1973 + $0x4] sm:$0xf]
    %v2268 = vld [vmem:[%s1973 + $0x10] sm:$0xf]
    %v2269 = vld [vmem:[%s1973 + $0x1c] sm:$0xf]
    %v2270 = vld [vmem:[%s1973 + $0x28] sm:$0xf]
    %v2271 = vld [vmem:[%s1978 + $0x1] sm:$0x1]
    %v2272 = vperm.slane %v2271, 0
    %v2277 = vunpack.c.l.b16 %v2267
    %v2278 = vunpack.c.l.b16 %v2268
    %v2279 = vunpack.c.l.b16 %v2269
    %v2280 = vunpack.c.l.b16 %v2270
    %v2281 = vpack.c.b16 %v2278, %v2277
    %v2282 = vpack.c.b16 %v2280, %v2279
    %v2286 = vsel %vm397, %v2266, 0
    %2288 = vmatpush.bf16.msra.mxu0 0
    %2289 = vmatpush.bf16.msra.mxu0 0
    %2290 = vmatpush.bf16.msra.mxu0 0
    %2291 = vmatpush.bf16.msra.mxu0 0
    %2292 = vmatpush.bf16.msra.mxu0 0
    %2293 = vmatpush.bf16.msra.mxu0 0
    %2294 = vmatpush.bf16.msra.mxu0 %v2282
    %2295 = vmatpush.bf16.msra.mxu0 %v2281
    %2296 = vmatmul.bf16.gmra.mxu0 %v2286
    %v2297 = vpop.f32.mrf.mxu0
    %v2298 = vadd.f32 %v2272, %v2297
    %v2299 = vpop.f32.mrf.mxu0
    %v2300 = vadd.f32 %v2272, %v2299
    %2301 = vdwg.mxu0
    %v2302 = vadd.f32 %v1970, %v2298
    %v2303 = vadd.f32 %v1971, %v2300
    %v2304 = vld [vmem:[%s1978 + $0x2] sm:$0x1]
    %v2305 = vld [vmem:[%s1978 + $0x3] sm:$0x1]
    %v2306 = vsel %vm397, %v2302, 0.0
    %2307 = vadd.xlane.f32.xlu0 %v2306
    %v2308 = vpop.xlane.xlu0 %2307
    %v2309 = vsel %vm397, %v2303, 0.0
    %2310 = vadd.xlane.f32.xlu0 %v2309
    %v2311 = vpop.xlane.xlu0 %2310
    %v2312 = vmul.f32 %v2308, %v724
    %v2313 = vmul.f32 %v2311, %v724
    %v2314 = vsub.f32 %v2302, %v2312
    %v2315 = vsub.f32 %v2303, %v2313
    %v2316 = vmul.f32 %v2314, %v2314
    %v2317 = vmul.f32 %v2315, %v2315
    %v2318 = vsel %vm397, %v2316, 0.0
    %2319 = vadd.xlane.f32.xlu0 %v2318
    %v2320 = vpop.xlane.xlu0 %2319
    %v2321 = vsel %vm397, %v2317, 0.0
    %2322 = vadd.xlane.f32.xlu0 %v2321
    %v2323 = vpop.xlane.xlu0 %2322
    %v2324 = vmul.f32 %v2320, %v724
    %v2325 = vmul.f32 %v2323, %v724
    %v2326 = vadd.f32 %v2324, 1e-05
    %v2327 = vadd.f32 %v2325, 1e-05
    %v2328 = vrsqrt.pop %v2326
    %v2329 = vmul.f32 %v2328, %v2326
    %v2330 = vmul.f32 %v2329, %v2328
    %v2331 = vmul.f32 0.5, %v2330
    %v2332 = vsub.f32 1.5, %v2331
    %v2333 = vmul.f32 %v2328, %v2332
    %vm2334 = vweird.f32 %v2326
    %vm2335 = vweird.f32 %v2328
    %vm2336 = vmor %vm2334, %vm2335
    %v2337 = vsel %vm2336, %v2328, %v2333
    %v2338 = vrsqrt.pop %v2327
    %v2339 = vmul.f32 %v2338, %v2327
    %v2340 = vmul.f32 %v2339, %v2338
    %v2341 = vmul.f32 0.5, %v2340
    %v2342 = vsub.f32 1.5, %v2341
    %v2343 = vmul.f32 %v2338, %v2342
    %vm2344 = vweird.f32 %v2327
    %vm2345 = vweird.f32 %v2338
    %vm2346 = vmor %vm2344, %vm2345
    %v2347 = vsel %vm2346, %v2338, %v2343
    %v2348 = vmul.f32 %v2314, %v2337
    %v2349 = vmul.f32 %v2315, %v2347
    %v2350 = vperm.slane %v2304, 0
    %v2351 = vmul.f32 %v2348, %v2350
    %v2352 = vmul.f32 %v2349, %v2350
    %v2353 = vperm.slane %v2305, 0
    %v2354 = vadd.f32 %v2351, %v2353
    %v2355 = vadd.f32 %v2352, %v2353
    %v2356 = vpack.c.bf16 %v2355, %v2354
    %v2357 = vld [vmem:[%s1973 + $0x8] sm:$0xf]
    %v2358 = vld [vmem:[%s1973 + $0x14] sm:$0xf]
    %v2359 = vld [vmem:[%s1973 + $0x20] sm:$0xf]
    %v2360 = vld [vmem:[%s1973 + $0x2c] sm:$0xf]
    %v2361 = vld [vmem:[%s1978 + $0x4] sm:$0x1]
    %v2362 = vperm.slane %v2361, 0
    %v2367 = vunpack.c.l.b16 %v2357
    %v2368 = vunpack.c.l.b16 %v2358
    %v2369 = vunpack.c.l.b16 %v2359
    %v2370 = vunpack.c.l.b16 %v2360
    %v2371 = vpack.c.b16 %v2368, %v2367
    %v2372 = vpack.c.b16 %v2370, %v2369
    %v2376 = vsel %vm397, %v2356, 0
    %2378 = vmatpush.bf16.msra.mxu0 0
    %2379 = vmatpush.bf16.msra.mxu0 0
    %2380 = vmatpush.bf16.msra.mxu0 0
    %2381 = vmatpush.bf16.msra.mxu0 0
    %2382 = vmatpush.bf16.msra.mxu0 0
    %2383 = vmatpush.bf16.msra.mxu0 0
    %2384 = vmatpush.bf16.msra.mxu0 %v2372
    %2385 = vmatpush.bf16.msra.mxu0 %v2371
    %2386 = vmatmul.bf16.gmra.mxu0 %v2376
    %v2387 = vpop.f32.mrf.mxu0
    %v2388 = vadd.f32 %v2362, %v2387
    %v2389 = vpop.f32.mrf.mxu0
    %v2390 = vadd.f32 %v2362, %v2389
    %2391 = vdwg.mxu0
    %v2392 = vmax.f32 %v2388, 0.0
    %v2393 = vmax.f32 %v2390, 0.0
    %v2394 = vpack.c.bf16 %v2393, %v2392
    %s2395 = scalar_lea.vmem %s4, 96
    %v2396 = vld [vmem:[%s2395] sm:$0xf]
    %v2397 = vld [vmem:[%s2395 + $0x4] sm:$0xf]
    %v2398 = vld [vmem:[%s2395 + $0x8] sm:$0xf]
    %v2399 = vld [vmem:[%s2395 + $0xc] sm:$0xf]
    %v2400 = vld [vmem:[%s2395 + $0x10] sm:$0xf]
    %v2401 = vld [vmem:[%s2395 + $0x14] sm:$0xf]
    %v2402 = vld [vmem:[%s2395 + $0x18] sm:$0xf]
    %v2403 = vld [vmem:[%s2395 + $0x1c] sm:$0xf]
    %v2404 = vld [vmem:[%s1978 + $0x5] sm:$0x1]
    %v2405 = vperm.slane %v2404, 0
    %v2414 = vunpack.c.l.b16 %v2396
    %v2415 = vunpack.c.l.b16 %v2397
    %v2416 = vunpack.c.l.b16 %v2398
    %v2417 = vunpack.c.l.b16 %v2399
    %v2418 = vunpack.c.l.b16 %v2400
    %v2419 = vunpack.c.l.b16 %v2401
    %v2420 = vunpack.c.l.b16 %v2402
    %v2421 = vunpack.c.l.b16 %v2403
    %v2422 = vpack.c.b16 %v2415, %v2414
    %v2423 = vpack.c.b16 %v2417, %v2416
    %v2424 = vpack.c.b16 %v2419, %v2418
    %v2425 = vpack.c.b16 %v2421, %v2420
    %v2431 = vsel %vm842, %v2394, 0
    %2433 = vmatpush.bf16.msra.mxu0 0
    %2434 = vmatpush.bf16.msra.mxu0 0
    %2435 = vmatpush.bf16.msra.mxu0 0
    %2436 = vmatpush.bf16.msra.mxu0 0
    %2437 = vmatpush.bf16.msra.mxu0 %v2425
    %2438 = vmatpush.bf16.msra.mxu0 %v2424
    %2439 = vmatpush.bf16.msra.mxu0 %v2423
    %2440 = vmatpush.bf16.msra.mxu0 %v2422
    %2441 = vmatmul.bf16.gmra.mxu0 %v2431
    %v2442 = vpop.f32.mrf.mxu0
    %v2443 = vadd.f32 %v2405, %v2442
    %v2444 = vpop.f32.mrf.mxu0
    %v2445 = vadd.f32 %v2405, %v2444
    %2446 = vdwg.mxu0
    %v2447 = vadd.f32 %v2354, %v2443
    %v2448 = vadd.f32 %v2355, %v2445
    %v2449 = vld [vmem:[%s1978 + $0x6] sm:$0x1]
    %v2450 = vld [vmem:[%s1978 + $0x7] sm:$0x1]
    %v2451 = vsel %vm397, %v2447, 0.0
    %2452 = vadd.xlane.f32.xlu0 %v2451
    %v2453 = vpop.xlane.xlu0 %2452
    %v2454 = vsel %vm397, %v2448, 0.0
    %2455 = vadd.xlane.f32.xlu0 %v2454
    %v2456 = vpop.xlane.xlu0 %2455
    %v2457 = vmul.f32 %v2453, %v724
    %v2458 = vmul.f32 %v2456, %v724
    %v2459 = vsub.f32 %v2447, %v2457
    %v2460 = vsub.f32 %v2448, %v2458
    %v2461 = vmul.f32 %v2459, %v2459
    %v2462 = vmul.f32 %v2460, %v2460
    %v2463 = vsel %vm397, %v2461, 0.0
    %2464 = vadd.xlane.f32.xlu0 %v2463
    %v2465 = vpop.xlane.xlu0 %2464
    %v2466 = vsel %vm397, %v2462, 0.0
    %2467 = vadd.xlane.f32.xlu0 %v2466
    %v2468 = vpop.xlane.xlu0 %2467
    %v2469 = vmul.f32 %v2465, %v724
    %v2470 = vmul.f32 %v2468, %v724
    %v2471 = vadd.f32 %v2469, 1e-05
    %v2472 = vadd.f32 %v2470, 1e-05
    %v2473 = vrsqrt.pop %v2471
    %v2474 = vmul.f32 %v2473, %v2471
    %v2475 = vmul.f32 %v2474, %v2473
    %v2476 = vmul.f32 0.5, %v2475
    %v2477 = vsub.f32 1.5, %v2476
    %v2478 = vmul.f32 %v2473, %v2477
    %vm2479 = vweird.f32 %v2471
    %vm2480 = vweird.f32 %v2473
    %vm2481 = vmor %vm2479, %vm2480
    %v2482 = vsel %vm2481, %v2473, %v2478
    %v2483 = vrsqrt.pop %v2472
    %v2484 = vmul.f32 %v2483, %v2472
    %v2485 = vmul.f32 %v2484, %v2483
    %v2486 = vmul.f32 0.5, %v2485
    %v2487 = vsub.f32 1.5, %v2486
    %v2488 = vmul.f32 %v2483, %v2487
    %vm2489 = vweird.f32 %v2472
    %vm2490 = vweird.f32 %v2483
    %vm2491 = vmor %vm2489, %vm2490
    %v2492 = vsel %vm2491, %v2483, %v2488
    %v2493 = vmul.f32 %v2459, %v2482
    %v2494 = vmul.f32 %v2460, %v2492
    %v2495 = vperm.slane %v2449, 0
    %v2496 = vmul.f32 %v2493, %v2495
    %v2497 = vmul.f32 %v2494, %v2495
    %v2498 = vperm.slane %v2450, 0
    %v2499 = vadd.f32 %v2496, %v2498
    %v2500 = vadd.f32 %v2497, %v2498
    %v2501 = vpack.c.bf16 %v2500, %v2499
    %s2502 = scalar_lea.vmem %s3, 192
    %v2503 = vld [vmem:[%s2502] sm:$0xf]
    %v2504 = vld [vmem:[%s2502 + $0xc] sm:$0xf]
    %v2505 = vld [vmem:[%s2502 + $0x18] sm:$0xf]
    %v2506 = vld [vmem:[%s2502 + $0x24] sm:$0xf]
    %s2507 = scalar_lea.vmem [#allocation2], 32
    %v2508 = vld [vmem:[%s2507] sm:$0x1]
    %v2509 = vperm.slane %v2508, 0
    %v2514 = vunpack.c.l.b16 %v2503
    %v2515 = vunpack.c.l.b16 %v2504
    %v2516 = vunpack.c.l.b16 %v2505
    %v2517 = vunpack.c.l.b16 %v2506
    %v2518 = vpack.c.b16 %v2515, %v2514
    %v2519 = vpack.c.b16 %v2517, %v2516
    %v2523 = vsel %vm397, %v2501, 0
    %2525 = vmatpush.bf16.msra.mxu0 0
    %2526 = vmatpush.bf16.msra.mxu0 0
    %2527 = vmatpush.bf16.msra.mxu0 0
    %2528 = vmatpush.bf16.msra.mxu0 0
    %2529 = vmatpush.bf16.msra.mxu0 0
    %2530 = vmatpush.bf16.msra.mxu0 0
    %2531 = vmatpush.bf16.msra.mxu0 %v2519
    %2532 = vmatpush.bf16.msra.mxu0 %v2518
    %2533 = vmatmul.bf16.gmra.mxu0 %v2523
    %v2534 = vpop.f32.mrf.mxu0
    %v2535 = vadd.f32 %v2509, %v2534
    %v2536 = vpop.f32.mrf.mxu0
    %v2537 = vadd.f32 %v2509, %v2536
    %2538 = vdwg.mxu0
    %v2539 = vmul.f32 %v2535, %v368
    %v2540 = vmul.f32 %v2537, %v369
    %v2541 = vmul.f32 %v2535, %v370
    %v2542 = vmul.f32 %v2537, %v371
    %v2543 = vmul.f32 %v2535, %v372
    %v2544 = vmul.f32 %v2537, %v373
    %v2545 = vmul.f32 %v2535, %v374
    %v2546 = vmul.f32 %v2537, %v375
    %2549 = vrot.lane.b32.xlu0 %v2535, 96
    %v2550 = vpop.permute.xlu0 %2549
    %2551 = vrot.lane.b32.xlu0 %v2537, 96
    %v2552 = vpop.permute.xlu0 %2551
    %v2554 = vsel %vm397, %v2539, 0
    %v2557 = vsel %vm397, %v2540, 0
    %v2560 = vsel %vm397, %v2541, 0
    %v2563 = vsel %vm397, %v2542, 0
    %v2566 = vsel %vm397, %v2543, 0
    %v2569 = vsel %vm397, %v2544, 0
    %v2572 = vsel %vm397, %v2545, 0
    %v2575 = vsel %vm397, %v2546, 0
    %v2577 = vsel %vm397, %v2550, 0
    %v2579 = vsel %vm397, %v2552, 0
    %2581 = vmatpush.xpose.msra.mxu0 0.0
    %2582 = vmatpush.xpose.msra.mxu0 0.0
    %2583 = vmatpush.xpose.msra.mxu0 0.0
    %2584 = vmatpush.xpose.msra.mxu0 0.0
    %2585 = vmatpush.xpose.msra.mxu0 0.0
    %2586 = vmatpush.xpose.msra.mxu0 0.0
    %2587 = vmatpush.xpose.msra.mxu0 0.0
    %2588 = vmatpush.xpose.msra.mxu0 0.0
    %2589 = vmatpush.xpose.msra.mxu0 0.0
    %2590 = vmatpush.xpose.msra.mxu0 0.0
    %2591 = vmatpush.xpose.msra.mxu0 0.0
    %2592 = vmatpush.xpose.msra.mxu0 0.0
    %2593 = vmatpush.xpose.msra.mxu0 0.0
    %2594 = vmatpush.xpose.msra.mxu0 0.0
    %2595 = vmatpush.xpose.msra.mxu0 %v2579
    %2596 = vmatpush.xpose.msra.mxu0 %v2577
    %2597 = vmatmul.f32.gmra.mxu0 %v2554
    %v2598 = vpop.f32.mrf.mxu0
    %v2599 = vadd.f32 %v376, %v2598
    %2600 = vmatmul.f32.gmra.mxu0 %v2557
    %v2601 = vpop.f32.mrf.mxu0
    %v2602 = vadd.f32 %v377, %v2601
    %2603 = vmatmul.f32.gmra.mxu0 %v2560
    %v2604 = vpop.f32.mrf.mxu0
    %v2605 = vadd.f32 %v376, %v2604
    %2606 = vmatmul.f32.gmra.mxu0 %v2563
    %v2607 = vpop.f32.mrf.mxu0
    %v2608 = vadd.f32 %v377, %v2607
    %2609 = vmatmul.f32.gmra.mxu0 %v2566
    %v2610 = vpop.f32.mrf.mxu0
    %v2611 = vadd.f32 %v376, %v2610
    %2612 = vmatmul.f32.gmra.mxu0 %v2569
    %v2613 = vpop.f32.mrf.mxu0
    %v2614 = vadd.f32 %v377, %v2613
    %2615 = vmatmul.f32.gmra.mxu0 %v2572
    %v2616 = vpop.f32.mrf.mxu0
    %v2617 = vadd.f32 %v376, %v2616
    %2618 = vmatmul.f32.gmra.mxu0 %v2575
    %v2619 = vpop.f32.mrf.mxu0
    %v2620 = vadd.f32 %v377, %v2619
    %2621 = vdwg.mxu0
    %v2622 = vsel %vm498, %v2599, -inf
    %2623 = vmax.xlane.f32.xlu0 %v2622
    %v2624 = vpop.xlane.xlu0 %2623
    %v2625 = vsel %vm498, %v2602, -inf
    %2626 = vmax.xlane.f32.xlu0 %v2625
    %v2627 = vpop.xlane.xlu0 %2626
    %v2628 = vsel %vm498, %v2605, -inf
    %2629 = vmax.xlane.f32.xlu0 %v2628
    %v2630 = vpop.xlane.xlu0 %2629
    %v2631 = vsel %vm498, %v2608, -inf
    %2632 = vmax.xlane.f32.xlu0 %v2631
    %v2633 = vpop.xlane.xlu0 %2632
    %v2634 = vsel %vm498, %v2611, -inf
    %2635 = vmax.xlane.f32.xlu0 %v2634
    %v2636 = vpop.xlane.xlu0 %2635
    %v2637 = vsel %vm498, %v2614, -inf
    %2638 = vmax.xlane.f32.xlu0 %v2637
    %v2639 = vpop.xlane.xlu0 %2638
    %v2640 = vsel %vm498, %v2617, -inf
    %2641 = vmax.xlane.f32.xlu0 %v2640
    %v2642 = vpop.xlane.xlu0 %2641
    %v2643 = vsel %vm498, %v2620, -inf
    %2644 = vmax.xlane.f32.xlu0 %v2643
    %v2645 = vpop.xlane.xlu0 %2644
    %v2646 = vsub.f32 %v2599, %v2624
    %v2647 = vsub.f32 %v2602, %v2627
    %v2648 = vsub.f32 %v2605, %v2630
    %v2649 = vsub.f32 %v2608, %v2633
    %v2650 = vsub.f32 %v2611, %v2636
    %v2651 = vsub.f32 %v2614, %v2639
    %v2652 = vsub.f32 %v2617, %v2642
    %v2653 = vsub.f32 %v2620, %v2645
    %v2654 = vmul.f32 %v2646, 1.442695
    %v2655 = vpow.pop %v2654
    %v2656 = vmul.f32 %v2647, 1.442695
    %v2657 = vpow.pop %v2656
    %v2658 = vmul.f32 %v2648, 1.442695
    %v2659 = vpow.pop %v2658
    %v2660 = vmul.f32 %v2649, 1.442695
    %v2661 = vpow.pop %v2660
    %v2662 = vmul.f32 %v2650, 1.442695
    %v2663 = vpow.pop %v2662
    %v2664 = vmul.f32 %v2651, 1.442695
    %v2665 = vpow.pop %v2664
    %v2666 = vmul.f32 %v2652, 1.442695
    %v2667 = vpow.pop %v2666
    %v2668 = vmul.f32 %v2653, 1.442695
    %v2669 = vpow.pop %v2668
    %v2670 = vsel %vm498, %v2655, 0.0
    %2671 = vadd.xlane.f32.xlu0 %v2670
    %v2672 = vpop.xlane.xlu0 %2671
    %v2673 = vsel %vm498, %v2657, 0.0
    %2674 = vadd.xlane.f32.xlu0 %v2673
    %v2675 = vpop.xlane.xlu0 %2674
    %v2676 = vsel %vm498, %v2659, 0.0
    %2677 = vadd.xlane.f32.xlu0 %v2676
    %v2678 = vpop.xlane.xlu0 %2677
    %v2679 = vsel %vm498, %v2661, 0.0
    %2680 = vadd.xlane.f32.xlu0 %v2679
    %v2681 = vpop.xlane.xlu0 %2680
    %v2682 = vsel %vm498, %v2663, 0.0
    %2683 = vadd.xlane.f32.xlu0 %v2682
    %v2684 = vpop.xlane.xlu0 %2683
    %v2685 = vsel %vm498, %v2665, 0.0
    %2686 = vadd.xlane.f32.xlu0 %v2685
    %v2687 = vpop.xlane.xlu0 %2686
    %v2688 = vsel %vm498, %v2667, 0.0
    %2689 = vadd.xlane.f32.xlu0 %v2688
    %v2690 = vpop.xlane.xlu0 %2689
    %v2691 = vsel %vm498, %v2669, 0.0
    %2692 = vadd.xlane.f32.xlu0 %v2691
    %v2693 = vpop.xlane.xlu0 %2692
    %v2694 = vrcp.pop %v2672
    %v2695 = vrcp.pop %v2675
    %v2696 = vrcp.pop %v2678
    %v2697 = vrcp.pop %v2681
    %v2698 = vrcp.pop %v2684
    %v2699 = vrcp.pop %v2687
    %v2700 = vrcp.pop %v2690
    %v2701 = vrcp.pop %v2693
    %v2702 = vmul.f32 %v2655, %v2694
    %v2703 = vmul.f32 %v2657, %v2695
    %v2704 = vmul.f32 %v2659, %v2696
    %v2705 = vmul.f32 %v2661, %v2697
    %v2706 = vmul.f32 %v2663, %v2698
    %v2707 = vmul.f32 %v2665, %v2699
    %v2708 = vmul.f32 %v2667, %v2700
    %v2709 = vmul.f32 %v2669, %v2701
    %2710 = vrot.lane.b32.xlu0 %v2535, 64
    %v2711 = vpop.permute.xlu0 %2710
    %2712 = vrot.lane.b32.xlu0 %v2537, 64
    %v2713 = vpop.permute.xlu0 %2712
    %v2717 = vsel %vm498, %v2702, 0
    %v2720 = vsel %vm498, %v2703, 0
    %v2723 = vsel %vm498, %v2704, 0
    %v2726 = vsel %vm498, %v2705, 0
    %v2729 = vsel %vm498, %v2706, 0
    %v2732 = vsel %vm498, %v2707, 0
    %v2735 = vsel %vm498, %v2708, 0
    %v2738 = vsel %vm498, %v2709, 0
    %2740 = vmatpush.msra.mxu0 0.0
    %2741 = vmatpush.msra.mxu0 0.0
    %2742 = vmatpush.msra.mxu0 0.0
    %2743 = vmatpush.msra.mxu0 0.0
    %2744 = vmatpush.msra.mxu0 0.0
    %2745 = vmatpush.msra.mxu0 0.0
    %2746 = vmatpush.msra.mxu0 0.0
    %2747 = vmatpush.msra.mxu0 0.0
    %2748 = vmatpush.msra.mxu0 0.0
    %2749 = vmatpush.msra.mxu0 0.0
    %2750 = vmatpush.msra.mxu0 0.0
    %2751 = vmatpush.msra.mxu0 0.0
    %2752 = vmatpush.msra.mxu0 0.0
    %2753 = vmatpush.msra.mxu0 0.0
    %2754 = vmatpush.msra.mxu0 %v2713
    %2755 = vmatpush.msra.mxu0 %v2711
    %2756 = vmatmul.f32.gmra.mxu0 %v2717
    %v2757 = vpop.f32.mrf.mxu0
    %v2758 = vadd.f32 0.0, %v2757
    %2759 = vmatmul.f32.gmra.mxu0 %v2720
    %v2760 = vpop.f32.mrf.mxu0
    %v2761 = vadd.f32 0.0, %v2760
    %2762 = vmatmul.f32.gmra.mxu0 %v2723
    %v2763 = vpop.f32.mrf.mxu0
    %v2764 = vadd.f32 0.0, %v2763
    %2765 = vmatmul.f32.gmra.mxu0 %v2726
    %v2766 = vpop.f32.mrf.mxu0
    %v2767 = vadd.f32 0.0, %v2766
    %2768 = vmatmul.f32.gmra.mxu0 %v2729
    %v2769 = vpop.f32.mrf.mxu0
    %v2770 = vadd.f32 0.0, %v2769
    %2771 = vmatmul.f32.gmra.mxu0 %v2732
    %v2772 = vpop.f32.mrf.mxu0
    %v2773 = vadd.f32 0.0, %v2772
    %2774 = vmatmul.f32.gmra.mxu0 %v2735
    %v2775 = vpop.f32.mrf.mxu0
    %v2776 = vadd.f32 0.0, %v2775
    %2777 = vmatmul.f32.gmra.mxu0 %v2738
    %v2778 = vpop.f32.mrf.mxu0
    %v2779 = vadd.f32 0.0, %v2778
    %2780 = vdwg.mxu0
    %v2781 = vmul.f32 %v2758, %v368
    %v2782 = vmul.f32 %v2761, %v369
    %v2783 = vmul.f32 %v2764, %v370
    %v2784 = vmul.f32 %v2767, %v371
    %v2785 = vmul.f32 %v2770, %v372
    %v2786 = vmul.f32 %v2773, %v373
    %v2787 = vmul.f32 %v2776, %v374
    %v2788 = vmul.f32 %v2779, %v375
    %v2789 = vadd.f32 %v2781, %v2783
    %v2790 = vadd.f32 %v2782, %v2784
    %v2791 = vadd.f32 %v2789, %v2785
    %v2792 = vadd.f32 %v2790, %v2786
    %v2793 = vadd.f32 %v2791, %v2787
    %v2794 = vadd.f32 %v2792, %v2788
    %v2795 = vpack.c.bf16 %v2794, %v2793
    %v2796 = vld [vmem:[%s2502 + $0x4] sm:$0xf]
    %v2797 = vld [vmem:[%s2502 + $0x10] sm:$0xf]
    %v2798 = vld [vmem:[%s2502 + $0x1c] sm:$0xf]
    %v2799 = vld [vmem:[%s2502 + $0x28] sm:$0xf]
    %v2800 = vld [vmem:[%s2507 + $0x1] sm:$0x1]
    %v2801 = vperm.slane %v2800, 0
    %v2806 = vunpack.c.l.b16 %v2796
    %v2807 = vunpack.c.l.b16 %v2797
    %v2808 = vunpack.c.l.b16 %v2798
    %v2809 = vunpack.c.l.b16 %v2799
    %v2810 = vpack.c.b16 %v2807, %v2806
    %v2811 = vpack.c.b16 %v2809, %v2808
    %v2815 = vsel %vm397, %v2795, 0
    %2817 = vmatpush.bf16.msra.mxu0 0
    %2818 = vmatpush.bf16.msra.mxu0 0
    %2819 = vmatpush.bf16.msra.mxu0 0
    %2820 = vmatpush.bf16.msra.mxu0 0
    %2821 = vmatpush.bf16.msra.mxu0 0
    %2822 = vmatpush.bf16.msra.mxu0 0
    %2823 = vmatpush.bf16.msra.mxu0 %v2811
    %2824 = vmatpush.bf16.msra.mxu0 %v2810
    %2825 = vmatmul.bf16.gmra.mxu0 %v2815
    %v2826 = vpop.f32.mrf.mxu0
    %v2827 = vadd.f32 %v2801, %v2826
    %v2828 = vpop.f32.mrf.mxu0
    %v2829 = vadd.f32 %v2801, %v2828
    %2830 = vdwg.mxu0
    %v2831 = vadd.f32 %v2499, %v2827
    %v2832 = vadd.f32 %v2500, %v2829
    %v2833 = vld [vmem:[%s2507 + $0x2] sm:$0x1]
    %v2834 = vld [vmem:[%s2507 + $0x3] sm:$0x1]
    %v2835 = vsel %vm397, %v2831, 0.0
    %2836 = vadd.xlane.f32.xlu0 %v2835
    %v2837 = vpop.xlane.xlu0 %2836
    %v2838 = vsel %vm397, %v2832, 0.0
    %2839 = vadd.xlane.f32.xlu0 %v2838
    %v2840 = vpop.xlane.xlu0 %2839
    %v2841 = vmul.f32 %v2837, %v724
    %v2842 = vmul.f32 %v2840, %v724
    %v2843 = vsub.f32 %v2831, %v2841
    %v2844 = vsub.f32 %v2832, %v2842
    %v2845 = vmul.f32 %v2843, %v2843
    %v2846 = vmul.f32 %v2844, %v2844
    %v2847 = vsel %vm397, %v2845, 0.0
    %2848 = vadd.xlane.f32.xlu0 %v2847
    %v2849 = vpop.xlane.xlu0 %2848
    %v2850 = vsel %vm397, %v2846, 0.0
    %2851 = vadd.xlane.f32.xlu0 %v2850
    %v2852 = vpop.xlane.xlu0 %2851
    %v2853 = vmul.f32 %v2849, %v724
    %v2854 = vmul.f32 %v2852, %v724
    %v2855 = vadd.f32 %v2853, 1e-05
    %v2856 = vadd.f32 %v2854, 1e-05
    %v2857 = vrsqrt.pop %v2855
    %v2858 = vmul.f32 %v2857, %v2855
    %v2859 = vmul.f32 %v2858, %v2857
    %v2860 = vmul.f32 0.5, %v2859
    %v2861 = vsub.f32 1.5, %v2860
    %v2862 = vmul.f32 %v2857, %v2861
    %vm2863 = vweird.f32 %v2855
    %vm2864 = vweird.f32 %v2857
    %vm2865 = vmor %vm2863, %vm2864
    %v2866 = vsel %vm2865, %v2857, %v2862
    %v2867 = vrsqrt.pop %v2856
    %v2868 = vmul.f32 %v2867, %v2856
    %v2869 = vmul.f32 %v2868, %v2867
    %v2870 = vmul.f32 0.5, %v2869
    %v2871 = vsub.f32 1.5, %v2870
    %v2872 = vmul.f32 %v2867, %v2871
    %vm2873 = vweird.f32 %v2856
    %vm2874 = vweird.f32 %v2867
    %vm2875 = vmor %vm2873, %vm2874
    %v2876 = vsel %vm2875, %v2867, %v2872
    %v2877 = vmul.f32 %v2843, %v2866
    %v2878 = vmul.f32 %v2844, %v2876
    %v2879 = vperm.slane %v2833, 0
    %v2880 = vmul.f32 %v2877, %v2879
    %v2881 = vmul.f32 %v2878, %v2879
    %v2882 = vperm.slane %v2834, 0
    %v2883 = vadd.f32 %v2880, %v2882
    %v2884 = vadd.f32 %v2881, %v2882
    %v2885 = vpack.c.bf16 %v2884, %v2883
    %v2886 = vld [vmem:[%s2502 + $0x8] sm:$0xf]
    %v2887 = vld [vmem:[%s2502 + $0x14] sm:$0xf]
    %v2888 = vld [vmem:[%s2502 + $0x20] sm:$0xf]
    %v2889 = vld [vmem:[%s2502 + $0x2c] sm:$0xf]
    %v2890 = vld [vmem:[%s2507 + $0x4] sm:$0x1]
    %v2891 = vperm.slane %v2890, 0
    %v2896 = vunpack.c.l.b16 %v2886
    %v2897 = vunpack.c.l.b16 %v2887
    %v2898 = vunpack.c.l.b16 %v2888
    %v2899 = vunpack.c.l.b16 %v2889
    %v2900 = vpack.c.b16 %v2897, %v2896
    %v2901 = vpack.c.b16 %v2899, %v2898
    %v2905 = vsel %vm397, %v2885, 0
    %2907 = vmatpush.bf16.msra.mxu0 0
    %2908 = vmatpush.bf16.msra.mxu0 0
    %2909 = vmatpush.bf16.msra.mxu0 0
    %2910 = vmatpush.bf16.msra.mxu0 0
    %2911 = vmatpush.bf16.msra.mxu0 0
    %2912 = vmatpush.bf16.msra.mxu0 0
    %2913 = vmatpush.bf16.msra.mxu0 %v2901
    %2914 = vmatpush.bf16.msra.mxu0 %v2900
    %2915 = vmatmul.bf16.gmra.mxu0 %v2905
    %v2916 = vpop.f32.mrf.mxu0
    %v2917 = vadd.f32 %v2891, %v2916
    %v2918 = vpop.f32.mrf.mxu0
    %v2919 = vadd.f32 %v2891, %v2918
    %2920 = vdwg.mxu0
    %v2921 = vmax.f32 %v2917, 0.0
    %v2922 = vmax.f32 %v2919, 0.0
    %v2923 = vpack.c.bf16 %v2922, %v2921
    %s2924 = scalar_lea.vmem %s4, 128
    %v2925 = vld [vmem:[%s2924] sm:$0xf]
    %v2926 = vld [vmem:[%s2924 + $0x4] sm:$0xf]
    %v2927 = vld [vmem:[%s2924 + $0x8] sm:$0xf]
    %v2928 = vld [vmem:[%s2924 + $0xc] sm:$0xf]
    %v2929 = vld [vmem:[%s2924 + $0x10] sm:$0xf]
    %v2930 = vld [vmem:[%s2924 + $0x14] sm:$0xf]
    %v2931 = vld [vmem:[%s2924 + $0x18] sm:$0xf]
    %v2932 = vld [vmem:[%s2924 + $0x1c] sm:$0xf]
    %v2933 = vld [vmem:[%s2507 + $0x5] sm:$0x1]
    %v2934 = vperm.slane %v2933, 0
    %v2943 = vunpack.c.l.b16 %v2925
    %v2944 = vunpack.c.l.b16 %v2926
    %v2945 = vunpack.c.l.b16 %v2927
    %v2946 = vunpack.c.l.b16 %v2928
    %v2947 = vunpack.c.l.b16 %v2929
    %v2948 = vunpack.c.l.b16 %v2930
    %v2949 = vunpack.c.l.b16 %v2931
    %v2950 = vunpack.c.l.b16 %v2932
    %v2951 = vpack.c.b16 %v2944, %v2943
    %v2952 = vpack.c.b16 %v2946, %v2945
    %v2953 = vpack.c.b16 %v2948, %v2947
    %v2954 = vpack.c.b16 %v2950, %v2949
    %v2960 = vsel %vm842, %v2923, 0
    %2962 = vmatpush.bf16.msra.mxu0 0
    %2963 = vmatpush.bf16.msra.mxu0 0
    %2964 = vmatpush.bf16.msra.mxu0 0
    %2965 = vmatpush.bf16.msra.mxu0 0
    %2966 = vmatpush.bf16.msra.mxu0 %v2954
    %2967 = vmatpush.bf16.msra.mxu0 %v2953
    %2968 = vmatpush.bf16.msra.mxu0 %v2952
    %2969 = vmatpush.bf16.msra.mxu0 %v2951
    %2970 = vmatmul.bf16.gmra.mxu0 %v2960
    %v2971 = vpop.f32.mrf.mxu0
    %v2972 = vadd.f32 %v2934, %v2971
    %v2973 = vpop.f32.mrf.mxu0
    %v2974 = vadd.f32 %v2934, %v2973
    %2975 = vdwg.mxu0
    %v2976 = vadd.f32 %v2883, %v2972
    %v2977 = vadd.f32 %v2884, %v2974
    %v2978 = vld [vmem:[%s2507 + $0x6] sm:$0x1]
    %v2979 = vld [vmem:[%s2507 + $0x7] sm:$0x1]
    %v2980 = vsel %vm397, %v2976, 0.0
    %2981 = vadd.xlane.f32.xlu0 %v2980
    %v2982 = vpop.xlane.xlu0 %2981
    %v2983 = vsel %vm397, %v2977, 0.0
    %2984 = vadd.xlane.f32.xlu0 %v2983
    %v2985 = vpop.xlane.xlu0 %2984
    %v2986 = vmul.f32 %v2982, %v724
    %v2987 = vmul.f32 %v2985, %v724
    %v2988 = vsub.f32 %v2976, %v2986
    %v2989 = vsub.f32 %v2977, %v2987
    %v2990 = vmul.f32 %v2988, %v2988
    %v2991 = vmul.f32 %v2989, %v2989
    %v2992 = vsel %vm397, %v2990, 0.0
    %2993 = vadd.xlane.f32.xlu0 %v2992
    %v2994 = vpop.xlane.xlu0 %2993
    %v2995 = vsel %vm397, %v2991, 0.0
    %2996 = vadd.xlane.f32.xlu0 %v2995
    %v2997 = vpop.xlane.xlu0 %2996
    %v2998 = vmul.f32 %v2994, %v724
    %v2999 = vmul.f32 %v2997, %v724
    %v3000 = vadd.f32 %v2998, 1e-05
    %v3001 = vadd.f32 %v2999, 1e-05
    %v3002 = vrsqrt.pop %v3000
    %v3003 = vmul.f32 %v3002, %v3000
    %v3004 = vmul.f32 %v3003, %v3002
    %v3005 = vmul.f32 0.5, %v3004
    %v3006 = vsub.f32 1.5, %v3005
    %v3007 = vmul.f32 %v3002, %v3006
    %vm3008 = vweird.f32 %v3000
    %vm3009 = vweird.f32 %v3002
    %vm3010 = vmor %vm3008, %vm3009
    %v3011 = vsel %vm3010, %v3002, %v3007
    %v3012 = vrsqrt.pop %v3001
    %v3013 = vmul.f32 %v3012, %v3001
    %v3014 = vmul.f32 %v3013, %v3012
    %v3015 = vmul.f32 0.5, %v3014
    %v3016 = vsub.f32 1.5, %v3015
    %v3017 = vmul.f32 %v3012, %v3016
    %vm3018 = vweird.f32 %v3001
    %vm3019 = vweird.f32 %v3012
    %vm3020 = vmor %vm3018, %vm3019
    %v3021 = vsel %vm3020, %v3012, %v3017
    %v3022 = vmul.f32 %v2988, %v3011
    %v3023 = vmul.f32 %v2989, %v3021
    %v3024 = vperm.slane %v2978, 0
    %v3025 = vmul.f32 %v3022, %v3024
    %v3026 = vmul.f32 %v3023, %v3024
    %v3027 = vperm.slane %v2979, 0
    %v3028 = vadd.f32 %v3025, %v3027
    %v3029 = vadd.f32 %v3026, %v3027
    %v3030 = vpack.c.bf16 %v3029, %v3028
    %s3031 = scalar_lea.vmem %s3, 240
    %v3032 = vld [vmem:[%s3031] sm:$0xf]
    %v3033 = vld [vmem:[%s3031 + $0xc] sm:$0xf]
    %v3034 = vld [vmem:[%s3031 + $0x18] sm:$0xf]
    %v3035 = vld [vmem:[%s3031 + $0x24] sm:$0xf]
    %s3036 = scalar_lea.vmem [#allocation2], 40
    %v3037 = vld [vmem:[%s3036] sm:$0x1]
    %v3038 = vperm.slane %v3037, 0
    %v3043 = vunpack.c.l.b16 %v3032
    %v3044 = vunpack.c.l.b16 %v3033
    %v3045 = vunpack.c.l.b16 %v3034
    %v3046 = vunpack.c.l.b16 %v3035
    %v3047 = vpack.c.b16 %v3044, %v3043
    %v3048 = vpack.c.b16 %v3046, %v3045
    %v3052 = vsel %vm397, %v3030, 0
    %3054 = vmatpush.bf16.msra.mxu0 0
    %3055 = vmatpush.bf16.msra.mxu0 0
    %3056 = vmatpush.bf16.msra.mxu0 0
    %3057 = vmatpush.bf16.msra.mxu0 0
    %3058 = vmatpush.bf16.msra.mxu0 0
    %3059 = vmatpush.bf16.msra.mxu0 0
    %3060 = vmatpush.bf16.msra.mxu0 %v3048
    %3061 = vmatpush.bf16.msra.mxu0 %v3047
    %3062 = vmatmul.bf16.gmra.mxu0 %v3052
    %v3063 = vpop.f32.mrf.mxu0
    %v3064 = vadd.f32 %v3038, %v3063
    %v3065 = vpop.f32.mrf.mxu0
    %v3066 = vadd.f32 %v3038, %v3065
    %3067 = vdwg.mxu0
    %v3068 = vmul.f32 %v3064, %v368
    %v3069 = vmul.f32 %v3066, %v369
    %v3070 = vmul.f32 %v3064, %v370
    %v3071 = vmul.f32 %v3066, %v371
    %v3072 = vmul.f32 %v3064, %v372
    %v3073 = vmul.f32 %v3066, %v373
    %v3074 = vmul.f32 %v3064, %v374
    %v3075 = vmul.f32 %v3066, %v375
    %3078 = vrot.lane.b32.xlu0 %v3064, 96
    %v3079 = vpop.permute.xlu0 %3078
    %3080 = vrot.lane.b32.xlu0 %v3066, 96
    %v3081 = vpop.permute.xlu0 %3080
    %v3083 = vsel %vm397, %v3068, 0
    %v3086 = vsel %vm397, %v3069, 0
    %v3089 = vsel %vm397, %v3070, 0
    %v3092 = vsel %vm397, %v3071, 0
    %v3095 = vsel %vm397, %v3072, 0
    %v3098 = vsel %vm397, %v3073, 0
    %v3101 = vsel %vm397, %v3074, 0
    %v3104 = vsel %vm397, %v3075, 0
    %v3106 = vsel %vm397, %v3079, 0
    %v3108 = vsel %vm397, %v3081, 0
    %3110 = vmatpush.xpose.msra.mxu0 0.0
    %3111 = vmatpush.xpose.msra.mxu0 0.0
    %3112 = vmatpush.xpose.msra.mxu0 0.0
    %3113 = vmatpush.xpose.msra.mxu0 0.0
    %3114 = vmatpush.xpose.msra.mxu0 0.0
    %3115 = vmatpush.xpose.msra.mxu0 0.0
    %3116 = vmatpush.xpose.msra.mxu0 0.0
    %3117 = vmatpush.xpose.msra.mxu0 0.0
    %3118 = vmatpush.xpose.msra.mxu0 0.0
    %3119 = vmatpush.xpose.msra.mxu0 0.0
    %3120 = vmatpush.xpose.msra.mxu0 0.0
    %3121 = vmatpush.xpose.msra.mxu0 0.0
    %3122 = vmatpush.xpose.msra.mxu0 0.0
    %3123 = vmatpush.xpose.msra.mxu0 0.0
    %3124 = vmatpush.xpose.msra.mxu0 %v3108
    %3125 = vmatpush.xpose.msra.mxu0 %v3106
    %3126 = vmatmul.f32.gmra.mxu0 %v3083
    %v3127 = vpop.f32.mrf.mxu0
    %v3128 = vadd.f32 %v376, %v3127
    %3129 = vmatmul.f32.gmra.mxu0 %v3086
    %v3130 = vpop.f32.mrf.mxu0
    %v3131 = vadd.f32 %v377, %v3130
    %3132 = vmatmul.f32.gmra.mxu0 %v3089
    %v3133 = vpop.f32.mrf.mxu0
    %v3134 = vadd.f32 %v376, %v3133
    %3135 = vmatmul.f32.gmra.mxu0 %v3092
    %v3136 = vpop.f32.mrf.mxu0
    %v3137 = vadd.f32 %v377, %v3136
    %3138 = vmatmul.f32.gmra.mxu0 %v3095
    %v3139 = vpop.f32.mrf.mxu0
    %v3140 = vadd.f32 %v376, %v3139
    %3141 = vmatmul.f32.gmra.mxu0 %v3098
    %v3142 = vpop.f32.mrf.mxu0
    %v3143 = vadd.f32 %v377, %v3142
    %3144 = vmatmul.f32.gmra.mxu0 %v3101
    %v3145 = vpop.f32.mrf.mxu0
    %v3146 = vadd.f32 %v376, %v3145
    %3147 = vmatmul.f32.gmra.mxu0 %v3104
    %v3148 = vpop.f32.mrf.mxu0
    %v3149 = vadd.f32 %v377, %v3148
    %3150 = vdwg.mxu0
    %v3151 = vsel %vm498, %v3128, -inf
    %3152 = vmax.xlane.f32.xlu0 %v3151
    %v3153 = vpop.xlane.xlu0 %3152
    %v3154 = vsel %vm498, %v3131, -inf
    %3155 = vmax.xlane.f32.xlu0 %v3154
    %v3156 = vpop.xlane.xlu0 %3155
    %v3157 = vsel %vm498, %v3134, -inf
    %3158 = vmax.xlane.f32.xlu0 %v3157
    %v3159 = vpop.xlane.xlu0 %3158
    %v3160 = vsel %vm498, %v3137, -inf
    %3161 = vmax.xlane.f32.xlu0 %v3160
    %v3162 = vpop.xlane.xlu0 %3161
    %v3163 = vsel %vm498, %v3140, -inf
    %3164 = vmax.xlane.f32.xlu0 %v3163
    %v3165 = vpop.xlane.xlu0 %3164
    %v3166 = vsel %vm498, %v3143, -inf
    %3167 = vmax.xlane.f32.xlu0 %v3166
    %v3168 = vpop.xlane.xlu0 %3167
    %v3169 = vsel %vm498, %v3146, -inf
    %3170 = vmax.xlane.f32.xlu0 %v3169
    %v3171 = vpop.xlane.xlu0 %3170
    %v3172 = vsel %vm498, %v3149, -inf
    %3173 = vmax.xlane.f32.xlu0 %v3172
    %v3174 = vpop.xlane.xlu0 %3173
    %v3175 = vsub.f32 %v3128, %v3153
    %v3176 = vsub.f32 %v3131, %v3156
    %v3177 = vsub.f32 %v3134, %v3159
    %v3178 = vsub.f32 %v3137, %v3162
    %v3179 = vsub.f32 %v3140, %v3165
    %v3180 = vsub.f32 %v3143, %v3168
    %v3181 = vsub.f32 %v3146, %v3171
    %v3182 = vsub.f32 %v3149, %v3174
    %v3183 = vmul.f32 %v3175, 1.442695
    %v3184 = vpow.pop %v3183
    %v3185 = vmul.f32 %v3176, 1.442695
    %v3186 = vpow.pop %v3185
    %v3187 = vmul.f32 %v3177, 1.442695
    %v3188 = vpow.pop %v3187
    %v3189 = vmul.f32 %v3178, 1.442695
    %v3190 = vpow.pop %v3189
    %v3191 = vmul.f32 %v3179, 1.442695
    %v3192 = vpow.pop %v3191
    %v3193 = vmul.f32 %v3180, 1.442695
    %v3194 = vpow.pop %v3193
    %v3195 = vmul.f32 %v3181, 1.442695
    %v3196 = vpow.pop %v3195
    %v3197 = vmul.f32 %v3182, 1.442695
    %v3198 = vpow.pop %v3197
    %v3199 = vsel %vm498, %v3184, 0.0
    %3200 = vadd.xlane.f32.xlu0 %v3199
    %v3201 = vpop.xlane.xlu0 %3200
    %v3202 = vsel %vm498, %v3186, 0.0
    %3203 = vadd.xlane.f32.xlu0 %v3202
    %v3204 = vpop.xlane.xlu0 %3203
    %v3205 = vsel %vm498, %v3188, 0.0
    %3206 = vadd.xlane.f32.xlu0 %v3205
    %v3207 = vpop.xlane.xlu0 %3206
    %v3208 = vsel %vm498, %v3190, 0.0
    %3209 = vadd.xlane.f32.xlu0 %v3208
    %v3210 = vpop.xlane.xlu0 %3209
    %v3211 = vsel %vm498, %v3192, 0.0
    %3212 = vadd.xlane.f32.xlu0 %v3211
    %v3213 = vpop.xlane.xlu0 %3212
    %v3214 = vsel %vm498, %v3194, 0.0
    %3215 = vadd.xlane.f32.xlu0 %v3214
    %v3216 = vpop.xlane.xlu0 %3215
    %v3217 = vsel %vm498, %v3196, 0.0
    %3218 = vadd.xlane.f32.xlu0 %v3217
    %v3219 = vpop.xlane.xlu0 %3218
    %v3220 = vsel %vm498, %v3198, 0.0
    %3221 = vadd.xlane.f32.xlu0 %v3220
    %v3222 = vpop.xlane.xlu0 %3221
    %v3223 = vrcp.pop %v3201
    %v3224 = vrcp.pop %v3204
    %v3225 = vrcp.pop %v3207
    %v3226 = vrcp.pop %v3210
    %v3227 = vrcp.pop %v3213
    %v3228 = vrcp.pop %v3216
    %v3229 = vrcp.pop %v3219
    %v3230 = vrcp.pop %v3222
    %v3231 = vmul.f32 %v3184, %v3223
    %v3232 = vmul.f32 %v3186, %v3224
    %v3233 = vmul.f32 %v3188, %v3225
    %v3234 = vmul.f32 %v3190, %v3226
    %v3235 = vmul.f32 %v3192, %v3227
    %v3236 = vmul.f32 %v3194, %v3228
    %v3237 = vmul.f32 %v3196, %v3229
    %v3238 = vmul.f32 %v3198, %v3230
    %3239 = vrot.lane.b32.xlu0 %v3064, 64
    %v3240 = vpop.permute.xlu0 %3239
    %3241 = vrot.lane.b32.xlu0 %v3066, 64
    %v3242 = vpop.permute.xlu0 %3241
    %v3246 = vsel %vm498, %v3231, 0
    %v3249 = vsel %vm498, %v3232, 0
    %v3252 = vsel %vm498, %v3233, 0
    %v3255 = vsel %vm498, %v3234, 0
    %v3258 = vsel %vm498, %v3235, 0
    %v3261 = vsel %vm498, %v3236, 0
    %v3264 = vsel %vm498, %v3237, 0
    %v3267 = vsel %vm498, %v3238, 0
    %3269 = vmatpush.msra.mxu0 0.0
    %3270 = vmatpush.msra.mxu0 0.0
    %3271 = vmatpush.msra.mxu0 0.0
    %3272 = vmatpush.msra.mxu0 0.0
    %3273 = vmatpush.msra.mxu0 0.0
    %3274 = vmatpush.msra.mxu0 0.0
    %3275 = vmatpush.msra.mxu0 0.0
    %3276 = vmatpush.msra.mxu0 0.0
    %3277 = vmatpush.msra.mxu0 0.0
    %3278 = vmatpush.msra.mxu0 0.0
    %3279 = vmatpush.msra.mxu0 0.0
    %3280 = vmatpush.msra.mxu0 0.0
    %3281 = vmatpush.msra.mxu0 0.0
    %3282 = vmatpush.msra.mxu0 0.0
    %3283 = vmatpush.msra.mxu0 %v3242
    %3284 = vmatpush.msra.mxu0 %v3240
    %3285 = vmatmul.f32.gmra.mxu0 %v3246
    %v3286 = vpop.f32.mrf.mxu0
    %v3287 = vadd.f32 0.0, %v3286
    %3288 = vmatmul.f32.gmra.mxu0 %v3249
    %v3289 = vpop.f32.mrf.mxu0
    %v3290 = vadd.f32 0.0, %v3289
    %3291 = vmatmul.f32.gmra.mxu0 %v3252
    %v3292 = vpop.f32.mrf.mxu0
    %v3293 = vadd.f32 0.0, %v3292
    %3294 = vmatmul.f32.gmra.mxu0 %v3255
    %v3295 = vpop.f32.mrf.mxu0
    %v3296 = vadd.f32 0.0, %v3295
    %3297 = vmatmul.f32.gmra.mxu0 %v3258
    %v3298 = vpop.f32.mrf.mxu0
    %v3299 = vadd.f32 0.0, %v3298
    %3300 = vmatmul.f32.gmra.mxu0 %v3261
    %v3301 = vpop.f32.mrf.mxu0
    %v3302 = vadd.f32 0.0, %v3301
    %3303 = vmatmul.f32.gmra.mxu0 %v3264
    %v3304 = vpop.f32.mrf.mxu0
    %v3305 = vadd.f32 0.0, %v3304
    %3306 = vmatmul.f32.gmra.mxu0 %v3267
    %v3307 = vpop.f32.mrf.mxu0
    %v3308 = vadd.f32 0.0, %v3307
    %3309 = vdwg.mxu0
    %v3310 = vmul.f32 %v3287, %v368
    %v3311 = vmul.f32 %v3290, %v369
    %v3312 = vmul.f32 %v3293, %v370
    %v3313 = vmul.f32 %v3296, %v371
    %v3314 = vmul.f32 %v3299, %v372
    %v3315 = vmul.f32 %v3302, %v373
    %v3316 = vmul.f32 %v3305, %v374
    %v3317 = vmul.f32 %v3308, %v375
    %v3318 = vadd.f32 %v3310, %v3312
    %v3319 = vadd.f32 %v3311, %v3313
    %v3320 = vadd.f32 %v3318, %v3314
    %v3321 = vadd.f32 %v3319, %v3315
    %v3322 = vadd.f32 %v3320, %v3316
    %v3323 = vadd.f32 %v3321, %v3317
    %v3324 = vpack.c.bf16 %v3323, %v3322
    %v3325 = vld [vmem:[%s3031 + $0x4] sm:$0xf]
    %v3326 = vld [vmem:[%s3031 + $0x10] sm:$0xf]
    %v3327 = vld [vmem:[%s3031 + $0x1c] sm:$0xf]
    %v3328 = vld [vmem:[%s3031 + $0x28] sm:$0xf]
    %v3329 = vld [vmem:[%s3036 + $0x1] sm:$0x1]
    %v3330 = vperm.slane %v3329, 0
    %v3335 = vunpack.c.l.b16 %v3325
    %v3336 = vunpack.c.l.b16 %v3326
    %v3337 = vunpack.c.l.b16 %v3327
    %v3338 = vunpack.c.l.b16 %v3328
    %v3339 = vpack.c.b16 %v3336, %v3335
    %v3340 = vpack.c.b16 %v3338, %v3337
    %v3344 = vsel %vm397, %v3324, 0
    %3346 = vmatpush.bf16.msra.mxu0 0
    %3347 = vmatpush.bf16.msra.mxu0 0
    %3348 = vmatpush.bf16.msra.mxu0 0
    %3349 = vmatpush.bf16.msra.mxu0 0
    %3350 = vmatpush.bf16.msra.mxu0 0
    %3351 = vmatpush.bf16.msra.mxu0 0
    %3352 = vmatpush.bf16.msra.mxu0 %v3340
    %3353 = vmatpush.bf16.msra.mxu0 %v3339
    %3354 = vmatmul.bf16.gmra.mxu0 %v3344
    %v3355 = vpop.f32.mrf.mxu0
    %v3356 = vadd.f32 %v3330, %v3355
    %v3357 = vpop.f32.mrf.mxu0
    %v3358 = vadd.f32 %v3330, %v3357
    %3359 = vdwg.mxu0
    %v3360 = vadd.f32 %v3028, %v3356
    %v3361 = vadd.f32 %v3029, %v3358
    %v3362 = vld [vmem:[%s3036 + $0x2] sm:$0x1]
    %v3363 = vld [vmem:[%s3036 + $0x3] sm:$0x1]
    %v3364 = vsel %vm397, %v3360, 0.0
    %3365 = vadd.xlane.f32.xlu0 %v3364
    %v3366 = vpop.xlane.xlu0 %3365
    %v3367 = vsel %vm397, %v3361, 0.0
    %3368 = vadd.xlane.f32.xlu0 %v3367
    %v3369 = vpop.xlane.xlu0 %3368
    %v3370 = vmul.f32 %v3366, %v724
    %v3371 = vmul.f32 %v3369, %v724
    %v3372 = vsub.f32 %v3360, %v3370
    %v3373 = vsub.f32 %v3361, %v3371
    %v3374 = vmul.f32 %v3372, %v3372
    %v3375 = vmul.f32 %v3373, %v3373
    %v3376 = vsel %vm397, %v3374, 0.0
    %3377 = vadd.xlane.f32.xlu0 %v3376
    %v3378 = vpop.xlane.xlu0 %3377
    %v3379 = vsel %vm397, %v3375, 0.0
    %3380 = vadd.xlane.f32.xlu0 %v3379
    %v3381 = vpop.xlane.xlu0 %3380
    %v3382 = vmul.f32 %v3378, %v724
    %v3383 = vmul.f32 %v3381, %v724
    %v3384 = vadd.f32 %v3382, 1e-05
    %v3385 = vadd.f32 %v3383, 1e-05
    %v3386 = vrsqrt.pop %v3384
    %v3387 = vmul.f32 %v3386, %v3384
    %v3388 = vmul.f32 %v3387, %v3386
    %v3389 = vmul.f32 0.5, %v3388
    %v3390 = vsub.f32 1.5, %v3389
    %v3391 = vmul.f32 %v3386, %v3390
    %vm3392 = vweird.f32 %v3384
    %vm3393 = vweird.f32 %v3386
    %vm3394 = vmor %vm3392, %vm3393
    %v3395 = vsel %vm3394, %v3386, %v3391
    %v3396 = vrsqrt.pop %v3385
    %v3397 = vmul.f32 %v3396, %v3385
    %v3398 = vmul.f32 %v3397, %v3396
    %v3399 = vmul.f32 0.5, %v3398
    %v3400 = vsub.f32 1.5, %v3399
    %v3401 = vmul.f32 %v3396, %v3400
    %vm3402 = vweird.f32 %v3385
    %vm3403 = vweird.f32 %v3396
    %vm3404 = vmor %vm3402, %vm3403
    %v3405 = vsel %vm3404, %v3396, %v3401
    %v3406 = vmul.f32 %v3372, %v3395
    %v3407 = vmul.f32 %v3373, %v3405
    %v3408 = vperm.slane %v3362, 0
    %v3409 = vmul.f32 %v3406, %v3408
    %v3410 = vmul.f32 %v3407, %v3408
    %v3411 = vperm.slane %v3363, 0
    %v3412 = vadd.f32 %v3409, %v3411
    %v3413 = vadd.f32 %v3410, %v3411
    %v3414 = vpack.c.bf16 %v3413, %v3412
    %v3415 = vld [vmem:[%s3031 + $0x8] sm:$0xf]
    %v3416 = vld [vmem:[%s3031 + $0x14] sm:$0xf]
    %v3417 = vld [vmem:[%s3031 + $0x20] sm:$0xf]
    %v3418 = vld [vmem:[%s3031 + $0x2c] sm:$0xf]
    %v3419 = vld [vmem:[%s3036 + $0x4] sm:$0x1]
    %v3420 = vperm.slane %v3419, 0
    %v3425 = vunpack.c.l.b16 %v3415
    %v3426 = vunpack.c.l.b16 %v3416
    %v3427 = vunpack.c.l.b16 %v3417
    %v3428 = vunpack.c.l.b16 %v3418
    %v3429 = vpack.c.b16 %v3426, %v3425
    %v3430 = vpack.c.b16 %v3428, %v3427
    %v3434 = vsel %vm397, %v3414, 0
    %3436 = vmatpush.bf16.msra.mxu0 0
    %3437 = vmatpush.bf16.msra.mxu0 0
    %3438 = vmatpush.bf16.msra.mxu0 0
    %3439 = vmatpush.bf16.msra.mxu0 0
    %3440 = vmatpush.bf16.msra.mxu0 0
    %3441 = vmatpush.bf16.msra.mxu0 0
    %3442 = vmatpush.bf16.msra.mxu0 %v3430
    %3443 = vmatpush.bf16.msra.mxu0 %v3429
    %3444 = vmatmul.bf16.gmra.mxu0 %v3434
    %v3445 = vpop.f32.mrf.mxu0
    %v3446 = vadd.f32 %v3420, %v3445
    %v3447 = vpop.f32.mrf.mxu0
    %v3448 = vadd.f32 %v3420, %v3447
    %3449 = vdwg.mxu0
    %v3450 = vmax.f32 %v3446, 0.0
    %v3451 = vmax.f32 %v3448, 0.0
    %v3452 = vpack.c.bf16 %v3451, %v3450
    %s3453 = scalar_lea.vmem %s4, 160
    %v3454 = vld [vmem:[%s3453] sm:$0xf]
    %v3455 = vld [vmem:[%s3453 + $0x4] sm:$0xf]
    %v3456 = vld [vmem:[%s3453 + $0x8] sm:$0xf]
    %v3457 = vld [vmem:[%s3453 + $0xc] sm:$0xf]
    %v3458 = vld [vmem:[%s3453 + $0x10] sm:$0xf]
    %v3459 = vld [vmem:[%s3453 + $0x14] sm:$0xf]
    %v3460 = vld [vmem:[%s3453 + $0x18] sm:$0xf]
    %v3461 = vld [vmem:[%s3453 + $0x1c] sm:$0xf]
    %v3462 = vld [vmem:[%s3036 + $0x5] sm:$0x1]
    %v3463 = vperm.slane %v3462, 0
    %v3472 = vunpack.c.l.b16 %v3454
    %v3473 = vunpack.c.l.b16 %v3455
    %v3474 = vunpack.c.l.b16 %v3456
    %v3475 = vunpack.c.l.b16 %v3457
    %v3476 = vunpack.c.l.b16 %v3458
    %v3477 = vunpack.c.l.b16 %v3459
    %v3478 = vunpack.c.l.b16 %v3460
    %v3479 = vunpack.c.l.b16 %v3461
    %v3480 = vpack.c.b16 %v3473, %v3472
    %v3481 = vpack.c.b16 %v3475, %v3474
    %v3482 = vpack.c.b16 %v3477, %v3476
    %v3483 = vpack.c.b16 %v3479, %v3478
    %v3489 = vsel %vm842, %v3452, 0
    %3491 = vmatpush.bf16.msra.mxu0 0
    %3492 = vmatpush.bf16.msra.mxu0 0
    %3493 = vmatpush.bf16.msra.mxu0 0
    %3494 = vmatpush.bf16.msra.mxu0 0
    %3495 = vmatpush.bf16.msra.mxu0 %v3483
    %3496 = vmatpush.bf16.msra.mxu0 %v3482
    %3497 = vmatpush.bf16.msra.mxu0 %v3481
    %3498 = vmatpush.bf16.msra.mxu0 %v3480
    %3499 = vmatmul.bf16.gmra.mxu0 %v3489
    %v3500 = vpop.f32.mrf.mxu0
    %v3501 = vadd.f32 %v3463, %v3500
    %v3502 = vpop.f32.mrf.mxu0
    %v3503 = vadd.f32 %v3463, %v3502
    %3504 = vdwg.mxu0
    %v3505 = vadd.f32 %v3412, %v3501
    %v3506 = vadd.f32 %v3413, %v3503
    %v3507 = vld [vmem:[%s3036 + $0x6] sm:$0x1]
    %v3508 = vld [vmem:[%s3036 + $0x7] sm:$0x1]
    %v3509 = vsel %vm397, %v3505, 0.0
    %3510 = vadd.xlane.f32.xlu0 %v3509
    %v3511 = vpop.xlane.xlu0 %3510
    %v3512 = vsel %vm397, %v3506, 0.0
    %3513 = vadd.xlane.f32.xlu0 %v3512
    %v3514 = vpop.xlane.xlu0 %3513
    %v3515 = vmul.f32 %v3511, %v724
    %v3516 = vmul.f32 %v3514, %v724
    %v3517 = vsub.f32 %v3505, %v3515
    %v3518 = vsub.f32 %v3506, %v3516
    %v3519 = vmul.f32 %v3517, %v3517
    %v3520 = vmul.f32 %v3518, %v3518
    %v3521 = vsel %vm397, %v3519, 0.0
    %3522 = vadd.xlane.f32.xlu0 %v3521
    %v3523 = vpop.xlane.xlu0 %3522
    %v3524 = vsel %vm397, %v3520, 0.0
    %3525 = vadd.xlane.f32.xlu0 %v3524
    %v3526 = vpop.xlane.xlu0 %3525
    %v3527 = vmul.f32 %v3523, %v724
    %v3528 = vmul.f32 %v3526, %v724
    %v3529 = vadd.f32 %v3527, 1e-05
    %v3530 = vadd.f32 %v3528, 1e-05
    %v3531 = vrsqrt.pop %v3529
    %v3532 = vmul.f32 %v3531, %v3529
    %v3533 = vmul.f32 %v3532, %v3531
    %v3534 = vmul.f32 0.5, %v3533
    %v3535 = vsub.f32 1.5, %v3534
    %v3536 = vmul.f32 %v3531, %v3535
    %vm3537 = vweird.f32 %v3529
    %vm3538 = vweird.f32 %v3531
    %vm3539 = vmor %vm3537, %vm3538
    %v3540 = vsel %vm3539, %v3531, %v3536
    %v3541 = vrsqrt.pop %v3530
    %v3542 = vmul.f32 %v3541, %v3530
    %v3543 = vmul.f32 %v3542, %v3541
    %v3544 = vmul.f32 0.5, %v3543
    %v3545 = vsub.f32 1.5, %v3544
    %v3546 = vmul.f32 %v3541, %v3545
    %vm3547 = vweird.f32 %v3530
    %vm3548 = vweird.f32 %v3541
    %vm3549 = vmor %vm3547, %vm3548
    %v3550 = vsel %vm3549, %v3541, %v3546
    %v3551 = vmul.f32 %v3517, %v3540
    %v3552 = vmul.f32 %v3518, %v3550
    %v3553 = vperm.slane %v3507, 0
    %v3554 = vmul.f32 %v3551, %v3553
    %v3555 = vmul.f32 %v3552, %v3553
    %v3556 = vperm.slane %v3508, 0
    %v3557 = vadd.f32 %v3554, %v3556
    %v3558 = vadd.f32 %v3555, %v3556
    %v3559 = vpack.c.bf16 %v3558, %v3557
    %s3560 = scalar_lea.vmem %s3, 288
    %v3561 = vld [vmem:[%s3560] sm:$0xf]
    %v3562 = vld [vmem:[%s3560 + $0xc] sm:$0xf]
    %v3563 = vld [vmem:[%s3560 + $0x18] sm:$0xf]
    %v3564 = vld [vmem:[%s3560 + $0x24] sm:$0xf]
    %s3565 = scalar_lea.vmem [#allocation2], 48
    %v3566 = vld [vmem:[%s3565] sm:$0x1]
    %v3567 = vperm.slane %v3566, 0
    %v3572 = vunpack.c.l.b16 %v3561
    %v3573 = vunpack.c.l.b16 %v3562
    %v3574 = vunpack.c.l.b16 %v3563
    %v3575 = vunpack.c.l.b16 %v3564
    %v3576 = vpack.c.b16 %v3573, %v3572
    %v3577 = vpack.c.b16 %v3575, %v3574
    %v3581 = vsel %vm397, %v3559, 0
    %3583 = vmatpush.bf16.msra.mxu0 0
    %3584 = vmatpush.bf16.msra.mxu0 0
    %3585 = vmatpush.bf16.msra.mxu0 0
    %3586 = vmatpush.bf16.msra.mxu0 0
    %3587 = vmatpush.bf16.msra.mxu0 0
    %3588 = vmatpush.bf16.msra.mxu0 0
    %3589 = vmatpush.bf16.msra.mxu0 %v3577
    %3590 = vmatpush.bf16.msra.mxu0 %v3576
    %3591 = vmatmul.bf16.gmra.mxu0 %v3581
    %v3592 = vpop.f32.mrf.mxu0
    %v3593 = vadd.f32 %v3567, %v3592
    %v3594 = vpop.f32.mrf.mxu0
    %v3595 = vadd.f32 %v3567, %v3594
    %3596 = vdwg.mxu0
    %3597 = vst.msk [vmem:[#allocation5] sm:$0xff] %vm842, %v3593
    %3598 = vst.msk [vmem:[#allocation5 + $0x8] sm:$0xff] %vm842, %v3595
    // Predicated region
    $region30: #{gpt_forward.1} parent=1 // pred_check
      _
    $region31: #{gpt_forward.1} parent=1 // pred_check_branch
      %3600 = sbr.rel (0) target = $region33
    $region32: #{gpt_forward.1} parent=1 // pred_region
      %3602 = vsyncadd [#allocation4], 0
      %s3603 = sshll.u32 [#allocation5], 4
      %s3604 = int_to_ptr.vmem [resolvable:$true] %s3603
      %s3605 = sshll.u32 %s6, 4
      %s3606 = int_to_ptr.hbm [resolvable:$true] %s3605
      %3611 = dma.vmem_to_hbm [thread:$0]  %s3604, 256, %s3606, [#allocation4], 128, 128, 8
    $region33: #{gpt_forward.1} parent=1 // pred_fallthru
      _
    // Predicated region
    $region34: #{gpt_forward.1} parent=1 // pred_check
      _
    $region35: #{gpt_forward.1} parent=1 // pred_check_branch
      %3613 = sbr.rel (0) target = $region37
    $region36: #{gpt_forward.1} parent=1 // pred_region
      %3615 = dma.done [#allocation4], 256
    $region37: #{gpt_forward.1} parent=1 // pred_fallthru
      _
    %3616 = vsyncpa [#allocation3], 1
    %3617 = vsyncpa [#allocation4], 1

</llo_original>
